<compile_context>
chip_gen: v7x
topology: tpu7x:2x2x1
jax: 0.10.0
libtpu: 0.0.40
codegen_flags: <defaults>
</compile_context>

<pallas_src>
import functools

import jax
import jax.numpy as jnp
from jax.experimental import pallas as pl
from jax.experimental.pallas import tpu as pltpu


_VMEM_LIMIT_BYTES = 48 * 1024 * 1024


# ------------------------------ Pallas kernel ---------------------------------

def _round_up(x, m):
    return (x + m - 1) // m * m


def _fold_bn(gamma, beta, mean, var, eps=1e-5):
    scale = gamma / jnp.sqrt(var + eps)
    return scale, beta - mean * scale                 # (C,), (C,)


def _make_fused_kernel(stride, ho, wo, cin, c1p, c2p):
    """Fused ResNet basic block for one image (one grid step)."""
    s = stride
    rows = ho * wo

    def kernel(ph_ref, w1_ref, b1_ref, w2_ref, wd_ref, b2d_ref, o_ref, y1_ref):
        # ph_ref : (s*s, Hph, Wph, Cin) f32   stride phases of the padded input
        # w1_ref : (9, Cin, C1p) f32          conv1 taps, BN1 scale folded
        # b1_ref : (1, C1p) f32               folded BN1 bias
        # w2_ref : (9, C1p, C2p) bf16         conv2 taps, BN2 scale folded
        # wd_ref : (Cin, C2p) f32             1x1 downsample, BNd scale folded
        # b2d_ref: (1, C2p) f32               merged BN2 + BNd bias
        # o_ref  : (1, Ho*Wo, C2p) f32        block output
        # y1_ref : (Ho+2, Wo+2, C1p) f32      zero-padded stage-1 activation (VMEM only)

        # ---- stage 1: 3x3 conv (stride s) + BN1 + ReLU ------------------------
        acc1 = jnp.zeros((rows, c1p), jnp.float32)
        for t in range(9):
            kh, kw = t // 3, t % 3
            pidx = (kh % s) * s + (kw % s)            # which stride phase
            ro, co = kh // s, kw // s                 # static offset inside phase
            tap = ph_ref[pidx, ro:ro + ho, co:co + wo, :].reshape(rows, cin)
            acc1 = acc1 + jnp.dot(tap, w1_ref[t],
                                  preferred_element_type=jnp.float32)
        y1 = jnp.maximum(acc1 + b1_ref[...], 0.0).reshape(ho, wo, c1p)

        # stage-1 activation stays in VMEM, zero-padded for the next 3x3 conv
        y1_ref[...] = jnp.zeros_like(y1_ref)
        y1_ref[1:ho + 1, 1:wo + 1, :] = y1

        # ---- stage 2: 3x3 conv (stride 1) + BN2, fused with downsample + ReLU --
        acc2 = jnp.zeros((rows, c2p), jnp.float32)
        for t in range(9):
            kh, kw = t // 3, t % 3
            tap = y1_ref[kh:kh + ho, kw:kw + wo, :].reshape(rows, c1p)
            acc2 = acc2 + jnp.dot(tap.astype(jnp.bfloat16), w2_ref[t],
                                  preferred_element_type=jnp.float32)

        # downsample branch: 1x1 conv on strided input samples x[s*ho, s*wo]
        dp = (1 % s) * s + (1 % s)
        do = 1 // s
        xs = ph_ref[dp, do:do + ho, do:do + wo, :].reshape(rows, cin)
        acc2 = acc2 + jnp.dot(xs, wd_ref[...], preferred_element_type=jnp.float32)

        o_ref[0] = jnp.maximum(acc2 + b2d_ref[...], 0.0).astype(o_ref.dtype)

    return kernel


# ------------------------------- glue (JAX) ------------------------------------

def resnet_basic_block(x_nchw, params, stride):
    """Forward pass matching ResNetBasicBlock (eval-mode BatchNorm).

    x_nchw: (N, Cin, H, W) float32.  Returns (N, Cout, Ho, Wo) float32.
    """
    n, cin, h, w = x_nchw.shape
    s = int(stride)
    w1, bn1 = params["w1"], params["bn1"]             # w1: (Chid, Cin, 3, 3)
    w2, bn2 = params["w2"], params["bn2"]             # w2: (Cout, Chid, 3, 3)
    wd, bnd = params["wd"], params["bnd"]             # wd: (Cout, Cin, 1, 1)
    chid, cout = w1.shape[0], w2.shape[0]
    c1p = _round_up(chid, 128)                        # lane-dense padded channels
    c2p = _round_up(cout, 128)

    ho = (h - 1) // s + 1
    wo = (w - 1) // s + 1
    rows = ho * wo
    p_cnt = s * s
    hph = 2 // s + ho                                 # rows a single phase must hold
    wph = 2 // s + wo

    s1, b1 = _fold_bn(*bn1)
    s2, b2 = _fold_bn(*bn2)
    sd, bd = _fold_bn(*bnd)

    # NCHW -> NHWC, conv padding=1, split into s*s stride phases so that every
    # in-kernel tap slice is static unit-stride.  Total phase bytes == input bytes.
    x = jnp.transpose(x_nchw, (0, 2, 3, 1)).astype(jnp.float32)
    xp = jnp.pad(x, ((0, 0), (1, 1), (1, 1), (0, 0)))
    phase_list = []
    for ph in range(s):
        for pw in range(s):
            sl = xp[:, ph::s, pw::s, :][:, :hph, :wph, :]
            sl = jnp.pad(sl, ((0, 0), (0, hph - sl.shape[1]),
                              (0, wph - sl.shape[2]), (0, 0)))
            phase_list.append(sl)
    phases = jnp.stack(phase_list, axis=1).reshape(n * p_cnt, hph, wph, cin)

    # Fold BN scales into the conv weights; pad channels.
    def prep3x3(w_oihw, scale, cin_pad, cout_pad, dtype):
        o, i = w_oihw.shape[0], w_oihw.shape[1]
        wt = jnp.transpose(w_oihw, (2, 3, 1, 0)) * scale[None, None, None, :]
        wt = jnp.pad(wt, ((0, 0), (0, 0), (0, cin_pad - i), (0, cout_pad - o)))
        return wt.reshape(9, cin_pad, cout_pad).astype(dtype)

    w1r = prep3x3(w1, s1, cin, c1p, jnp.float32)      # tiny K -> keep f32
    w2r = prep3x3(w2, s2, c1p, c2p, jnp.bfloat16)     # dominant matmul -> bf16 MXU
    wdr = jnp.transpose(wd[:, :, 0, 0], (1, 0)) * sd[None, :]
    wdr = jnp.pad(wdr, ((0, 0), (0, c2p - cout))).astype(jnp.float32)

    b1p = jnp.pad(b1, (0, c1p - chid))[None, :].astype(jnp.float32)
    b2dp = jnp.pad(b2 + bd, (0, c2p - cout))[None, :].astype(jnp.float32)

    kernel = _make_fused_kernel(s, ho, wo, cin, c1p, c2p)
    flops = 2 * n * rows * (9 * cin * c1p + 9 * c1p * c2p + cin * c2p)
    bytes_accessed = int((phases.size + w1r.size + wdr.size + b1p.size + b2dp.size) * 4
                         + w2r.size * 2 + n * rows * c2p * 4)

    out = pl.pallas_call(
        kernel,
        out_shape=jax.ShapeDtypeStruct((n, rows, c2p), jnp.float32),
        grid=(n,),
        in_specs=[
            pl.BlockSpec((p_cnt, hph, wph, cin), lambda i: (i, 0, 0, 0)),
            pl.BlockSpec((9, cin, c1p), lambda i: (0, 0, 0)),
            pl.BlockSpec((1, c1p), lambda i: (0, 0)),
            pl.BlockSpec((9, c1p, c2p), lambda i: (0, 0, 0)),
            pl.BlockSpec((cin, c2p), lambda i: (0, 0)),
            pl.BlockSpec((1, c2p), lambda i: (0, 0)),
        ],
        out_specs=pl.BlockSpec((1, rows, c2p), lambda i: (i, 0, 0)),
        scratch_shapes=[pltpu.VMEM((ho + 2, wo + 2, c1p), jnp.float32)],
        compiler_params=pltpu.CompilerParams(
            dimension_semantics=("parallel",),
            vmem_limit_bytes=_VMEM_LIMIT_BYTES),
        cost_estimate=pl.CostEstimate(flops=flops, transcendentals=0,
                                      bytes_accessed=bytes_accessed),
    )(phases, w1r, b1p, w2r, wdr, b2dp)

    out = out[:, :, :cout].reshape(n, ho, wo, cout)
    return jnp.transpose(out, (0, 3, 1, 2))           # NHWC -> NCHW


# -------------------------- deterministic params -------------------------------

def make_params(key, cin, chid, cout):
    ks = jax.random.split(key, 12)

    def bn_params(k0, k1, k2, k3, c):
        gamma = jax.random.uniform(k0, (c,), jnp.float32, 0.5, 1.5)
        beta = 0.1 * jax.random.normal(k1, (c,), jnp.float32)
        mean = 0.1 * jax.random.normal(k2, (c,), jnp.float32)
        var = jax.random.uniform(k3, (c,), jnp.float32, 0.5, 1.5)
        return (gamma, beta, mean, var)

    return {
        "w1": 0.1 * jax.random.normal(ks[0], (chid, cin, 3, 3), jnp.float32),
        "bn1": bn_params(ks[1], ks[2], ks[3], ks[4], chid),
        "w2": 0.1 * jax.random.normal(ks[5], (cout, chid, 3, 3), jnp.float32),
        "bn2": bn_params(ks[6], ks[7], ks[8], ks[9], cout),
        "wd": 0.1 * jax.random.normal(ks[10], (cout, cin, 1, 1), jnp.float32),
        "bnd": bn_params(ks[11], ks[1], ks[5], ks[0], cout),
    }


# --------------------------- pure-JAX reference ---------------------------------

def _reference(x_nchw, params, stride):
    def conv(x, w, s, pad):
        return jax.lax.conv_general_dilated(
            x, w, window_strides=(s, s), padding=pad,
            dimension_numbers=("NCHW", "OIHW", "NCHW"))

    def bn(x, p, eps=1e-5):
        g, b, m, v = p
        sc = g / jnp.sqrt(v + eps)
        return x * sc[None, :, None, None] + (b - m * sc)[None, :, None, None]

    y = jax.nn.relu(bn(conv(x_nchw, params["w1"], stride, [(1, 1), (1, 1)]), params["bn1"]))
    y = bn(conv(y, params["w2"], 1, [(1, 1), (1, 1)]), params["bn2"])
    d = bn(conv(x_nchw, params["wd"], stride, [(0, 0), (0, 0)]), params["bnd"])
    return jax.nn.relu(y + d)


# ------------------------------------ main --------------------------------------

if __name__ == "__main__":
    key = jax.random.PRNGKey(0)
    k_x, k_p = jax.random.split(key)

    N, CIN, CHID, COUT, H, W = 2, 4, 8, 8, 16, 16
    STRIDE = 2  # downsample_by

    x = jax.random.normal(k_x, (N, CIN, H, W), jnp.float32)
    params = make_params(k_p, CIN, CHID, COUT)

    fwd = jax.jit(functools.partial(resnet_basic_block, stride=STRIDE))
    out = fwd(x, params)
    jax.block_until_ready(out)

    ref = _reference(x, params, STRIDE)
    assert out.shape == ref.shape == (N, COUT, H // STRIDE, W // STRIDE)
    # conv2 runs with bf16 MXU operands (f32 accumulation); stage-1 / downsample are f32.
    assert jnp.allclose(out, ref, atol=1e-1, rtol=1e-1), "mismatch vs. JAX reference"

    print("KERNEL_OK")
</pallas_src>

<mosaic_0001>
module attributes {stable_mosaic.version = 11 : i64} {
  func.func @kernel(%arg0: i32, %arg1: memref<4x9x9x4xf32, #tpu.memory_space<vmem>>, %arg2: memref<9x4x128xf32, #tpu.memory_space<vmem>>, %arg3: memref<1x128xf32, #tpu.memory_space<vmem>>, %arg4: memref<9x128x128xbf16, #tpu.memory_space<vmem>>, %arg5: memref<4x128xf32, #tpu.memory_space<vmem>>, %arg6: memref<1x128xf32, #tpu.memory_space<vmem>>, %arg7: memref<1x64x128xf32, #tpu.memory_space<vmem>>, %arg8: memref<10x10x128xf32, #tpu.memory_space<vmem>>) attributes {dimension_semantics = [#tpu.dimension_semantics<parallel>], iteration_bounds = array<i64: 2>, scalar_prefetch = 0 : i64, scratch_operands = 1 : i64, tpu.core_type = #tpu.core_type<tc>, window_params = [{transform_indices = @transform_0, window_bounds = array<i64: 4, 9, 9, 4>}, {pipeline_mode = #tpu.pipeline_mode<synchronous>, transform_indices = @transform_1, window_bounds = array<i64: 9, 4, 128>}, {pipeline_mode = #tpu.pipeline_mode<synchronous>, transform_indices = @transform_2, window_bounds = array<i64: 1, 128>}, {pipeline_mode = #tpu.pipeline_mode<synchronous>, transform_indices = @transform_3, window_bounds = array<i64: 9, 128, 128>}, {pipeline_mode = #tpu.pipeline_mode<synchronous>, transform_indices = @transform_4, window_bounds = array<i64: 4, 128>}, {pipeline_mode = #tpu.pipeline_mode<synchronous>, transform_indices = @transform_5, window_bounds = array<i64: 1, 128>}, {transform_indices = @transform_6, window_bounds = array<i64: 1, 64, 128>}]} {
    %cst = arith.constant 0.000000e+00 : f32
    %0 = vector.broadcast %cst : f32 to vector<64x128xf32>
    %c0 = arith.constant 0 : index
    %c0_0 = arith.constant 0 : index
    %c0_1 = arith.constant 0 : index
    %c0_2 = arith.constant 0 : index
    %1 = vector.load %arg1[%c0, %c0_0, %c0_1, %c0_2] : memref<4x9x9x4xf32, #tpu.memory_space<vmem>>, vector<1x8x8x4xf32>
    %2 = vector.shape_cast %1 : vector<1x8x8x4xf32> to vector<8x8x4xf32>
    %3 = vector.shape_cast %2 : vector<8x8x4xf32> to vector<64x4xf32>
    %c0_3 = arith.constant 0 : index
    %c0_4 = arith.constant 0 : index
    %c0_5 = arith.constant 0 : index
    %4 = vector.load %arg2[%c0_3, %c0_4, %c0_5] : memref<9x4x128xf32, #tpu.memory_space<vmem>>, vector<1x4x128xf32>
    %5 = vector.shape_cast %4 : vector<1x4x128xf32> to vector<4x128xf32>
    %cst_6 = arith.constant dense<0.000000e+00> : vector<64x128xf32>
    %6 = tpu.matmul %3, %5, %cst_6 {dimension_numbers = #tpu.dot_dimension_numbers<[1], [0], [0], [1], [0, 0, 1, 1], [], []>} : vector<64x4xf32>, vector<4x128xf32>, vector<64x128xf32> -> vector<64x128xf32>
    %7 = arith.addf %0, %6 : vector<64x128xf32>
    %c1 = arith.constant 1 : index
    %c0_7 = arith.constant 0 : index
    %c0_8 = arith.constant 0 : index
    %c0_9 = arith.constant 0 : index
    %8 = vector.load %arg1[%c1, %c0_7, %c0_8, %c0_9] : memref<4x9x9x4xf32, #tpu.memory_space<vmem>>, vector<1x8x8x4xf32>
    %9 = vector.shape_cast %8 : vector<1x8x8x4xf32> to vector<8x8x4xf32>
    %10 = vector.shape_cast %9 : vector<8x8x4xf32> to vector<64x4xf32>
    %c1_10 = arith.constant 1 : index
    %c0_11 = arith.constant 0 : index
    %c0_12 = arith.constant 0 : index
    %11 = vector.load %arg2[%c1_10, %c0_11, %c0_12] : memref<9x4x128xf32, #tpu.memory_space<vmem>>, vector<1x4x128xf32>
    %12 = vector.shape_cast %11 : vector<1x4x128xf32> to vector<4x128xf32>
    %cst_13 = arith.constant dense<0.000000e+00> : vector<64x128xf32>
    %13 = tpu.matmul %10, %12, %cst_13 {dimension_numbers = #tpu.dot_dimension_numbers<[1], [0], [0], [1], [0, 0, 1, 1], [], []>} : vector<64x4xf32>, vector<4x128xf32>, vector<64x128xf32> -> vector<64x128xf32>
    %14 = arith.addf %7, %13 : vector<64x128xf32>
    %c0_14 = arith.constant 0 : index
    %c0_15 = arith.constant 0 : index
    %c1_16 = arith.constant 1 : index
    %c0_17 = arith.constant 0 : index
    %15 = vector.load %arg1[%c0_14, %c0_15, %c1_16, %c0_17] : memref<4x9x9x4xf32, #tpu.memory_space<vmem>>, vector<1x8x8x4xf32>
    %16 = vector.shape_cast %15 : vector<1x8x8x4xf32> to vector<8x8x4xf32>
    %17 = vector.shape_cast %16 : vector<8x8x4xf32> to vector<64x4xf32>
    %c2 = arith.constant 2 : index
    %c0_18 = arith.constant 0 : index
    %c0_19 = arith.constant 0 : index
    %18 = vector.load %arg2[%c2, %c0_18, %c0_19] : memref<9x4x128xf32, #tpu.memory_space<vmem>>, vector<1x4x128xf32>
    %19 = vector.shape_cast %18 : vector<1x4x128xf32> to vector<4x128xf32>
    %cst_20 = arith.constant dense<0.000000e+00> : vector<64x128xf32>
    %20 = tpu.matmul %17, %19, %cst_20 {dimension_numbers = #tpu.dot_dimension_numbers<[1], [0], [0], [1], [0, 0, 1, 1], [], []>} : vector<64x4xf32>, vector<4x128xf32>, vector<64x128xf32> -> vector<64x128xf32>
    %21 = arith.addf %14, %20 : vector<64x128xf32>
    %c2_21 = arith.constant 2 : index
    %c0_22 = arith.constant 0 : index
    %c0_23 = arith.constant 0 : index
    %c0_24 = arith.constant 0 : index
    %22 = vector.load %arg1[%c2_21, %c0_22, %c0_23, %c0_24] : memref<4x9x9x4xf32, #tpu.memory_space<vmem>>, vector<1x8x8x4xf32>
    %23 = vector.shape_cast %22 : vector<1x8x8x4xf32> to vector<8x8x4xf32>
    %24 = vector.shape_cast %23 : vector<8x8x4xf32> to vector<64x4xf32>
    %c3 = arith.constant 3 : index
    %c0_25 = arith.constant 0 : index
    %c0_26 = arith.constant 0 : index
    %25 = vector.load %arg2[%c3, %c0_25, %c0_26] : memref<9x4x128xf32, #tpu.memory_space<vmem>>, vector<1x4x128xf32>
    %26 = vector.shape_cast %25 : vector<1x4x128xf32> to vector<4x128xf32>
    %cst_27 = arith.constant dense<0.000000e+00> : vector<64x128xf32>
    %27 = tpu.matmul %24, %26, %cst_27 {dimension_numbers = #tpu.dot_dimension_numbers<[1], [0], [0], [1], [0, 0, 1, 1], [], []>} : vector<64x4xf32>, vector<4x128xf32>, vector<64x128xf32> -> vector<64x128xf32>
    %28 = arith.addf %21, %27 : vector<64x128xf32>
    %c3_28 = arith.constant 3 : index
    %c0_29 = arith.constant 0 : index
    %c0_30 = arith.constant 0 : index
    %c0_31 = arith.constant 0 : index
    %29 = vector.load %arg1[%c3_28, %c0_29, %c0_30, %c0_31] : memref<4x9x9x4xf32, #tpu.memory_space<vmem>>, vector<1x8x8x4xf32>
    %30 = vector.shape_cast %29 : vector<1x8x8x4xf32> to vector<8x8x4xf32>
    %31 = vector.shape_cast %30 : vector<8x8x4xf32> to vector<64x4xf32>
    %c4 = arith.constant 4 : index
    %c0_32 = arith.constant 0 : index
    %c0_33 = arith.constant 0 : index
    %32 = vector.load %arg2[%c4, %c0_32, %c0_33] : memref<9x4x128xf32, #tpu.memory_space<vmem>>, vector<1x4x128xf32>
    %33 = vector.shape_cast %32 : vector<1x4x128xf32> to vector<4x128xf32>
    %cst_34 = arith.constant dense<0.000000e+00> : vector<64x128xf32>
    %34 = tpu.matmul %31, %33, %cst_34 {dimension_numbers = #tpu.dot_dimension_numbers<[1], [0], [0], [1], [0, 0, 1, 1], [], []>} : vector<64x4xf32>, vector<4x128xf32>, vector<64x128xf32> -> vector<64x128xf32>
    %35 = arith.addf %28, %34 : vector<64x128xf32>
    %c2_35 = arith.constant 2 : index
    %c0_36 = arith.constant 0 : index
    %c1_37 = arith.constant 1 : index
    %c0_38 = arith.constant 0 : index
    %36 = vector.load %arg1[%c2_35, %c0_36, %c1_37, %c0_38] : memref<4x9x9x4xf32, #tpu.memory_space<vmem>>, vector<1x8x8x4xf32>
    %37 = vector.shape_cast %36 : vector<1x8x8x4xf32> to vector<8x8x4xf32>
    %38 = vector.shape_cast %37 : vector<8x8x4xf32> to vector<64x4xf32>
    %c5 = arith.constant 5 : index
    %c0_39 = arith.constant 0 : index
    %c0_40 = arith.constant 0 : index
    %39 = vector.load %arg2[%c5, %c0_39, %c0_40] : memref<9x4x128xf32, #tpu.memory_space<vmem>>, vector<1x4x128xf32>
    %40 = vector.shape_cast %39 : vector<1x4x128xf32> to vector<4x128xf32>
    %cst_41 = arith.constant dense<0.000000e+00> : vector<64x128xf32>
    %41 = tpu.matmul %38, %40, %cst_41 {dimension_numbers = #tpu.dot_dimension_numbers<[1], [0], [0], [1], [0, 0, 1, 1], [], []>} : vector<64x4xf32>, vector<4x128xf32>, vector<64x128xf32> -> vector<64x128xf32>
    %42 = arith.addf %35, %41 : vector<64x128xf32>
    %c0_42 = arith.constant 0 : index
    %c1_43 = arith.constant 1 : index
    %c0_44 = arith.constant 0 : index
    %c0_45 = arith.constant 0 : index
    %43 = vector.load %arg1[%c0_42, %c1_43, %c0_44, %c0_45] : memref<4x9x9x4xf32, #tpu.memory_space<vmem>>, vector<1x8x8x4xf32>
    %44 = vector.shape_cast %43 : vector<1x8x8x4xf32> to vector<8x8x4xf32>
    %45 = vector.shape_cast %44 : vector<8x8x4xf32> to vector<64x4xf32>
    %c6 = arith.constant 6 : index
    %c0_46 = arith.constant 0 : index
    %c0_47 = arith.constant 0 : index
    %46 = vector.load %arg2[%c6, %c0_46, %c0_47] : memref<9x4x128xf32, #tpu.memory_space<vmem>>, vector<1x4x128xf32>
    %47 = vector.shape_cast %46 : vector<1x4x128xf32> to vector<4x128xf32>
    %cst_48 = arith.constant dense<0.000000e+00> : vector<64x128xf32>
    %48 = tpu.matmul %45, %47, %cst_48 {dimension_numbers = #tpu.dot_dimension_numbers<[1], [0], [0], [1], [0, 0, 1, 1], [], []>} : vector<64x4xf32>, vector<4x128xf32>, vector<64x128xf32> -> vector<64x128xf32>
    %49 = arith.addf %42, %48 : vector<64x128xf32>
    %c1_49 = arith.constant 1 : index
    %c1_50 = arith.constant 1 : index
    %c0_51 = arith.constant 0 : index
    %c0_52 = arith.constant 0 : index
    %50 = vector.load %arg1[%c1_49, %c1_50, %c0_51, %c0_52] : memref<4x9x9x4xf32, #tpu.memory_space<vmem>>, vector<1x8x8x4xf32>
    %51 = vector.shape_cast %50 : vector<1x8x8x4xf32> to vector<8x8x4xf32>
    %52 = vector.shape_cast %51 : vector<8x8x4xf32> to vector<64x4xf32>
    %c7 = arith.constant 7 : index
    %c0_53 = arith.constant 0 : index
    %c0_54 = arith.constant 0 : index
    %53 = vector.load %arg2[%c7, %c0_53, %c0_54] : memref<9x4x128xf32, #tpu.memory_space<vmem>>, vector<1x4x128xf32>
    %54 = vector.shape_cast %53 : vector<1x4x128xf32> to vector<4x128xf32>
    %cst_55 = arith.constant dense<0.000000e+00> : vector<64x128xf32>
    %55 = tpu.matmul %52, %54, %cst_55 {dimension_numbers = #tpu.dot_dimension_numbers<[1], [0], [0], [1], [0, 0, 1, 1], [], []>} : vector<64x4xf32>, vector<4x128xf32>, vector<64x128xf32> -> vector<64x128xf32>
    %56 = arith.addf %49, %55 : vector<64x128xf32>
    %c0_56 = arith.constant 0 : index
    %c1_57 = arith.constant 1 : index
    %c1_58 = arith.constant 1 : index
    %c0_59 = arith.constant 0 : index
    %57 = vector.load %arg1[%c0_56, %c1_57, %c1_58, %c0_59] : memref<4x9x9x4xf32, #tpu.memory_space<vmem>>, vector<1x8x8x4xf32>
    %58 = vector.shape_cast %57 : vector<1x8x8x4xf32> to vector<8x8x4xf32>
    %59 = vector.shape_cast %58 : vector<8x8x4xf32> to vector<64x4xf32>
    %c8 = arith.constant 8 : index
    %c0_60 = arith.constant 0 : index
    %c0_61 = arith.constant 0 : index
    %60 = vector.load %arg2[%c8, %c0_60, %c0_61] : memref<9x4x128xf32, #tpu.memory_space<vmem>>, vector<1x4x128xf32>
    %61 = vector.shape_cast %60 : vector<1x4x128xf32> to vector<4x128xf32>
    %cst_62 = arith.constant dense<0.000000e+00> : vector<64x128xf32>
    %62 = tpu.matmul %59, %61, %cst_62 {dimension_numbers = #tpu.dot_dimension_numbers<[1], [0], [0], [1], [0, 0, 1, 1], [], []>} : vector<64x4xf32>, vector<4x128xf32>, vector<64x128xf32> -> vector<64x128xf32>
    %63 = arith.addf %56, %62 : vector<64x128xf32>
    %c0_63 = arith.constant 0 : index
    %c0_64 = arith.constant 0 : index
    %64 = vector.load %arg3[%c0_63, %c0_64] : memref<1x128xf32, #tpu.memory_space<vmem>>, vector<1x128xf32>
    %65 = vector.broadcast %64 : vector<1x128xf32> to vector<64x128xf32>
    %66 = arith.addf %63, %65 : vector<64x128xf32>
    %cst_65 = arith.constant 0.000000e+00 : f32
    %67 = vector.broadcast %cst_65 : f32 to vector<64x128xf32>
    %68 = arith.maximumf %66, %67 : vector<64x128xf32>
    %69 = vector.shape_cast %68 : vector<64x128xf32> to vector<8x8x128xf32>
    %cst_66 = arith.constant 0.000000e+00 : f32
    %70 = vector.broadcast %cst_66 : f32 to vector<10x10x128xf32>
    %c0_67 = arith.constant 0 : index
    %c0_68 = arith.constant 0 : index
    %c0_69 = arith.constant 0 : index
    %71 = vector.load %arg8[%c0_67, %c0_68, %c0_69] : memref<10x10x128xf32, #tpu.memory_space<vmem>>, vector<10x10x128xf32>
    tpu.vector_store %arg8[%c0_67, %c0_68, %c0_69], %70 {strides = array<i32>} : memref<10x10x128xf32, #tpu.memory_space<vmem>>, vector<10x10x128xf32>,
    %c1_70 = arith.constant 1 : index
    %c1_71 = arith.constant 1 : index
    %c0_72 = arith.constant 0 : index
    %72 = vector.load %arg8[%c1_70, %c1_71, %c0_72] : memref<10x10x128xf32, #tpu.memory_space<vmem>>, vector<8x8x128xf32>
    tpu.vector_store %arg8[%c1_70, %c1_71, %c0_72], %69 {strides = array<i32>} : memref<10x10x128xf32, #tpu.memory_space<vmem>>, vector<8x8x128xf32>,
    %cst_73 = arith.constant 0.000000e+00 : f32
    %73 = vector.broadcast %cst_73 : f32 to vector<64x128xf32>
    %c0_74 = arith.constant 0 : index
    %c0_75 = arith.constant 0 : index
    %c0_76 = arith.constant 0 : index
    %74 = vector.load %arg8[%c0_74, %c0_75, %c0_76] : memref<10x10x128xf32, #tpu.memory_space<vmem>>, vector<8x8x128xf32>
    %75 = vector.shape_cast %74 : vector<8x8x128xf32> to vector<64x128xf32>
    %76 = arith.truncf %75 : vector<64x128xf32> to vector<64x128xbf16>
    %c0_77 = arith.constant 0 : index
    %c0_78 = arith.constant 0 : index
    %c0_79 = arith.constant 0 : index
    %77 = vector.load %arg4[%c0_77, %c0_78, %c0_79] : memref<9x128x128xbf16, #tpu.memory_space<vmem>>, vector<1x128x128xbf16>
    %78 = vector.shape_cast %77 : vector<1x128x128xbf16> to vector<128x128xbf16>
    %cst_80 = arith.constant dense<0.000000e+00> : vector<64x128xf32>
    %79 = tpu.matmul %76, %78, %cst_80 {dimension_numbers = #tpu.dot_dimension_numbers<[1], [0], [0], [1], [0, 0, 1, 1], [], []>} : vector<64x128xbf16>, vector<128x128xbf16>, vector<64x128xf32> -> vector<64x128xf32>
    %80 = arith.addf %73, %79 : vector<64x128xf32>
    %c0_81 = arith.constant 0 : index
    %c1_82 = arith.constant 1 : index
    %c0_83 = arith.constant 0 : index
    %81 = vector.load %arg8[%c0_81, %c1_82, %c0_83] : memref<10x10x128xf32, #tpu.memory_space<vmem>>, vector<8x8x128xf32>
    %82 = vector.shape_cast %81 : vector<8x8x128xf32> to vector<64x128xf32>
    %83 = arith.truncf %82 : vector<64x128xf32> to vector<64x128xbf16>
    %c1_84 = arith.constant 1 : index
    %c0_85 = arith.constant 0 : index
    %c0_86 = arith.constant 0 : index
    %84 = vector.load %arg4[%c1_84, %c0_85, %c0_86] : memref<9x128x128xbf16, #tpu.memory_space<vmem>>, vector<1x128x128xbf16>
    %85 = vector.shape_cast %84 : vector<1x128x128xbf16> to vector<128x128xbf16>
    %cst_87 = arith.constant dense<0.000000e+00> : vector<64x128xf32>
    %86 = tpu.matmul %83, %85, %cst_87 {dimension_numbers = #tpu.dot_dimension_numbers<[1], [0], [0], [1], [0, 0, 1, 1], [], []>} : vector<64x128xbf16>, vector<128x128xbf16>, vector<64x128xf32> -> vector<64x128xf32>
    %87 = arith.addf %80, %86 : vector<64x128xf32>
    %c0_88 = arith.constant 0 : index
    %c2_89 = arith.constant 2 : index
    %c0_90 = arith.constant 0 : index
    %88 = vector.load %arg8[%c0_88, %c2_89, %c0_90] : memref<10x10x128xf32, #tpu.memory_space<vmem>>, vector<8x8x128xf32>
    %89 = vector.shape_cast %88 : vector<8x8x128xf32> to vector<64x128xf32>
    %90 = arith.truncf %89 : vector<64x128xf32> to vector<64x128xbf16>
    %c2_91 = arith.constant 2 : index
    %c0_92 = arith.constant 0 : index
    %c0_93 = arith.constant 0 : index
    %91 = vector.load %arg4[%c2_91, %c0_92, %c0_93] : memref<9x128x128xbf16, #tpu.memory_space<vmem>>, vector<1x128x128xbf16>
    %92 = vector.shape_cast %91 : vector<1x128x128xbf16> to vector<128x128xbf16>
    %cst_94 = arith.constant dense<0.000000e+00> : vector<64x128xf32>
    %93 = tpu.matmul %90, %92, %cst_94 {dimension_numbers = #tpu.dot_dimension_numbers<[1], [0], [0], [1], [0, 0, 1, 1], [], []>} : vector<64x128xbf16>, vector<128x128xbf16>, vector<64x128xf32> -> vector<64x128xf32>
    %94 = arith.addf %87, %93 : vector<64x128xf32>
    %c1_95 = arith.constant 1 : index
    %c0_96 = arith.constant 0 : index
    %c0_97 = arith.constant 0 : index
    %95 = vector.load %arg8[%c1_95, %c0_96, %c0_97] : memref<10x10x128xf32, #tpu.memory_space<vmem>>, vector<8x8x128xf32>
    %96 = vector.shape_cast %95 : vector<8x8x128xf32> to vector<64x128xf32>
    %97 = arith.truncf %96 : vector<64x128xf32> to vector<64x128xbf16>
    %c3_98 = arith.constant 3 : index
    %c0_99 = arith.constant 0 : index
    %c0_100 = arith.constant 0 : index
    %98 = vector.load %arg4[%c3_98, %c0_99, %c0_100] : memref<9x128x128xbf16, #tpu.memory_space<vmem>>, vector<1x128x128xbf16>
    %99 = vector.shape_cast %98 : vector<1x128x128xbf16> to vector<128x128xbf16>
    %cst_101 = arith.constant dense<0.000000e+00> : vector<64x128xf32>
    %100 = tpu.matmul %97, %99, %cst_101 {dimension_numbers = #tpu.dot_dimension_numbers<[1], [0], [0], [1], [0, 0, 1, 1], [], []>} : vector<64x128xbf16>, vector<128x128xbf16>, vector<64x128xf32> -> vector<64x128xf32>
    %101 = arith.addf %94, %100 : vector<64x128xf32>
    %c1_102 = arith.constant 1 : index
    %c1_103 = arith.constant 1 : index
    %c0_104 = arith.constant 0 : index
    %102 = vector.load %arg8[%c1_102, %c1_103, %c0_104] : memref<10x10x128xf32, #tpu.memory_space<vmem>>, vector<8x8x128xf32>
    %103 = vector.shape_cast %102 : vector<8x8x128xf32> to vector<64x128xf32>
    %104 = arith.truncf %103 : vector<64x128xf32> to vector<64x128xbf16>
    %c4_105 = arith.constant 4 : index
    %c0_106 = arith.constant 0 : index
    %c0_107 = arith.constant 0 : index
    %105 = vector.load %arg4[%c4_105, %c0_106, %c0_107] : memref<9x128x128xbf16, #tpu.memory_space<vmem>>, vector<1x128x128xbf16>
    %106 = vector.shape_cast %105 : vector<1x128x128xbf16> to vector<128x128xbf16>
    %cst_108 = arith.constant dense<0.000000e+00> : vector<64x128xf32>
    %107 = tpu.matmul %104, %106, %cst_108 {dimension_numbers = #tpu.dot_dimension_numbers<[1], [0], [0], [1], [0, 0, 1, 1], [], []>} : vector<64x128xbf16>, vector<128x128xbf16>, vector<64x128xf32> -> vector<64x128xf32>
    %108 = arith.addf %101, %107 : vector<64x128xf32>
    %c1_109 = arith.constant 1 : index
    %c2_110 = arith.constant 2 : index
    %c0_111 = arith.constant 0 : index
    %109 = vector.load %arg8[%c1_109, %c2_110, %c0_111] : memref<10x10x128xf32, #tpu.memory_space<vmem>>, vector<8x8x128xf32>
    %110 = vector.shape_cast %109 : vector<8x8x128xf32> to vector<64x128xf32>
    %111 = arith.truncf %110 : vector<64x128xf32> to vector<64x128xbf16>
    %c5_112 = arith.constant 5 : index
    %c0_113 = arith.constant 0 : index
    %c0_114 = arith.constant 0 : index
    %112 = vector.load %arg4[%c5_112, %c0_113, %c0_114] : memref<9x128x128xbf16, #tpu.memory_space<vmem>>, vector<1x128x128xbf16>
    %113 = vector.shape_cast %112 : vector<1x128x128xbf16> to vector<128x128xbf16>
    %cst_115 = arith.constant dense<0.000000e+00> : vector<64x128xf32>
    %114 = tpu.matmul %111, %113, %cst_115 {dimension_numbers = #tpu.dot_dimension_numbers<[1], [0], [0], [1], [0, 0, 1, 1], [], []>} : vector<64x128xbf16>, vector<128x128xbf16>, vector<64x128xf32> -> vector<64x128xf32>
    %115 = arith.addf %108, %114 : vector<64x128xf32>
    %c2_116 = arith.constant 2 : index
    %c0_117 = arith.constant 0 : index
    %c0_118 = arith.constant 0 : index
    %116 = vector.load %arg8[%c2_116, %c0_117, %c0_118] : memref<10x10x128xf32, #tpu.memory_space<vmem>>, vector<8x8x128xf32>
    %117 = vector.shape_cast %116 : vector<8x8x128xf32> to vector<64x128xf32>
    %118 = arith.truncf %117 : vector<64x128xf32> to vector<64x128xbf16>
    %c6_119 = arith.constant 6 : index
    %c0_120 = arith.constant 0 : index
    %c0_121 = arith.constant 0 : index
    %119 = vector.load %arg4[%c6_119, %c0_120, %c0_121] : memref<9x128x128xbf16, #tpu.memory_space<vmem>>, vector<1x128x128xbf16>
    %120 = vector.shape_cast %119 : vector<1x128x128xbf16> to vector<128x128xbf16>
    %cst_122 = arith.constant dense<0.000000e+00> : vector<64x128xf32>
    %121 = tpu.matmul %118, %120, %cst_122 {dimension_numbers = #tpu.dot_dimension_numbers<[1], [0], [0], [1], [0, 0, 1, 1], [], []>} : vector<64x128xbf16>, vector<128x128xbf16>, vector<64x128xf32> -> vector<64x128xf32>
    %122 = arith.addf %115, %121 : vector<64x128xf32>
    %c2_123 = arith.constant 2 : index
    %c1_124 = arith.constant 1 : index
    %c0_125 = arith.constant 0 : index
    %123 = vector.load %arg8[%c2_123, %c1_124, %c0_125] : memref<10x10x128xf32, #tpu.memory_space<vmem>>, vector<8x8x128xf32>
    %124 = vector.shape_cast %123 : vector<8x8x128xf32> to vector<64x128xf32>
    %125 = arith.truncf %124 : vector<64x128xf32> to vector<64x128xbf16>
    %c7_126 = arith.constant 7 : index
    %c0_127 = arith.constant 0 : index
    %c0_128 = arith.constant 0 : index
    %126 = vector.load %arg4[%c7_126, %c0_127, %c0_128] : memref<9x128x128xbf16, #tpu.memory_space<vmem>>, vector<1x128x128xbf16>
    %127 = vector.shape_cast %126 : vector<1x128x128xbf16> to vector<128x128xbf16>
    %cst_129 = arith.constant dense<0.000000e+00> : vector<64x128xf32>
    %128 = tpu.matmul %125, %127, %cst_129 {dimension_numbers = #tpu.dot_dimension_numbers<[1], [0], [0], [1], [0, 0, 1, 1], [], []>} : vector<64x128xbf16>, vector<128x128xbf16>, vector<64x128xf32> -> vector<64x128xf32>
    %129 = arith.addf %122, %128 : vector<64x128xf32>
    %c2_130 = arith.constant 2 : index
    %c2_131 = arith.constant 2 : index
    %c0_132 = arith.constant 0 : index
    %130 = vector.load %arg8[%c2_130, %c2_131, %c0_132] : memref<10x10x128xf32, #tpu.memory_space<vmem>>, vector<8x8x128xf32>
    %131 = vector.shape_cast %130 : vector<8x8x128xf32> to vector<64x128xf32>
    %132 = arith.truncf %131 : vector<64x128xf32> to vector<64x128xbf16>
    %c8_133 = arith.constant 8 : index
    %c0_134 = arith.constant 0 : index
    %c0_135 = arith.constant 0 : index
    %133 = vector.load %arg4[%c8_133, %c0_134, %c0_135] : memref<9x128x128xbf16, #tpu.memory_space<vmem>>, vector<1x128x128xbf16>
    %134 = vector.shape_cast %133 : vector<1x128x128xbf16> to vector<128x128xbf16>
    %cst_136 = arith.constant dense<0.000000e+00> : vector<64x128xf32>
    %135 = tpu.matmul %132, %134, %cst_136 {dimension_numbers = #tpu.dot_dimension_numbers<[1], [0], [0], [1], [0, 0, 1, 1], [], []>} : vector<64x128xbf16>, vector<128x128xbf16>, vector<64x128xf32> -> vector<64x128xf32>
    %136 = arith.addf %129, %135 : vector<64x128xf32>
    %c3_137 = arith.constant 3 : index
    %c0_138 = arith.constant 0 : index
    %c0_139 = arith.constant 0 : index
    %c0_140 = arith.constant 0 : index
    %137 = vector.load %arg1[%c3_137, %c0_138, %c0_139, %c0_140] : memref<4x9x9x4xf32, #tpu.memory_space<vmem>>, vector<1x8x8x4xf32>
    %138 = vector.shape_cast %137 : vector<1x8x8x4xf32> to vector<8x8x4xf32>
    %139 = vector.shape_cast %138 : vector<8x8x4xf32> to vector<64x4xf32>
    %c0_141 = arith.constant 0 : index
    %c0_142 = arith.constant 0 : index
    %140 = vector.load %arg5[%c0_141, %c0_142] : memref<4x128xf32, #tpu.memory_space<vmem>>, vector<4x128xf32>
    %cst_143 = arith.constant dense<0.000000e+00> : vector<64x128xf32>
    %141 = tpu.matmul %139, %140, %cst_143 {dimension_numbers = #tpu.dot_dimension_numbers<[1], [0], [0], [1], [0, 0, 1, 1], [], []>} : vector<64x4xf32>, vector<4x128xf32>, vector<64x128xf32> -> vector<64x128xf32>
    %142 = arith.addf %136, %141 : vector<64x128xf32>
    %c0_144 = arith.constant 0 : index
    %c0_145 = arith.constant 0 : index
    %143 = vector.load %arg6[%c0_144, %c0_145] : memref<1x128xf32, #tpu.memory_space<vmem>>, vector<1x128xf32>
    %144 = vector.broadcast %143 : vector<1x128xf32> to vector<64x128xf32>
    %145 = arith.addf %142, %144 : vector<64x128xf32>
    %cst_146 = arith.constant 0.000000e+00 : f32
    %146 = vector.broadcast %cst_146 : f32 to vector<64x128xf32>
    %147 = arith.maximumf %145, %146 : vector<64x128xf32>
    %c0_147 = arith.constant 0 : index
    %c0_148 = arith.constant 0 : index
    %c0_149 = arith.constant 0 : index
    %148 = vector.load %arg7[%c0_147, %c0_148, %c0_149] : memref<1x64x128xf32, #tpu.memory_space<vmem>>, vector<1x64x128xf32>
    %149 = vector.shape_cast %148 : vector<1x64x128xf32> to vector<64x128xf32>
    %150 = vector.shape_cast %147 : vector<64x128xf32> to vector<1x64x128xf32>
    tpu.vector_store %arg7[%c0_147, %c0_148, %c0_149], %150 {strides = array<i32>} : memref<1x64x128xf32, #tpu.memory_space<vmem>>, vector<1x64x128xf32>,
    return
  }
  func.func @transform_0(%arg0: i32) -> (i32, i32, i32, i32) {
    %c0_i32 = arith.constant 0 : i32
    %c0_i32_0 = arith.constant 0 : i32
    %c0_i32_1 = arith.constant 0 : i32
    %c0_i32_2 = arith.constant 0 : i32
    return %arg0, %c0_i32, %c0_i32_0, %c0_i32_1 : i32, i32, i32, i32
  }
  func.func @transform_1(%arg0: i32) -> (i32, i32, i32) {
    %c0_i32 = arith.constant 0 : i32
    %c0_i32_0 = arith.constant 0 : i32
    %c0_i32_1 = arith.constant 0 : i32
    %c0_i32_2 = arith.constant 0 : i32
    return %c0_i32, %c0_i32_0, %c0_i32_1 : i32, i32, i32
  }
  func.func @transform_2(%arg0: i32) -> (i32, i32) {
    %c0_i32 = arith.constant 0 : i32
    %c0_i32_0 = arith.constant 0 : i32
    %c0_i32_1 = arith.constant 0 : i32
    return %c0_i32, %c0_i32_0 : i32, i32
  }
  func.func @transform_3(%arg0: i32) -> (i32, i32, i32) {
    %c0_i32 = arith.constant 0 : i32
    %c0_i32_0 = arith.constant 0 : i32
    %c0_i32_1 = arith.constant 0 : i32
    %c0_i32_2 = arith.constant 0 : i32
    return %c0_i32, %c0_i32_0, %c0_i32_1 : i32, i32, i32
  }
  func.func @transform_4(%arg0: i32) -> (i32, i32) {
    %c0_i32 = arith.constant 0 : i32
    %c0_i32_0 = arith.constant 0 : i32
    %c0_i32_1 = arith.constant 0 : i32
    return %c0_i32, %c0_i32_0 : i32, i32
  }
  func.func @transform_5(%arg0: i32) -> (i32, i32) {
    %c0_i32 = arith.constant 0 : i32
    %c0_i32_0 = arith.constant 0 : i32
    %c0_i32_1 = arith.constant 0 : i32
    return %c0_i32, %c0_i32_0 : i32, i32
  }
  func.func @transform_6(%arg0: i32) -> (i32, i32, i32) {
    %c0_i32 = arith.constant 0 : i32
    %c0_i32_0 = arith.constant 0 : i32
    %c0_i32_1 = arith.constant 0 : i32
    return %arg0, %c0_i32, %c0_i32_0 : i32, i32, i32
  }
}

</mosaic_0001>

<llo_original>
// kernel: resnet_basic_block.1
$region0: #{resnet_basic_block.1}
  #allocation0 [shape = 'u32[]', space=smem, size = 0x4, offset = 0x4, fixed_abs, tag = 'smem constant byte address 0x4 - core index']
  #allocation1 [shape = 'u32[144,128]{1,0:T(1,128)}', space=vmem, size = 0x12000, scoped, tag = 'internal scratch']
  #allocation2 [shape = 'f32[10,10,128]{2,1,0:T(8,128)}', space=vmem, size = 0x14000, scoped, tag = 'scratch operand']
  %s0 = inlined_call_operand.vmem [shape: f32[8,9,9,4], index: 0, kind: input, shape index: {}]
  %s1 = inlined_call_operand.vmem [shape: f32[9,4,128], index: 1, kind: input, shape index: {}]
  %s2 = inlined_call_operand.vmem [shape: f32[1,128], index: 2, kind: input, shape index: {}]
  %s3 = inlined_call_operand.vmem [shape: bf16[9,128,128], index: 3, kind: input, shape index: {}]
  %s4 = inlined_call_operand.vmem [shape: f32[4,128], index: 4, kind: input, shape index: {}]
  %s5 = inlined_call_operand.vmem [shape: f32[1,128], index: 5, kind: input, shape index: {}]
  %s6 = inlined_call_operand.vmem [shape: f32[2,64,128], index: 6, kind: output, shape index: {}]
  %s7 = sld [smem:[#allocation0]]
  $region57: #{resnet_basic_block.1} parent=0
    _
  %s9 = ssub.s32 1, %s7
  %s10 = scalar_select 0, %s9, %s7
  loop: start=0, step=1, limit=4
  $region2: #{resnet_basic_block.1} parent=0 // loop_pre_header
    _
  $region3: #{resnet_basic_block.1} parent=0 // loop_header
    %s12 = sphi 0, %s16
    %p13 = scmp.ge.s32.totalorder %s12, 4
    %s22 = sphi 0, %s24
    %s25 = sphi 0, %s22
    %s26 = sphi 0, %s25
    %s42 = sphi 0, %s26
    %s46 = sphi 0, %s46
    %s48 = sphi 0, %s46
    %s49 = sphi 0, %s48
    %s63 = sphi 0, %s49
    %s67 = sphi 0, %s67
    %s69 = sphi 0, %s67
    %s70 = sphi 0, %s69
    %s84 = sphi 0, %s70
    %s88 = sphi 0, %s88
    %s90 = sphi 0, %s88
    %s91 = sphi 0, %s90
    %s105 = sphi 0, %s91
    %s109 = sphi 0, %s109
    %s111 = sphi 0, %s109
    %s112 = sphi 0, %s111
    %s126 = sphi 0, %s112
    %s130 = sphi 0, %s130
    %s132 = sphi 0, %s130
    %s133 = sphi 0, %s132
    %s147 = sphi 0, %s133
    %s153 = sphi 0, %s155
    %s156 = sphi 0, %s153
    %s157 = sphi 0, %s156
    %s173 = sphi 0, %s157
  $region4: #{resnet_basic_block.1} parent=0 // loop_header_branch
    %15 = sbr.rel (%p13) target = $region8
  $region5: #{resnet_basic_block.1} parent=0 // loop_body
    %s17 = ssub.s32 %s12, 1
    %s18 = ssub.s32 %s12, 2
    %s19 = sadd.s32 %s12, 1
    %s20 = ssub.s32 %s12, %s19
    %p21 = scmp.eq.s32.totalorder %s20, 0
    %s23 = sadd.s32 %s22, 1
    %s24 = scalar_select %p21, %s22, %s23
    %p27 = pneg %p21
    %p28 = scmp.eq.s32.totalorder %s12, 1
    %p29 = por %p27, %p28
    %p30 = scmp.ne.s32.totalorder %s22, %s25
    %p31 = scmp.eq.s32.totalorder %s12, 0
    %p32 = por %p30, %p31
    %p33 = scmp.ne.s32.totalorder %s22, %s25
    %p34 = scmp.eq.s32.totalorder %s17, 1
    %p35 = por %p33, %p34
    %p36 = scmp.ne.s32.totalorder %s25, %s26
    %p37 = scmp.eq.s32.totalorder %s17, 0
    %p38 = por %p36, %p37
    %p39 = scmp.ne.s32.totalorder %s25, %s26
    %p40 = scmp.eq.s32.totalorder %s18, 1
    %p41 = por %p39, %p40
    %p43 = scmp.ne.s32.totalorder %s26, %s42
    %p44 = scmp.eq.s32.totalorder %s18, 0
    %p45 = por %p43, %p44
    %s47 = sadd.s32 %s46, 1
    %p50 = scmp.eq.s32.totalorder %s12, 1
    %p51 = scmp.ne.s32.totalorder %s46, %s48
    %p52 = scmp.eq.s32.totalorder %s12, 0
    %p53 = por %p51, %p52
    %p54 = scmp.ne.s32.totalorder %s46, %s48
    %p55 = scmp.eq.s32.totalorder %s17, 1
    %p56 = por %p54, %p55
    %p57 = scmp.ne.s32.totalorder %s48, %s49
    %p58 = scmp.eq.s32.totalorder %s17, 0
    %p59 = por %p57, %p58
    %p60 = scmp.ne.s32.totalorder %s48, %s49
    %p61 = scmp.eq.s32.totalorder %s18, 1
    %p62 = por %p60, %p61
    %p64 = scmp.ne.s32.totalorder %s49, %s63
    %p65 = scmp.eq.s32.totalorder %s18, 0
    %p66 = por %p64, %p65
    %s68 = sadd.s32 %s67, 1
    %p71 = scmp.eq.s32.totalorder %s12, 1
    %p72 = scmp.ne.s32.totalorder %s67, %s69
    %p73 = scmp.eq.s32.totalorder %s12, 0
    %p74 = por %p72, %p73
    %p75 = scmp.ne.s32.totalorder %s67, %s69
    %p76 = scmp.eq.s32.totalorder %s17, 1
    %p77 = por %p75, %p76
    %p78 = scmp.ne.s32.totalorder %s69, %s70
    %p79 = scmp.eq.s32.totalorder %s17, 0
    %p80 = por %p78, %p79
    %p81 = scmp.ne.s32.totalorder %s69, %s70
    %p82 = scmp.eq.s32.totalorder %s18, 1
    %p83 = por %p81, %p82
    %p85 = scmp.ne.s32.totalorder %s70, %s84
    %p86 = scmp.eq.s32.totalorder %s18, 0
    %p87 = por %p85, %p86
    %s89 = sadd.s32 %s88, 1
    %p92 = scmp.eq.s32.totalorder %s12, 1
    %p93 = scmp.ne.s32.totalorder %s88, %s90
    %p94 = scmp.eq.s32.totalorder %s12, 0
    %p95 = por %p93, %p94
    %p96 = scmp.ne.s32.totalorder %s88, %s90
    %p97 = scmp.eq.s32.totalorder %s17, 1
    %p98 = por %p96, %p97
    %p99 = scmp.ne.s32.totalorder %s90, %s91
    %p100 = scmp.eq.s32.totalorder %s17, 0
    %p101 = por %p99, %p100
    %p102 = scmp.ne.s32.totalorder %s90, %s91
    %p103 = scmp.eq.s32.totalorder %s18, 1
    %p104 = por %p102, %p103
    %p106 = scmp.ne.s32.totalorder %s91, %s105
    %p107 = scmp.eq.s32.totalorder %s18, 0
    %p108 = por %p106, %p107
    %s110 = sadd.s32 %s109, 1
    %p113 = scmp.eq.s32.totalorder %s12, 1
    %p114 = scmp.ne.s32.totalorder %s109, %s111
    %p115 = scmp.eq.s32.totalorder %s12, 0
    %p116 = por %p114, %p115
    %p117 = scmp.ne.s32.totalorder %s109, %s111
    %p118 = scmp.eq.s32.totalorder %s17, 1
    %p119 = por %p117, %p118
    %p120 = scmp.ne.s32.totalorder %s111, %s112
    %p121 = scmp.eq.s32.totalorder %s17, 0
    %p122 = por %p120, %p121
    %p123 = scmp.ne.s32.totalorder %s111, %s112
    %p124 = scmp.eq.s32.totalorder %s18, 1
    %p125 = por %p123, %p124
    %p127 = scmp.ne.s32.totalorder %s112, %s126
    %p128 = scmp.eq.s32.totalorder %s18, 0
    %p129 = por %p127, %p128
    %s131 = sadd.s32 %s130, 1
    %p134 = scmp.eq.s32.totalorder %s12, 1
    %p135 = scmp.ne.s32.totalorder %s130, %s132
    %p136 = scmp.eq.s32.totalorder %s12, 0
    %p137 = por %p135, %p136
    %p138 = scmp.ne.s32.totalorder %s130, %s132
    %p139 = scmp.eq.s32.totalorder %s17, 1
    %p140 = por %p138, %p139
    %p141 = scmp.ne.s32.totalorder %s132, %s133
    %p142 = scmp.eq.s32.totalorder %s17, 0
    %p143 = por %p141, %p142
    %p144 = scmp.ne.s32.totalorder %s132, %s133
    %p145 = scmp.eq.s32.totalorder %s18, 1
    %p146 = por %p144, %p145
    %p148 = scmp.ne.s32.totalorder %s133, %s147
    %p149 = scmp.eq.s32.totalorder %s18, 0
    %p150 = por %p148, %p149
    %s151 = ssub.s32 %s12, %s19
    %p152 = scmp.eq.s32.totalorder %s151, 0
    %s154 = sadd.s32 %s153, 1
    %s155 = scalar_select %p152, %s153, %s154
    %p158 = pneg %p152
    %p159 = scmp.eq.s32.totalorder %s12, 1
    %p160 = por %p158, %p159
    %p161 = scmp.ne.s32.totalorder %s153, %s156
    %p162 = scmp.eq.s32.totalorder %s12, 0
    %p163 = por %p161, %p162
    %p164 = scmp.ne.s32.totalorder %s153, %s156
    %p165 = scmp.eq.s32.totalorder %s17, 1
    %p166 = por %p164, %p165
    %p167 = scmp.ne.s32.totalorder %s156, %s157
    %p168 = scmp.eq.s32.totalorder %s17, 0
    %p169 = por %p167, %p168
    %p170 = scmp.ne.s32.totalorder %s156, %s157
    %p171 = scmp.eq.s32.totalorder %s18, 1
    %p172 = por %p170, %p171
    %p174 = scmp.ne.s32.totalorder %s157, %s173
    %p175 = scmp.eq.s32.totalorder %s18, 0
    %p176 = por %p174, %p175
    %p177 = scmp.le.s32.totalorder 1, %s12
    %p178 = scmp.lt.s32.totalorder %s12, 3
    %p179 = pnand %p177, %p178
    %p180 = pneg %p179
    // Predicated region
    $region9: #{resnet_basic_block.1} parent=5 // pred_check
      _
    $region10: #{resnet_basic_block.1} parent=5 // pred_check_branch
      %182 = sbr.rel (%p179) target = $region12
    $region11: #{resnet_basic_block.1} parent=5 // pred_region
      %s183 = ssub.s32 %s12, 1
      // Predicated region
      $region13: #{resnet_basic_block.1} parent=11 // pred_check
        %p184 = pneg %p59
      $region14: #{resnet_basic_block.1} parent=11 // pred_check_branch
        %186 = sbr.rel (%p184) target = $region16
      $region15: #{resnet_basic_block.1} parent=11 // pred_region
        _
      $region16: #{resnet_basic_block.1} parent=11 // pred_fallthru
        _
      // Predicated region
      $region17: #{resnet_basic_block.1} parent=11 // pred_check
        %p187 = pneg %p80
      $region18: #{resnet_basic_block.1} parent=11 // pred_check_branch
        %189 = sbr.rel (%p187) target = $region20
      $region19: #{resnet_basic_block.1} parent=11 // pred_region
        _
      $region20: #{resnet_basic_block.1} parent=11 // pred_fallthru
        _
      // Predicated region
      $region21: #{resnet_basic_block.1} parent=11 // pred_check
        %p190 = pneg %p101
      $region22: #{resnet_basic_block.1} parent=11 // pred_check_branch
        %192 = sbr.rel (%p190) target = $region24
      $region23: #{resnet_basic_block.1} parent=11 // pred_region
        _
      $region24: #{resnet_basic_block.1} parent=11 // pred_fallthru
        _
      // Predicated region
      $region25: #{resnet_basic_block.1} parent=11 // pred_check
        %p193 = pneg %p122
      $region26: #{resnet_basic_block.1} parent=11 // pred_check_branch
        %195 = sbr.rel (%p193) target = $region28
      $region27: #{resnet_basic_block.1} parent=11 // pred_region
        _
      $region28: #{resnet_basic_block.1} parent=11 // pred_fallthru
        _
      // Predicated region
      $region29: #{resnet_basic_block.1} parent=11 // pred_check
        %p196 = pneg %p143
      $region30: #{resnet_basic_block.1} parent=11 // pred_check_branch
        %198 = sbr.rel (%p196) target = $region32
      $region31: #{resnet_basic_block.1} parent=11 // pred_region
        _
      $region32: #{resnet_basic_block.1} parent=11 // pred_fallthru
        _
    $region12: #{resnet_basic_block.1} parent=5 // pred_fallthru
      _
    %p199 = scmp.lt.s32.totalorder %s12, 2
    // Predicated region
    $region33: #{resnet_basic_block.1} parent=5 // pred_check
      %p200 = pneg %p199
    $region34: #{resnet_basic_block.1} parent=5 // pred_check_branch
      %202 = sbr.rel (%p200) target = $region36
    $region35: #{resnet_basic_block.1} parent=5 // pred_region
      // Predicated region
      $region37: #{resnet_basic_block.1} parent=35 // pred_check
        %p203 = pneg %p32
      $region38: #{resnet_basic_block.1} parent=35 // pred_check_branch
        %205 = sbr.rel (%p203) target = $region40
      $region39: #{resnet_basic_block.1} parent=35 // pred_region
        %s206 = smul.u32 4, %s12
        %p207 = scmp.lt.s32.totalorder %s206, 7
        %s208 = scalar_select %p207, %s206, 7
        %s209 = smul.addr %s208, 18
        %s210 = smul.addr %s209, 8
        %s211 = scalar_lea.vmem %s0, %s210
        %s212 = smul.u32 4, %s12
      $region40: #{resnet_basic_block.1} parent=35 // pred_fallthru
        _
    $region36: #{resnet_basic_block.1} parent=5 // pred_fallthru
      _
    %p213 = scmp.le.s32.totalorder 1, %s12
    %p214 = scmp.lt.s32.totalorder %s12, 3
    %p215 = pnand %p213, %p214
    %p216 = pneg %p215
    // Predicated region
    $region41: #{resnet_basic_block.1} parent=5 // pred_check
      _
    $region42: #{resnet_basic_block.1} parent=5 // pred_check_branch
      %218 = sbr.rel (%p215) target = $region44
    $region43: #{resnet_basic_block.1} parent=5 // pred_region
      %s219 = ssub.s32 %s12, 1
      %s220 = smul.u32 4, %s17
      %p221 = scmp.lt.s32.totalorder %s220, 7
      %s222 = scalar_select %p221, %s220, 7
      %s223 = smul.addr %s222, 18
      %s224 = smul.addr %s223, 8
      %s225 = scalar_lea.vmem %s0, %s224
      %p226 = pneg %p38
      %p227 = pneg %p35
      %p228 = pneg %p59
      %p229 = pneg %p56
      %p230 = pneg %p80
      %p231 = pneg %p77
      %p232 = pneg %p101
      %p233 = pneg %p98
      %p234 = pneg %p122
      %p235 = pneg %p119
      %p236 = pneg %p143
      %p237 = pneg %p140
      %p238 = pneg %p169
      %p239 = pneg %p166
      %p240 = scmp.lt.s32.totalorder %s17, 1
      %s241 = scalar_select %p240, %s17, 1
      %s242 = smul.addr %s241, 8
      %s243 = smul.addr %s242, 8
      %s244 = scalar_lea.vmem %s6, %s243
      %s245 = smul.u32 4, %s17
      %p246 = scmp.lt.s32.totalorder %s245, 7
      %s247 = scalar_select %p246, %s245, 7
      %s248 = smul.addr %s247, 18
      %s249 = smul.addr %s248, 8
      %s250 = scalar_lea.vmem %s0, %s249
      %s251 = smul.u32 4, %s17
      %p252 = scmp.lt.s32.totalorder %s17, 1
      %s253 = scalar_select %p252, %s17, 1
      %s254 = smul.addr %s253, 8
      %s255 = smul.addr %s254, 8
      %s256 = scalar_lea.vmem %s6, %s255
      %v258 = vld [vmem:[%s250] sm:$0xff]
      %v259 = vld [vmem:[%s250 + $0x10] sm:$0xff]
      %v260 = vld [vmem:[%s250 + $0x20] sm:$0xff]
      %v261 = vld [vmem:[%s250 + $0x30] sm:$0xff]
      %v262 = vld [vmem:[%s250 + $0x40] sm:$0xff]
      %v263 = vld [vmem:[%s250 + $0x50] sm:$0xff]
      %v264 = vld [vmem:[%s250 + $0x60] sm:$0xff]
      %v265 = vld [vmem:[%s250 + $0x70] sm:$0xff]
      %v266 = vld [vmem:[%s1] sm:$0xf]
      %s267 = scalar_lea.vmem %s250, 144
      %v268 = vld [vmem:[%s267] sm:$0xff]
      %v269 = vld [vmem:[%s267 + $0x10] sm:$0xff]
      %v270 = vld [vmem:[%s267 + $0x20] sm:$0xff]
      %v271 = vld [vmem:[%s267 + $0x30] sm:$0xff]
      %v272 = vld [vmem:[%s267 + $0x40] sm:$0xff]
      %v273 = vld [vmem:[%s267 + $0x50] sm:$0xff]
      %v274 = vld [vmem:[%s267 + $0x60] sm:$0xff]
      %v275 = vld [vmem:[%s267 + $0x70] sm:$0xff]
      %s276 = scalar_lea.vmem %s1, 4
      %v277 = vld [vmem:[%s276] sm:$0xf]
      %vm278 = vcmask 31744
      %v280 = vsel %vm278, %v268, 0
      %v283 = vsel %vm278, %v269, 0
      %v286 = vsel %vm278, %v270, 0
      %v289 = vsel %vm278, %v271, 0
      %v292 = vsel %vm278, %v272, 0
      %v295 = vsel %vm278, %v273, 0
      %v298 = vsel %vm278, %v274, 0
      %v301 = vsel %vm278, %v275, 0
      %vm303 = vcmask 1043456
      %v305 = vsel %vm303, %v277, 0
      %307 = vmatprep.subr.mxu0 0.0
      %308 = vmatpush1.msra.mxu0 %v305
      %309 = vmatprep.subr.mxu0 0.0
      %310 = vmatpush1.msra.mxu0 0.0
      %311 = vmatprep.subr.mxu0 0.0
      %312 = vmatpush1.msra.mxu0 0.0
      %313 = vmatprep.subr.mxu0 0.0
      %314 = vmatpush1.msra.mxu0 0.0
      %315 = vmatprep.subr.mxu0 0.0
      %316 = vmatpush1.msra.mxu0 0.0
      %317 = vmatprep.subr.mxu0 0.0
      %318 = vmatpush1.msra.mxu0 0.0
      %319 = vmatprep.subr.mxu0 0.0
      %320 = vmatpush1.msra.mxu0 0.0
      %321 = vmatprep.subr.mxu0 0.0
      %322 = vmatpush1.msra.mxu0 0.0
      %323 = vmatprep.subr.mxu0 0.0
      %324 = vmatpush1.msra.mxu0 0.0
      %325 = vmatprep.subr.mxu0 0.0
      %326 = vmatpush1.msra.mxu0 0.0
      %327 = vmatprep.subr.mxu0 0.0
      %328 = vmatpush1.msra.mxu0 0.0
      %329 = vmatprep.subr.mxu0 0.0
      %330 = vmatpush1.msra.mxu0 0.0
      %331 = vmatprep.subr.mxu0 0.0
      %332 = vmatpush1.msra.mxu0 0.0
      %333 = vmatprep.subr.mxu0 0.0
      %334 = vmatpush1.msra.mxu0 0.0
      %335 = vmatprep.subr.mxu0 0.0
      %336 = vmatpush1.msra.mxu0 0.0
      %337 = vmatprep.subr.mxu0 0.0
      %338 = vmatpush1.msra.mxu0 0.0
      %339 = vmatprep.subr.mxu0 0.0
      %340 = vmatpush1.msra.mxu0 0.0
      %341 = vmatprep.subr.mxu0 0.0
      %342 = vmatpush1.msra.mxu0 0.0
      %343 = vmatprep.subr.mxu0 0.0
      %344 = vmatpush1.msra.mxu0 0.0
      %345 = vmatprep.subr.mxu0 0.0
      %346 = vmatpush1.msra.mxu0 0.0
      %347 = vmatprep.subr.mxu0 0.0
      %348 = vmatpush1.msra.mxu0 0.0
      %349 = vmatprep.subr.mxu0 0.0
      %350 = vmatpush1.msra.mxu0 0.0
      %351 = vmatprep.subr.mxu0 0.0
      %352 = vmatpush1.msra.mxu0 0.0
      %353 = vmatprep.subr.mxu0 0.0
      %354 = vmatpush1.msra.mxu0 0.0
      %355 = vmatprep.subr.mxu0 0.0
      %356 = vmatpush1.msra.mxu0 0.0
      %357 = vmatprep.subr.mxu0 0.0
      %358 = vmatpush1.msra.mxu0 0.0
      %359 = vmatprep.subr.mxu0 0.0
      %360 = vmatpush1.msra.mxu0 0.0
      %361 = vmatprep.subr.mxu0 0.0
      %362 = vmatpush1.msra.mxu0 0.0
      %363 = vmatprep.subr.mxu0 0.0
      %364 = vmatpush1.msra.mxu0 0.0
      %365 = vmatprep.subr.mxu0 0.0
      %366 = vmatpush1.msra.mxu0 0.0
      %367 = vmatprep.subr.mxu0 0.0
      %368 = vmatpush1.msra.mxu0 0.0
      %369 = vmatprep.subr.mxu0 0.0
      %370 = vmatpush1.msra.mxu0 0.0
      %371 = vmatprep.mubr.f32.mxu0 0.0
      %372 = vmatmul.mubr.f32.gmra.mrb[0].mxu0 %v280
      %v373 = vpop.f32.mrb[0].mxu0
      %v374 = vadd.f32 0.0, %v373
      %v375 = vpop.f32.mrb[0].mxu0
      %376 = vmatprep.mubr.f32.mxu0 0.0
      %377 = vmatmul.mubr.f32.gmra.mrb[0].mxu0 %v283
      %v378 = vpop.f32.mrb[0].mxu0
      %v379 = vadd.f32 0.0, %v378
      %v380 = vpop.f32.mrb[0].mxu0
      %381 = vmatprep.mubr.f32.mxu0 0.0
      %382 = vmatmul.mubr.f32.gmra.mrb[0].mxu0 %v286
      %v383 = vpop.f32.mrb[0].mxu0
      %v384 = vadd.f32 0.0, %v383
      %v385 = vpop.f32.mrb[0].mxu0
      %386 = vmatprep.mubr.f32.mxu0 0.0
      %387 = vmatmul.mubr.f32.gmra.mrb[0].mxu0 %v289
      %v388 = vpop.f32.mrb[0].mxu0
      %v389 = vadd.f32 0.0, %v388
      %v390 = vpop.f32.mrb[0].mxu0
      %391 = vmatprep.mubr.f32.mxu0 0.0
      %392 = vmatmul.mubr.f32.gmra.mrb[0].mxu0 %v292
      %v393 = vpop.f32.mrb[0].mxu0
      %v394 = vadd.f32 0.0, %v393
      %v395 = vpop.f32.mrb[0].mxu0
      %396 = vmatprep.mubr.f32.mxu0 0.0
      %397 = vmatmul.mubr.f32.gmra.mrb[0].mxu0 %v295
      %v398 = vpop.f32.mrb[0].mxu0
      %v399 = vadd.f32 0.0, %v398
      %v400 = vpop.f32.mrb[0].mxu0
      %401 = vmatprep.mubr.f32.mxu0 0.0
      %402 = vmatmul.mubr.f32.gmra.mrb[0].mxu0 %v298
      %v403 = vpop.f32.mrb[0].mxu0
      %v404 = vadd.f32 0.0, %v403
      %v405 = vpop.f32.mrb[0].mxu0
      %406 = vmatprep.mubr.f32.mxu0 0.0
      %407 = vmatmul.mubr.f32.gmra.mrb[0].mxu0 %v301
      %v408 = vpop.f32.mrb[0].mxu0
      %v409 = vadd.f32 0.0, %v408
      %v410 = vpop.f32.mrb[0].mxu0
      %411 = vdwg.mxu0
      %v413 = vsel %vm278, %v258, 0
      %v416 = vsel %vm278, %v259, 0
      %v419 = vsel %vm278, %v260, 0
      %v422 = vsel %vm278, %v261, 0
      %v425 = vsel %vm278, %v262, 0
      %v428 = vsel %vm278, %v263, 0
      %v431 = vsel %vm278, %v264, 0
      %v434 = vsel %vm278, %v265, 0
      %v437 = vsel %vm303, %v266, 0
      %439 = vmatprep.subr.mxu0 0.0
      %440 = vmatpush1.msra.mxu0 %v437
      %441 = vmatprep.subr.mxu0 0.0
      %442 = vmatpush1.msra.mxu0 0.0
      %443 = vmatprep.subr.mxu0 0.0
      %444 = vmatpush1.msra.mxu0 0.0
      %445 = vmatprep.subr.mxu0 0.0
      %446 = vmatpush1.msra.mxu0 0.0
      %447 = vmatprep.subr.mxu0 0.0
      %448 = vmatpush1.msra.mxu0 0.0
      %449 = vmatprep.subr.mxu0 0.0
      %450 = vmatpush1.msra.mxu0 0.0
      %451 = vmatprep.subr.mxu0 0.0
      %452 = vmatpush1.msra.mxu0 0.0
      %453 = vmatprep.subr.mxu0 0.0
      %454 = vmatpush1.msra.mxu0 0.0
      %455 = vmatprep.subr.mxu0 0.0
      %456 = vmatpush1.msra.mxu0 0.0
      %457 = vmatprep.subr.mxu0 0.0
      %458 = vmatpush1.msra.mxu0 0.0
      %459 = vmatprep.subr.mxu0 0.0
      %460 = vmatpush1.msra.mxu0 0.0
      %461 = vmatprep.subr.mxu0 0.0
      %462 = vmatpush1.msra.mxu0 0.0
      %463 = vmatprep.subr.mxu0 0.0
      %464 = vmatpush1.msra.mxu0 0.0
      %465 = vmatprep.subr.mxu0 0.0
      %466 = vmatpush1.msra.mxu0 0.0
      %467 = vmatprep.subr.mxu0 0.0
      %468 = vmatpush1.msra.mxu0 0.0
      %469 = vmatprep.subr.mxu0 0.0
      %470 = vmatpush1.msra.mxu0 0.0
      %471 = vmatprep.subr.mxu0 0.0
      %472 = vmatpush1.msra.mxu0 0.0
      %473 = vmatprep.subr.mxu0 0.0
      %474 = vmatpush1.msra.mxu0 0.0
      %475 = vmatprep.subr.mxu0 0.0
      %476 = vmatpush1.msra.mxu0 0.0
      %477 = vmatprep.subr.mxu0 0.0
      %478 = vmatpush1.msra.mxu0 0.0
      %479 = vmatprep.subr.mxu0 0.0
      %480 = vmatpush1.msra.mxu0 0.0
      %481 = vmatprep.subr.mxu0 0.0
      %482 = vmatpush1.msra.mxu0 0.0
      %483 = vmatprep.subr.mxu0 0.0
      %484 = vmatpush1.msra.mxu0 0.0
      %485 = vmatprep.subr.mxu0 0.0
      %486 = vmatpush1.msra.mxu0 0.0
      %487 = vmatprep.subr.mxu0 0.0
      %488 = vmatpush1.msra.mxu0 0.0
      %489 = vmatprep.subr.mxu0 0.0
      %490 = vmatpush1.msra.mxu0 0.0
      %491 = vmatprep.subr.mxu0 0.0
      %492 = vmatpush1.msra.mxu0 0.0
      %493 = vmatprep.subr.mxu0 0.0
      %494 = vmatpush1.msra.mxu0 0.0
      %495 = vmatprep.subr.mxu0 0.0
      %496 = vmatpush1.msra.mxu0 0.0
      %497 = vmatprep.subr.mxu0 0.0
      %498 = vmatpush1.msra.mxu0 0.0
      %499 = vmatprep.subr.mxu0 0.0
      %500 = vmatpush1.msra.mxu0 0.0
      %501 = vmatprep.subr.mxu0 0.0
      %502 = vmatpush1.msra.mxu0 0.0
      %503 = vmatprep.mubr.f32.mxu0 0.0
      %504 = vmatmul.mubr.f32.gmra.mrb[0].mxu0 %v413
      %v505 = vpop.f32.mrb[0].mxu0
      %v506 = vadd.f32 %v374, %v505
      %v507 = vpop.f32.mrb[0].mxu0
      %508 = vmatprep.mubr.f32.mxu0 0.0
      %509 = vmatmul.mubr.f32.gmra.mrb[0].mxu0 %v416
      %v510 = vpop.f32.mrb[0].mxu0
      %v511 = vadd.f32 %v379, %v510
      %v512 = vpop.f32.mrb[0].mxu0
      %513 = vmatprep.mubr.f32.mxu0 0.0
      %514 = vmatmul.mubr.f32.gmra.mrb[0].mxu0 %v419
      %v515 = vpop.f32.mrb[0].mxu0
      %v516 = vadd.f32 %v384, %v515
      %v517 = vpop.f32.mrb[0].mxu0
      %518 = vmatprep.mubr.f32.mxu0 0.0
      %519 = vmatmul.mubr.f32.gmra.mrb[0].mxu0 %v422
      %v520 = vpop.f32.mrb[0].mxu0
      %v521 = vadd.f32 %v389, %v520
      %v522 = vpop.f32.mrb[0].mxu0
      %523 = vmatprep.mubr.f32.mxu0 0.0
      %524 = vmatmul.mubr.f32.gmra.mrb[0].mxu0 %v425
      %v525 = vpop.f32.mrb[0].mxu0
      %v526 = vadd.f32 %v394, %v525
      %v527 = vpop.f32.mrb[0].mxu0
      %528 = vmatprep.mubr.f32.mxu0 0.0
      %529 = vmatmul.mubr.f32.gmra.mrb[0].mxu0 %v428
      %v530 = vpop.f32.mrb[0].mxu0
      %v531 = vadd.f32 %v399, %v530
      %v532 = vpop.f32.mrb[0].mxu0
      %533 = vmatprep.mubr.f32.mxu0 0.0
      %534 = vmatmul.mubr.f32.gmra.mrb[0].mxu0 %v431
      %v535 = vpop.f32.mrb[0].mxu0
      %v536 = vadd.f32 %v404, %v535
      %v537 = vpop.f32.mrb[0].mxu0
      %538 = vmatprep.mubr.f32.mxu0 0.0
      %539 = vmatmul.mubr.f32.gmra.mrb[0].mxu0 %v434
      %v540 = vpop.f32.mrb[0].mxu0
      %v541 = vadd.f32 %v409, %v540
      %v542 = vpop.f32.mrb[0].mxu0
      %543 = vdwg.mxu0
      %v544 = vld [vmem:[%s250 + $0x1] sm:$0xff]
      %v545 = vld [vmem:[%s250 + $0x11] sm:$0xff]
      %v546 = vld [vmem:[%s250 + $0x21] sm:$0xff]
      %v547 = vld [vmem:[%s250 + $0x31] sm:$0xff]
      %v548 = vld [vmem:[%s250 + $0x41] sm:$0xff]
      %v549 = vld [vmem:[%s250 + $0x51] sm:$0xff]
      %v550 = vld [vmem:[%s250 + $0x61] sm:$0xff]
      %v551 = vld [vmem:[%s250 + $0x71] sm:$0xff]
      %s552 = scalar_lea.vmem %s1, 8
      %v553 = vld [vmem:[%s552] sm:$0xf]
      %v555 = vsel %vm278, %v544, 0
      %v558 = vsel %vm278, %v545, 0
      %v561 = vsel %vm278, %v546, 0
      %v564 = vsel %vm278, %v547, 0
      %v567 = vsel %vm278, %v548, 0
      %v570 = vsel %vm278, %v549, 0
      %v573 = vsel %vm278, %v550, 0
      %v576 = vsel %vm278, %v551, 0
      %v579 = vsel %vm303, %v553, 0
      %581 = vmatprep.subr.mxu0 0.0
      %582 = vmatpush1.msra.mxu0 %v579
      %583 = vmatprep.subr.mxu0 0.0
      %584 = vmatpush1.msra.mxu0 0.0
      %585 = vmatprep.subr.mxu0 0.0
      %586 = vmatpush1.msra.mxu0 0.0
      %587 = vmatprep.subr.mxu0 0.0
      %588 = vmatpush1.msra.mxu0 0.0
      %589 = vmatprep.subr.mxu0 0.0
      %590 = vmatpush1.msra.mxu0 0.0
      %591 = vmatprep.subr.mxu0 0.0
      %592 = vmatpush1.msra.mxu0 0.0
      %593 = vmatprep.subr.mxu0 0.0
      %594 = vmatpush1.msra.mxu0 0.0
      %595 = vmatprep.subr.mxu0 0.0
      %596 = vmatpush1.msra.mxu0 0.0
      %597 = vmatprep.subr.mxu0 0.0
      %598 = vmatpush1.msra.mxu0 0.0
      %599 = vmatprep.subr.mxu0 0.0
      %600 = vmatpush1.msra.mxu0 0.0
      %601 = vmatprep.subr.mxu0 0.0
      %602 = vmatpush1.msra.mxu0 0.0
      %603 = vmatprep.subr.mxu0 0.0
      %604 = vmatpush1.msra.mxu0 0.0
      %605 = vmatprep.subr.mxu0 0.0
      %606 = vmatpush1.msra.mxu0 0.0
      %607 = vmatprep.subr.mxu0 0.0
      %608 = vmatpush1.msra.mxu0 0.0
      %609 = vmatprep.subr.mxu0 0.0
      %610 = vmatpush1.msra.mxu0 0.0
      %611 = vmatprep.subr.mxu0 0.0
      %612 = vmatpush1.msra.mxu0 0.0
      %613 = vmatprep.subr.mxu0 0.0
      %614 = vmatpush1.msra.mxu0 0.0
      %615 = vmatprep.subr.mxu0 0.0
      %616 = vmatpush1.msra.mxu0 0.0
      %617 = vmatprep.subr.mxu0 0.0
      %618 = vmatpush1.msra.mxu0 0.0
      %619 = vmatprep.subr.mxu0 0.0
      %620 = vmatpush1.msra.mxu0 0.0
      %621 = vmatprep.subr.mxu0 0.0
      %622 = vmatpush1.msra.mxu0 0.0
      %623 = vmatprep.subr.mxu0 0.0
      %624 = vmatpush1.msra.mxu0 0.0
      %625 = vmatprep.subr.mxu0 0.0
      %626 = vmatpush1.msra.mxu0 0.0
      %627 = vmatprep.subr.mxu0 0.0
      %628 = vmatpush1.msra.mxu0 0.0
      %629 = vmatprep.subr.mxu0 0.0
      %630 = vmatpush1.msra.mxu0 0.0
      %631 = vmatprep.subr.mxu0 0.0
      %632 = vmatpush1.msra.mxu0 0.0
      %633 = vmatprep.subr.mxu0 0.0
      %634 = vmatpush1.msra.mxu0 0.0
      %635 = vmatprep.subr.mxu0 0.0
      %636 = vmatpush1.msra.mxu0 0.0
      %637 = vmatprep.subr.mxu0 0.0
      %638 = vmatpush1.msra.mxu0 0.0
      %639 = vmatprep.subr.mxu0 0.0
      %640 = vmatpush1.msra.mxu0 0.0
      %641 = vmatprep.subr.mxu0 0.0
      %642 = vmatpush1.msra.mxu0 0.0
      %643 = vmatprep.subr.mxu0 0.0
      %644 = vmatpush1.msra.mxu0 0.0
      %645 = vmatprep.mubr.f32.mxu0 0.0
      %646 = vmatmul.mubr.f32.gmra.mrb[0].mxu0 %v555
      %v647 = vpop.f32.mrb[0].mxu0
      %v648 = vadd.f32 0.0, %v647
      %v649 = vpop.f32.mrb[0].mxu0
      %650 = vmatprep.mubr.f32.mxu0 0.0
      %651 = vmatmul.mubr.f32.gmra.mrb[0].mxu0 %v558
      %v652 = vpop.f32.mrb[0].mxu0
      %v653 = vadd.f32 0.0, %v652
      %v654 = vpop.f32.mrb[0].mxu0
      %655 = vmatprep.mubr.f32.mxu0 0.0
      %656 = vmatmul.mubr.f32.gmra.mrb[0].mxu0 %v561
      %v657 = vpop.f32.mrb[0].mxu0
      %v658 = vadd.f32 0.0, %v657
      %v659 = vpop.f32.mrb[0].mxu0
      %660 = vmatprep.mubr.f32.mxu0 0.0
      %661 = vmatmul.mubr.f32.gmra.mrb[0].mxu0 %v564
      %v662 = vpop.f32.mrb[0].mxu0
      %v663 = vadd.f32 0.0, %v662
      %v664 = vpop.f32.mrb[0].mxu0
      %665 = vmatprep.mubr.f32.mxu0 0.0
      %666 = vmatmul.mubr.f32.gmra.mrb[0].mxu0 %v567
      %v667 = vpop.f32.mrb[0].mxu0
      %v668 = vadd.f32 0.0, %v667
      %v669 = vpop.f32.mrb[0].mxu0
      %670 = vmatprep.mubr.f32.mxu0 0.0
      %671 = vmatmul.mubr.f32.gmra.mrb[0].mxu0 %v570
      %v672 = vpop.f32.mrb[0].mxu0
      %v673 = vadd.f32 0.0, %v672
      %v674 = vpop.f32.mrb[0].mxu0
      %675 = vmatprep.mubr.f32.mxu0 0.0
      %676 = vmatmul.mubr.f32.gmra.mrb[0].mxu0 %v573
      %v677 = vpop.f32.mrb[0].mxu0
      %v678 = vadd.f32 0.0, %v677
      %v679 = vpop.f32.mrb[0].mxu0
      %680 = vmatprep.mubr.f32.mxu0 0.0
      %681 = vmatmul.mubr.f32.gmra.mrb[0].mxu0 %v576
      %v682 = vpop.f32.mrb[0].mxu0
      %v683 = vadd.f32 0.0, %v682
      %v684 = vpop.f32.mrb[0].mxu0
      %685 = vdwg.mxu0
      %v686 = vadd.f32 %v506, %v648
      %v687 = vadd.f32 %v511, %v653
      %v688 = vadd.f32 %v516, %v658
      %v689 = vadd.f32 %v521, %v663
      %v690 = vadd.f32 %v526, %v668
      %v691 = vadd.f32 %v531, %v673
      %v692 = vadd.f32 %v536, %v678
      %v693 = vadd.f32 %v541, %v683
      %s694 = scalar_lea.vmem %s250, 288
      %v695 = vld [vmem:[%s694] sm:$0xff]
      %v696 = vld [vmem:[%s694 + $0x10] sm:$0xff]
      %v697 = vld [vmem:[%s694 + $0x20] sm:$0xff]
      %v698 = vld [vmem:[%s694 + $0x30] sm:$0xff]
      %v699 = vld [vmem:[%s694 + $0x40] sm:$0xff]
      %v700 = vld [vmem:[%s694 + $0x50] sm:$0xff]
      %v701 = vld [vmem:[%s694 + $0x60] sm:$0xff]
      %v702 = vld [vmem:[%s694 + $0x70] sm:$0xff]
      %s703 = scalar_lea.vmem %s1, 12
      %v704 = vld [vmem:[%s703] sm:$0xf]
      %v706 = vsel %vm278, %v695, 0
      %v709 = vsel %vm278, %v696, 0
      %v712 = vsel %vm278, %v697, 0
      %v715 = vsel %vm278, %v698, 0
      %v718 = vsel %vm278, %v699, 0
      %v721 = vsel %vm278, %v700, 0
      %v724 = vsel %vm278, %v701, 0
      %v727 = vsel %vm278, %v702, 0
      %v730 = vsel %vm303, %v704, 0
      %732 = vmatprep.subr.mxu0 0.0
      %733 = vmatpush1.msra.mxu0 %v730
      %734 = vmatprep.subr.mxu0 0.0
      %735 = vmatpush1.msra.mxu0 0.0
      %736 = vmatprep.subr.mxu0 0.0
      %737 = vmatpush1.msra.mxu0 0.0
      %738 = vmatprep.subr.mxu0 0.0
      %739 = vmatpush1.msra.mxu0 0.0
      %740 = vmatprep.subr.mxu0 0.0
      %741 = vmatpush1.msra.mxu0 0.0
      %742 = vmatprep.subr.mxu0 0.0
      %743 = vmatpush1.msra.mxu0 0.0
      %744 = vmatprep.subr.mxu0 0.0
      %745 = vmatpush1.msra.mxu0 0.0
      %746 = vmatprep.subr.mxu0 0.0
      %747 = vmatpush1.msra.mxu0 0.0
      %748 = vmatprep.subr.mxu0 0.0
      %749 = vmatpush1.msra.mxu0 0.0
      %750 = vmatprep.subr.mxu0 0.0
      %751 = vmatpush1.msra.mxu0 0.0
      %752 = vmatprep.subr.mxu0 0.0
      %753 = vmatpush1.msra.mxu0 0.0
      %754 = vmatprep.subr.mxu0 0.0
      %755 = vmatpush1.msra.mxu0 0.0
      %756 = vmatprep.subr.mxu0 0.0
      %757 = vmatpush1.msra.mxu0 0.0
      %758 = vmatprep.subr.mxu0 0.0
      %759 = vmatpush1.msra.mxu0 0.0
      %760 = vmatprep.subr.mxu0 0.0
      %761 = vmatpush1.msra.mxu0 0.0
      %762 = vmatprep.subr.mxu0 0.0
      %763 = vmatpush1.msra.mxu0 0.0
      %764 = vmatprep.subr.mxu0 0.0
      %765 = vmatpush1.msra.mxu0 0.0
      %766 = vmatprep.subr.mxu0 0.0
      %767 = vmatpush1.msra.mxu0 0.0
      %768 = vmatprep.subr.mxu0 0.0
      %769 = vmatpush1.msra.mxu0 0.0
      %770 = vmatprep.subr.mxu0 0.0
      %771 = vmatpush1.msra.mxu0 0.0
      %772 = vmatprep.subr.mxu0 0.0
      %773 = vmatpush1.msra.mxu0 0.0
      %774 = vmatprep.subr.mxu0 0.0
      %775 = vmatpush1.msra.mxu0 0.0
      %776 = vmatprep.subr.mxu0 0.0
      %777 = vmatpush1.msra.mxu0 0.0
      %778 = vmatprep.subr.mxu0 0.0
      %779 = vmatpush1.msra.mxu0 0.0
      %780 = vmatprep.subr.mxu0 0.0
      %781 = vmatpush1.msra.mxu0 0.0
      %782 = vmatprep.subr.mxu0 0.0
      %783 = vmatpush1.msra.mxu0 0.0
      %784 = vmatprep.subr.mxu0 0.0
      %785 = vmatpush1.msra.mxu0 0.0
      %786 = vmatprep.subr.mxu0 0.0
      %787 = vmatpush1.msra.mxu0 0.0
      %788 = vmatprep.subr.mxu0 0.0
      %789 = vmatpush1.msra.mxu0 0.0
      %790 = vmatprep.subr.mxu0 0.0
      %791 = vmatpush1.msra.mxu0 0.0
      %792 = vmatprep.subr.mxu0 0.0
      %793 = vmatpush1.msra.mxu0 0.0
      %794 = vmatprep.subr.mxu0 0.0
      %795 = vmatpush1.msra.mxu0 0.0
      %796 = vmatprep.mubr.f32.mxu0 0.0
      %797 = vmatmul.mubr.f32.gmra.mrb[0].mxu0 %v706
      %v798 = vpop.f32.mrb[0].mxu0
      %v799 = vadd.f32 0.0, %v798
      %v800 = vpop.f32.mrb[0].mxu0
      %801 = vmatprep.mubr.f32.mxu0 0.0
      %802 = vmatmul.mubr.f32.gmra.mrb[0].mxu0 %v709
      %v803 = vpop.f32.mrb[0].mxu0
      %v804 = vadd.f32 0.0, %v803
      %v805 = vpop.f32.mrb[0].mxu0
      %806 = vmatprep.mubr.f32.mxu0 0.0
      %807 = vmatmul.mubr.f32.gmra.mrb[0].mxu0 %v712
      %v808 = vpop.f32.mrb[0].mxu0
      %v809 = vadd.f32 0.0, %v808
      %v810 = vpop.f32.mrb[0].mxu0
      %811 = vmatprep.mubr.f32.mxu0 0.0
      %812 = vmatmul.mubr.f32.gmra.mrb[0].mxu0 %v715
      %v813 = vpop.f32.mrb[0].mxu0
      %v814 = vadd.f32 0.0, %v813
      %v815 = vpop.f32.mrb[0].mxu0
      %816 = vmatprep.mubr.f32.mxu0 0.0
      %817 = vmatmul.mubr.f32.gmra.mrb[0].mxu0 %v718
      %v818 = vpop.f32.mrb[0].mxu0
      %v819 = vadd.f32 0.0, %v818
      %v820 = vpop.f32.mrb[0].mxu0
      %821 = vmatprep.mubr.f32.mxu0 0.0
      %822 = vmatmul.mubr.f32.gmra.mrb[0].mxu0 %v721
      %v823 = vpop.f32.mrb[0].mxu0
      %v824 = vadd.f32 0.0, %v823
      %v825 = vpop.f32.mrb[0].mxu0
      %826 = vmatprep.mubr.f32.mxu0 0.0
      %827 = vmatmul.mubr.f32.gmra.mrb[0].mxu0 %v724
      %v828 = vpop.f32.mrb[0].mxu0
      %v829 = vadd.f32 0.0, %v828
      %v830 = vpop.f32.mrb[0].mxu0
      %831 = vmatprep.mubr.f32.mxu0 0.0
      %832 = vmatmul.mubr.f32.gmra.mrb[0].mxu0 %v727
      %v833 = vpop.f32.mrb[0].mxu0
      %v834 = vadd.f32 0.0, %v833
      %v835 = vpop.f32.mrb[0].mxu0
      %836 = vdwg.mxu0
      %v837 = vadd.f32 %v686, %v799
      %v838 = vadd.f32 %v687, %v804
      %v839 = vadd.f32 %v688, %v809
      %v840 = vadd.f32 %v689, %v814
      %v841 = vadd.f32 %v690, %v819
      %v842 = vadd.f32 %v691, %v824
      %v843 = vadd.f32 %v692, %v829
      %v844 = vadd.f32 %v693, %v834
      %s845 = scalar_lea.vmem %s250, 432
      %v846 = vld [vmem:[%s845] sm:$0xff]
      %v847 = vld [vmem:[%s845 + $0x10] sm:$0xff]
      %v848 = vld [vmem:[%s845 + $0x20] sm:$0xff]
      %v849 = vld [vmem:[%s845 + $0x30] sm:$0xff]
      %v850 = vld [vmem:[%s845 + $0x40] sm:$0xff]
      %v851 = vld [vmem:[%s845 + $0x50] sm:$0xff]
      %v852 = vld [vmem:[%s845 + $0x60] sm:$0xff]
      %v853 = vld [vmem:[%s845 + $0x70] sm:$0xff]
      %s854 = scalar_lea.vmem %s1, 16
      %v855 = vld [vmem:[%s854] sm:$0xf]
      %v857 = vsel %vm278, %v846, 0
      %v860 = vsel %vm278, %v847, 0
      %v863 = vsel %vm278, %v848, 0
      %v866 = vsel %vm278, %v849, 0
      %v869 = vsel %vm278, %v850, 0
      %v872 = vsel %vm278, %v851, 0
      %v875 = vsel %vm278, %v852, 0
      %v878 = vsel %vm278, %v853, 0
      %v881 = vsel %vm303, %v855, 0
      %883 = vmatprep.subr.mxu0 0.0
      %884 = vmatpush1.msra.mxu0 %v881
      %885 = vmatprep.subr.mxu0 0.0
      %886 = vmatpush1.msra.mxu0 0.0
      %887 = vmatprep.subr.mxu0 0.0
      %888 = vmatpush1.msra.mxu0 0.0
      %889 = vmatprep.subr.mxu0 0.0
      %890 = vmatpush1.msra.mxu0 0.0
      %891 = vmatprep.subr.mxu0 0.0
      %892 = vmatpush1.msra.mxu0 0.0
      %893 = vmatprep.subr.mxu0 0.0
      %894 = vmatpush1.msra.mxu0 0.0
      %895 = vmatprep.subr.mxu0 0.0
      %896 = vmatpush1.msra.mxu0 0.0
      %897 = vmatprep.subr.mxu0 0.0
      %898 = vmatpush1.msra.mxu0 0.0
      %899 = vmatprep.subr.mxu0 0.0
      %900 = vmatpush1.msra.mxu0 0.0
      %901 = vmatprep.subr.mxu0 0.0
      %902 = vmatpush1.msra.mxu0 0.0
      %903 = vmatprep.subr.mxu0 0.0
      %904 = vmatpush1.msra.mxu0 0.0
      %905 = vmatprep.subr.mxu0 0.0
      %906 = vmatpush1.msra.mxu0 0.0
      %907 = vmatprep.subr.mxu0 0.0
      %908 = vmatpush1.msra.mxu0 0.0
      %909 = vmatprep.subr.mxu0 0.0
      %910 = vmatpush1.msra.mxu0 0.0
      %911 = vmatprep.subr.mxu0 0.0
      %912 = vmatpush1.msra.mxu0 0.0
      %913 = vmatprep.subr.mxu0 0.0
      %914 = vmatpush1.msra.mxu0 0.0
      %915 = vmatprep.subr.mxu0 0.0
      %916 = vmatpush1.msra.mxu0 0.0
      %917 = vmatprep.subr.mxu0 0.0
      %918 = vmatpush1.msra.mxu0 0.0
      %919 = vmatprep.subr.mxu0 0.0
      %920 = vmatpush1.msra.mxu0 0.0
      %921 = vmatprep.subr.mxu0 0.0
      %922 = vmatpush1.msra.mxu0 0.0
      %923 = vmatprep.subr.mxu0 0.0
      %924 = vmatpush1.msra.mxu0 0.0
      %925 = vmatprep.subr.mxu0 0.0
      %926 = vmatpush1.msra.mxu0 0.0
      %927 = vmatprep.subr.mxu0 0.0
      %928 = vmatpush1.msra.mxu0 0.0
      %929 = vmatprep.subr.mxu0 0.0
      %930 = vmatpush1.msra.mxu0 0.0
      %931 = vmatprep.subr.mxu0 0.0
      %932 = vmatpush1.msra.mxu0 0.0
      %933 = vmatprep.subr.mxu0 0.0
      %934 = vmatpush1.msra.mxu0 0.0
      %935 = vmatprep.subr.mxu0 0.0
      %936 = vmatpush1.msra.mxu0 0.0
      %937 = vmatprep.subr.mxu0 0.0
      %938 = vmatpush1.msra.mxu0 0.0
      %939 = vmatprep.subr.mxu0 0.0
      %940 = vmatpush1.msra.mxu0 0.0
      %941 = vmatprep.subr.mxu0 0.0
      %942 = vmatpush1.msra.mxu0 0.0
      %943 = vmatprep.subr.mxu0 0.0
      %944 = vmatpush1.msra.mxu0 0.0
      %945 = vmatprep.subr.mxu0 0.0
      %946 = vmatpush1.msra.mxu0 0.0
      %947 = vmatprep.mubr.f32.mxu0 0.0
      %948 = vmatmul.mubr.f32.gmra.mrb[0].mxu0 %v857
      %v949 = vpop.f32.mrb[0].mxu0
      %v950 = vadd.f32 0.0, %v949
      %v951 = vpop.f32.mrb[0].mxu0
      %952 = vmatprep.mubr.f32.mxu0 0.0
      %953 = vmatmul.mubr.f32.gmra.mrb[0].mxu0 %v860
      %v954 = vpop.f32.mrb[0].mxu0
      %v955 = vadd.f32 0.0, %v954
      %v956 = vpop.f32.mrb[0].mxu0
      %957 = vmatprep.mubr.f32.mxu0 0.0
      %958 = vmatmul.mubr.f32.gmra.mrb[0].mxu0 %v863
      %v959 = vpop.f32.mrb[0].mxu0
      %v960 = vadd.f32 0.0, %v959
      %v961 = vpop.f32.mrb[0].mxu0
      %962 = vmatprep.mubr.f32.mxu0 0.0
      %963 = vmatmul.mubr.f32.gmra.mrb[0].mxu0 %v866
      %v964 = vpop.f32.mrb[0].mxu0
      %v965 = vadd.f32 0.0, %v964
      %v966 = vpop.f32.mrb[0].mxu0
      %967 = vmatprep.mubr.f32.mxu0 0.0
      %968 = vmatmul.mubr.f32.gmra.mrb[0].mxu0 %v869
      %v969 = vpop.f32.mrb[0].mxu0
      %v970 = vadd.f32 0.0, %v969
      %v971 = vpop.f32.mrb[0].mxu0
      %972 = vmatprep.mubr.f32.mxu0 0.0
      %973 = vmatmul.mubr.f32.gmra.mrb[0].mxu0 %v872
      %v974 = vpop.f32.mrb[0].mxu0
      %v975 = vadd.f32 0.0, %v974
      %v976 = vpop.f32.mrb[0].mxu0
      %977 = vmatprep.mubr.f32.mxu0 0.0
      %978 = vmatmul.mubr.f32.gmra.mrb[0].mxu0 %v875
      %v979 = vpop.f32.mrb[0].mxu0
      %v980 = vadd.f32 0.0, %v979
      %v981 = vpop.f32.mrb[0].mxu0
      %982 = vmatprep.mubr.f32.mxu0 0.0
      %983 = vmatmul.mubr.f32.gmra.mrb[0].mxu0 %v878
      %v984 = vpop.f32.mrb[0].mxu0
      %v985 = vadd.f32 0.0, %v984
      %v986 = vpop.f32.mrb[0].mxu0
      %987 = vdwg.mxu0
      %v988 = vadd.f32 %v837, %v950
      %v989 = vadd.f32 %v838, %v955
      %v990 = vadd.f32 %v839, %v960
      %v991 = vadd.f32 %v840, %v965
      %v992 = vadd.f32 %v841, %v970
      %v993 = vadd.f32 %v842, %v975
      %v994 = vadd.f32 %v843, %v980
      %v995 = vadd.f32 %v844, %v985
      %v996 = vld [vmem:[%s694 + $0x1] sm:$0xff]
      %v997 = vld [vmem:[%s694 + $0x11] sm:$0xff]
      %v998 = vld [vmem:[%s694 + $0x21] sm:$0xff]
      %v999 = vld [vmem:[%s694 + $0x31] sm:$0xff]
      %v1000 = vld [vmem:[%s694 + $0x41] sm:$0xff]
      %v1001 = vld [vmem:[%s694 + $0x51] sm:$0xff]
      %v1002 = vld [vmem:[%s694 + $0x61] sm:$0xff]
      %v1003 = vld [vmem:[%s694 + $0x71] sm:$0xff]
      %s1004 = scalar_lea.vmem %s1, 20
      %v1005 = vld [vmem:[%s1004] sm:$0xf]
      %v1007 = vsel %vm278, %v996, 0
      %v1010 = vsel %vm278, %v997, 0
      %v1013 = vsel %vm278, %v998, 0
      %v1016 = vsel %vm278, %v999, 0
      %v1019 = vsel %vm278, %v1000, 0
      %v1022 = vsel %vm278, %v1001, 0
      %v1025 = vsel %vm278, %v1002, 0
      %v1028 = vsel %vm278, %v1003, 0
      %v1031 = vsel %vm303, %v1005, 0
      %1033 = vmatprep.subr.mxu0 0.0
      %1034 = vmatpush1.msra.mxu0 %v1031
      %1035 = vmatprep.subr.mxu0 0.0
      %1036 = vmatpush1.msra.mxu0 0.0
      %1037 = vmatprep.subr.mxu0 0.0
      %1038 = vmatpush1.msra.mxu0 0.0
      %1039 = vmatprep.subr.mxu0 0.0
      %1040 = vmatpush1.msra.mxu0 0.0
      %1041 = vmatprep.subr.mxu0 0.0
      %1042 = vmatpush1.msra.mxu0 0.0
      %1043 = vmatprep.subr.mxu0 0.0
      %1044 = vmatpush1.msra.mxu0 0.0
      %1045 = vmatprep.subr.mxu0 0.0
      %1046 = vmatpush1.msra.mxu0 0.0
      %1047 = vmatprep.subr.mxu0 0.0
      %1048 = vmatpush1.msra.mxu0 0.0
      %1049 = vmatprep.subr.mxu0 0.0
      %1050 = vmatpush1.msra.mxu0 0.0
      %1051 = vmatprep.subr.mxu0 0.0
      %1052 = vmatpush1.msra.mxu0 0.0
      %1053 = vmatprep.subr.mxu0 0.0
      %1054 = vmatpush1.msra.mxu0 0.0
      %1055 = vmatprep.subr.mxu0 0.0
      %1056 = vmatpush1.msra.mxu0 0.0
      %1057 = vmatprep.subr.mxu0 0.0
      %1058 = vmatpush1.msra.mxu0 0.0
      %1059 = vmatprep.subr.mxu0 0.0
      %1060 = vmatpush1.msra.mxu0 0.0
      %1061 = vmatprep.subr.mxu0 0.0
      %1062 = vmatpush1.msra.mxu0 0.0
      %1063 = vmatprep.subr.mxu0 0.0
      %1064 = vmatpush1.msra.mxu0 0.0
      %1065 = vmatprep.subr.mxu0 0.0
      %1066 = vmatpush1.msra.mxu0 0.0
      %1067 = vmatprep.subr.mxu0 0.0
      %1068 = vmatpush1.msra.mxu0 0.0
      %1069 = vmatprep.subr.mxu0 0.0
      %1070 = vmatpush1.msra.mxu0 0.0
      %1071 = vmatprep.subr.mxu0 0.0
      %1072 = vmatpush1.msra.mxu0 0.0
      %1073 = vmatprep.subr.mxu0 0.0
      %1074 = vmatpush1.msra.mxu0 0.0
      %1075 = vmatprep.subr.mxu0 0.0
      %1076 = vmatpush1.msra.mxu0 0.0
      %1077 = vmatprep.subr.mxu0 0.0
      %1078 = vmatpush1.msra.mxu0 0.0
      %1079 = vmatprep.subr.mxu0 0.0
      %1080 = vmatpush1.msra.mxu0 0.0
      %1081 = vmatprep.subr.mxu0 0.0
      %1082 = vmatpush1.msra.mxu0 0.0
      %1083 = vmatprep.subr.mxu0 0.0
      %1084 = vmatpush1.msra.mxu0 0.0
      %1085 = vmatprep.subr.mxu0 0.0
      %1086 = vmatpush1.msra.mxu0 0.0
      %1087 = vmatprep.subr.mxu0 0.0
      %1088 = vmatpush1.msra.mxu0 0.0
      %1089 = vmatprep.subr.mxu0 0.0
      %1090 = vmatpush1.msra.mxu0 0.0
      %1091 = vmatprep.subr.mxu0 0.0
      %1092 = vmatpush1.msra.mxu0 0.0
      %1093 = vmatprep.subr.mxu0 0.0
      %1094 = vmatpush1.msra.mxu0 0.0
      %1095 = vmatprep.subr.mxu0 0.0
      %1096 = vmatpush1.msra.mxu0 0.0
      %1097 = vmatprep.mubr.f32.mxu0 0.0
      %1098 = vmatmul.mubr.f32.gmra.mrb[0].mxu0 %v1007
      %v1099 = vpop.f32.mrb[0].mxu0
      %v1100 = vadd.f32 0.0, %v1099
      %v1101 = vpop.f32.mrb[0].mxu0
      %1102 = vmatprep.mubr.f32.mxu0 0.0
      %1103 = vmatmul.mubr.f32.gmra.mrb[0].mxu0 %v1010
      %v1104 = vpop.f32.mrb[0].mxu0
      %v1105 = vadd.f32 0.0, %v1104
      %v1106 = vpop.f32.mrb[0].mxu0
      %1107 = vmatprep.mubr.f32.mxu0 0.0
      %1108 = vmatmul.mubr.f32.gmra.mrb[0].mxu0 %v1013
      %v1109 = vpop.f32.mrb[0].mxu0
      %v1110 = vadd.f32 0.0, %v1109
      %v1111 = vpop.f32.mrb[0].mxu0
      %1112 = vmatprep.mubr.f32.mxu0 0.0
      %1113 = vmatmul.mubr.f32.gmra.mrb[0].mxu0 %v1016
      %v1114 = vpop.f32.mrb[0].mxu0
      %v1115 = vadd.f32 0.0, %v1114
      %v1116 = vpop.f32.mrb[0].mxu0
      %1117 = vmatprep.mubr.f32.mxu0 0.0
      %1118 = vmatmul.mubr.f32.gmra.mrb[0].mxu0 %v1019
      %v1119 = vpop.f32.mrb[0].mxu0
      %v1120 = vadd.f32 0.0, %v1119
      %v1121 = vpop.f32.mrb[0].mxu0
      %1122 = vmatprep.mubr.f32.mxu0 0.0
      %1123 = vmatmul.mubr.f32.gmra.mrb[0].mxu0 %v1022
      %v1124 = vpop.f32.mrb[0].mxu0
      %v1125 = vadd.f32 0.0, %v1124
      %v1126 = vpop.f32.mrb[0].mxu0
      %1127 = vmatprep.mubr.f32.mxu0 0.0
      %1128 = vmatmul.mubr.f32.gmra.mrb[0].mxu0 %v1025
      %v1129 = vpop.f32.mrb[0].mxu0
      %v1130 = vadd.f32 0.0, %v1129
      %v1131 = vpop.f32.mrb[0].mxu0
      %1132 = vmatprep.mubr.f32.mxu0 0.0
      %1133 = vmatmul.mubr.f32.gmra.mrb[0].mxu0 %v1028
      %v1134 = vpop.f32.mrb[0].mxu0
      %v1135 = vadd.f32 0.0, %v1134
      %v1136 = vpop.f32.mrb[0].mxu0
      %1137 = vdwg.mxu0
      %v1138 = vadd.f32 %v988, %v1100
      %v1139 = vadd.f32 %v989, %v1105
      %v1140 = vadd.f32 %v990, %v1110
      %v1141 = vadd.f32 %v991, %v1115
      %v1142 = vadd.f32 %v992, %v1120
      %v1143 = vadd.f32 %v993, %v1125
      %v1144 = vadd.f32 %v994, %v1130
      %v1145 = vadd.f32 %v995, %v1135
      %s1146 = scalar_lea.vmem %s250, 16
      %v1147 = vld [vmem:[%s1146] sm:$0xff]
      %v1148 = vld [vmem:[%s1146 + $0x10] sm:$0xff]
      %v1149 = vld [vmem:[%s1146 + $0x20] sm:$0xff]
      %v1150 = vld [vmem:[%s1146 + $0x30] sm:$0xff]
      %v1151 = vld [vmem:[%s1146 + $0x40] sm:$0xff]
      %v1152 = vld [vmem:[%s1146 + $0x50] sm:$0xff]
      %v1153 = vld [vmem:[%s1146 + $0x60] sm:$0xff]
      %v1154 = vld [vmem:[%s1146 + $0x70] sm:$0xff]
      %s1155 = scalar_lea.vmem %s1, 24
      %v1156 = vld [vmem:[%s1155] sm:$0xf]
      %v1158 = vsel %vm278, %v1147, 0
      %v1161 = vsel %vm278, %v1148, 0
      %v1164 = vsel %vm278, %v1149, 0
      %v1167 = vsel %vm278, %v1150, 0
      %v1170 = vsel %vm278, %v1151, 0
      %v1173 = vsel %vm278, %v1152, 0
      %v1176 = vsel %vm278, %v1153, 0
      %v1179 = vsel %vm278, %v1154, 0
      %v1182 = vsel %vm303, %v1156, 0
      %1184 = vmatprep.subr.mxu0 0.0
      %1185 = vmatpush1.msra.mxu0 %v1182
      %1186 = vmatprep.subr.mxu0 0.0
      %1187 = vmatpush1.msra.mxu0 0.0
      %1188 = vmatprep.subr.mxu0 0.0
      %1189 = vmatpush1.msra.mxu0 0.0
      %1190 = vmatprep.subr.mxu0 0.0
      %1191 = vmatpush1.msra.mxu0 0.0
      %1192 = vmatprep.subr.mxu0 0.0
      %1193 = vmatpush1.msra.mxu0 0.0
      %1194 = vmatprep.subr.mxu0 0.0
      %1195 = vmatpush1.msra.mxu0 0.0
      %1196 = vmatprep.subr.mxu0 0.0
      %1197 = vmatpush1.msra.mxu0 0.0
      %1198 = vmatprep.subr.mxu0 0.0
      %1199 = vmatpush1.msra.mxu0 0.0
      %1200 = vmatprep.subr.mxu0 0.0
      %1201 = vmatpush1.msra.mxu0 0.0
      %1202 = vmatprep.subr.mxu0 0.0
      %1203 = vmatpush1.msra.mxu0 0.0
      %1204 = vmatprep.subr.mxu0 0.0
      %1205 = vmatpush1.msra.mxu0 0.0
      %1206 = vmatprep.subr.mxu0 0.0
      %1207 = vmatpush1.msra.mxu0 0.0
      %1208 = vmatprep.subr.mxu0 0.0
      %1209 = vmatpush1.msra.mxu0 0.0
      %1210 = vmatprep.subr.mxu0 0.0
      %1211 = vmatpush1.msra.mxu0 0.0
      %1212 = vmatprep.subr.mxu0 0.0
      %1213 = vmatpush1.msra.mxu0 0.0
      %1214 = vmatprep.subr.mxu0 0.0
      %1215 = vmatpush1.msra.mxu0 0.0
      %1216 = vmatprep.subr.mxu0 0.0
      %1217 = vmatpush1.msra.mxu0 0.0
      %1218 = vmatprep.subr.mxu0 0.0
      %1219 = vmatpush1.msra.mxu0 0.0
      %1220 = vmatprep.subr.mxu0 0.0
      %1221 = vmatpush1.msra.mxu0 0.0
      %1222 = vmatprep.subr.mxu0 0.0
      %1223 = vmatpush1.msra.mxu0 0.0
      %1224 = vmatprep.subr.mxu0 0.0
      %1225 = vmatpush1.msra.mxu0 0.0
      %1226 = vmatprep.subr.mxu0 0.0
      %1227 = vmatpush1.msra.mxu0 0.0
      %1228 = vmatprep.subr.mxu0 0.0
      %1229 = vmatpush1.msra.mxu0 0.0
      %1230 = vmatprep.subr.mxu0 0.0
      %1231 = vmatpush1.msra.mxu0 0.0
      %1232 = vmatprep.subr.mxu0 0.0
      %1233 = vmatpush1.msra.mxu0 0.0
      %1234 = vmatprep.subr.mxu0 0.0
      %1235 = vmatpush1.msra.mxu0 0.0
      %1236 = vmatprep.subr.mxu0 0.0
      %1237 = vmatpush1.msra.mxu0 0.0
      %1238 = vmatprep.subr.mxu0 0.0
      %1239 = vmatpush1.msra.mxu0 0.0
      %1240 = vmatprep.subr.mxu0 0.0
      %1241 = vmatpush1.msra.mxu0 0.0
      %1242 = vmatprep.subr.mxu0 0.0
      %1243 = vmatpush1.msra.mxu0 0.0
      %1244 = vmatprep.subr.mxu0 0.0
      %1245 = vmatpush1.msra.mxu0 0.0
      %1246 = vmatprep.subr.mxu0 0.0
      %1247 = vmatpush1.msra.mxu0 0.0
      %1248 = vmatprep.mubr.f32.mxu0 0.0
      %1249 = vmatmul.mubr.f32.gmra.mrb[0].mxu0 %v1158
      %v1250 = vpop.f32.mrb[0].mxu0
      %v1251 = vadd.f32 0.0, %v1250
      %v1252 = vpop.f32.mrb[0].mxu0
      %1253 = vmatprep.mubr.f32.mxu0 0.0
      %1254 = vmatmul.mubr.f32.gmra.mrb[0].mxu0 %v1161
      %v1255 = vpop.f32.mrb[0].mxu0
      %v1256 = vadd.f32 0.0, %v1255
      %v1257 = vpop.f32.mrb[0].mxu0
      %1258 = vmatprep.mubr.f32.mxu0 0.0
      %1259 = vmatmul.mubr.f32.gmra.mrb[0].mxu0 %v1164
      %v1260 = vpop.f32.mrb[0].mxu0
      %v1261 = vadd.f32 0.0, %v1260
      %v1262 = vpop.f32.mrb[0].mxu0
      %1263 = vmatprep.mubr.f32.mxu0 0.0
      %1264 = vmatmul.mubr.f32.gmra.mrb[0].mxu0 %v1167
      %v1265 = vpop.f32.mrb[0].mxu0
      %v1266 = vadd.f32 0.0, %v1265
      %v1267 = vpop.f32.mrb[0].mxu0
      %1268 = vmatprep.mubr.f32.mxu0 0.0
      %1269 = vmatmul.mubr.f32.gmra.mrb[0].mxu0 %v1170
      %v1270 = vpop.f32.mrb[0].mxu0
      %v1271 = vadd.f32 0.0, %v1270
      %v1272 = vpop.f32.mrb[0].mxu0
      %1273 = vmatprep.mubr.f32.mxu0 0.0
      %1274 = vmatmul.mubr.f32.gmra.mrb[0].mxu0 %v1173
      %v1275 = vpop.f32.mrb[0].mxu0
      %v1276 = vadd.f32 0.0, %v1275
      %v1277 = vpop.f32.mrb[0].mxu0
      %1278 = vmatprep.mubr.f32.mxu0 0.0
      %1279 = vmatmul.mubr.f32.gmra.mrb[0].mxu0 %v1176
      %v1280 = vpop.f32.mrb[0].mxu0
      %v1281 = vadd.f32 0.0, %v1280
      %v1282 = vpop.f32.mrb[0].mxu0
      %1283 = vmatprep.mubr.f32.mxu0 0.0
      %1284 = vmatmul.mubr.f32.gmra.mrb[0].mxu0 %v1179
      %v1285 = vpop.f32.mrb[0].mxu0
      %v1286 = vadd.f32 0.0, %v1285
      %v1287 = vpop.f32.mrb[0].mxu0
      %1288 = vdwg.mxu0
      %v1289 = vadd.f32 %v1138, %v1251
      %v1290 = vadd.f32 %v1139, %v1256
      %v1291 = vadd.f32 %v1140, %v1261
      %v1292 = vadd.f32 %v1141, %v1266
      %v1293 = vadd.f32 %v1142, %v1271
      %v1294 = vadd.f32 %v1143, %v1276
      %v1295 = vadd.f32 %v1144, %v1281
      %v1296 = vadd.f32 %v1145, %v1286
      %s1297 = scalar_lea.vmem %s250, 160
      %v1298 = vld [vmem:[%s1297] sm:$0xff]
      %v1299 = vld [vmem:[%s1297 + $0x10] sm:$0xff]
      %v1300 = vld [vmem:[%s1297 + $0x20] sm:$0xff]
      %v1301 = vld [vmem:[%s1297 + $0x30] sm:$0xff]
      %v1302 = vld [vmem:[%s1297 + $0x40] sm:$0xff]
      %v1303 = vld [vmem:[%s1297 + $0x50] sm:$0xff]
      %v1304 = vld [vmem:[%s1297 + $0x60] sm:$0xff]
      %v1305 = vld [vmem:[%s1297 + $0x70] sm:$0xff]
      %s1306 = scalar_lea.vmem %s1, 28
      %v1307 = vld [vmem:[%s1306] sm:$0xf]
      %v1309 = vsel %vm278, %v1298, 0
      %v1312 = vsel %vm278, %v1299, 0
      %v1315 = vsel %vm278, %v1300, 0
      %v1318 = vsel %vm278, %v1301, 0
      %v1321 = vsel %vm278, %v1302, 0
      %v1324 = vsel %vm278, %v1303, 0
      %v1327 = vsel %vm278, %v1304, 0
      %v1330 = vsel %vm278, %v1305, 0
      %v1333 = vsel %vm303, %v1307, 0
      %1335 = vmatprep.subr.mxu0 0.0
      %1336 = vmatpush1.msra.mxu0 %v1333
      %1337 = vmatprep.subr.mxu0 0.0
      %1338 = vmatpush1.msra.mxu0 0.0
      %1339 = vmatprep.subr.mxu0 0.0
      %1340 = vmatpush1.msra.mxu0 0.0
      %1341 = vmatprep.subr.mxu0 0.0
      %1342 = vmatpush1.msra.mxu0 0.0
      %1343 = vmatprep.subr.mxu0 0.0
      %1344 = vmatpush1.msra.mxu0 0.0
      %1345 = vmatprep.subr.mxu0 0.0
      %1346 = vmatpush1.msra.mxu0 0.0
      %1347 = vmatprep.subr.mxu0 0.0
      %1348 = vmatpush1.msra.mxu0 0.0
      %1349 = vmatprep.subr.mxu0 0.0
      %1350 = vmatpush1.msra.mxu0 0.0
      %1351 = vmatprep.subr.mxu0 0.0
      %1352 = vmatpush1.msra.mxu0 0.0
      %1353 = vmatprep.subr.mxu0 0.0
      %1354 = vmatpush1.msra.mxu0 0.0
      %1355 = vmatprep.subr.mxu0 0.0
      %1356 = vmatpush1.msra.mxu0 0.0
      %1357 = vmatprep.subr.mxu0 0.0
      %1358 = vmatpush1.msra.mxu0 0.0
      %1359 = vmatprep.subr.mxu0 0.0
      %1360 = vmatpush1.msra.mxu0 0.0
      %1361 = vmatprep.subr.mxu0 0.0
      %1362 = vmatpush1.msra.mxu0 0.0
      %1363 = vmatprep.subr.mxu0 0.0
      %1364 = vmatpush1.msra.mxu0 0.0
      %1365 = vmatprep.subr.mxu0 0.0
      %1366 = vmatpush1.msra.mxu0 0.0
      %1367 = vmatprep.subr.mxu0 0.0
      %1368 = vmatpush1.msra.mxu0 0.0
      %1369 = vmatprep.subr.mxu0 0.0
      %1370 = vmatpush1.msra.mxu0 0.0
      %1371 = vmatprep.subr.mxu0 0.0
      %1372 = vmatpush1.msra.mxu0 0.0
      %1373 = vmatprep.subr.mxu0 0.0
      %1374 = vmatpush1.msra.mxu0 0.0
      %1375 = vmatprep.subr.mxu0 0.0
      %1376 = vmatpush1.msra.mxu0 0.0
      %1377 = vmatprep.subr.mxu0 0.0
      %1378 = vmatpush1.msra.mxu0 0.0
      %1379 = vmatprep.subr.mxu0 0.0
      %1380 = vmatpush1.msra.mxu0 0.0
      %1381 = vmatprep.subr.mxu0 0.0
      %1382 = vmatpush1.msra.mxu0 0.0
      %1383 = vmatprep.subr.mxu0 0.0
      %1384 = vmatpush1.msra.mxu0 0.0
      %1385 = vmatprep.subr.mxu0 0.0
      %1386 = vmatpush1.msra.mxu0 0.0
      %1387 = vmatprep.subr.mxu0 0.0
      %1388 = vmatpush1.msra.mxu0 0.0
      %1389 = vmatprep.subr.mxu0 0.0
      %1390 = vmatpush1.msra.mxu0 0.0
      %1391 = vmatprep.subr.mxu0 0.0
      %1392 = vmatpush1.msra.mxu0 0.0
      %1393 = vmatprep.subr.mxu0 0.0
      %1394 = vmatpush1.msra.mxu0 0.0
      %1395 = vmatprep.subr.mxu0 0.0
      %1396 = vmatpush1.msra.mxu0 0.0
      %1397 = vmatprep.subr.mxu0 0.0
      %1398 = vmatpush1.msra.mxu0 0.0
      %1399 = vmatprep.mubr.f32.mxu0 0.0
      %1400 = vmatmul.mubr.f32.gmra.mrb[0].mxu0 %v1309
      %v1401 = vpop.f32.mrb[0].mxu0
      %v1402 = vadd.f32 0.0, %v1401
      %v1403 = vpop.f32.mrb[0].mxu0
      %1404 = vmatprep.mubr.f32.mxu0 0.0
      %1405 = vmatmul.mubr.f32.gmra.mrb[0].mxu0 %v1312
      %v1406 = vpop.f32.mrb[0].mxu0
      %v1407 = vadd.f32 0.0, %v1406
      %v1408 = vpop.f32.mrb[0].mxu0
      %1409 = vmatprep.mubr.f32.mxu0 0.0
      %1410 = vmatmul.mubr.f32.gmra.mrb[0].mxu0 %v1315
      %v1411 = vpop.f32.mrb[0].mxu0
      %v1412 = vadd.f32 0.0, %v1411
      %v1413 = vpop.f32.mrb[0].mxu0
      %1414 = vmatprep.mubr.f32.mxu0 0.0
      %1415 = vmatmul.mubr.f32.gmra.mrb[0].mxu0 %v1318
      %v1416 = vpop.f32.mrb[0].mxu0
      %v1417 = vadd.f32 0.0, %v1416
      %v1418 = vpop.f32.mrb[0].mxu0
      %1419 = vmatprep.mubr.f32.mxu0 0.0
      %1420 = vmatmul.mubr.f32.gmra.mrb[0].mxu0 %v1321
      %v1421 = vpop.f32.mrb[0].mxu0
      %v1422 = vadd.f32 0.0, %v1421
      %v1423 = vpop.f32.mrb[0].mxu0
      %1424 = vmatprep.mubr.f32.mxu0 0.0
      %1425 = vmatmul.mubr.f32.gmra.mrb[0].mxu0 %v1324
      %v1426 = vpop.f32.mrb[0].mxu0
      %v1427 = vadd.f32 0.0, %v1426
      %v1428 = vpop.f32.mrb[0].mxu0
      %1429 = vmatprep.mubr.f32.mxu0 0.0
      %1430 = vmatmul.mubr.f32.gmra.mrb[0].mxu0 %v1327
      %v1431 = vpop.f32.mrb[0].mxu0
      %v1432 = vadd.f32 0.0, %v1431
      %v1433 = vpop.f32.mrb[0].mxu0
      %1434 = vmatprep.mubr.f32.mxu0 0.0
      %1435 = vmatmul.mubr.f32.gmra.mrb[0].mxu0 %v1330
      %v1436 = vpop.f32.mrb[0].mxu0
      %v1437 = vadd.f32 0.0, %v1436
      %v1438 = vpop.f32.mrb[0].mxu0
      %1439 = vdwg.mxu0
      %v1440 = vadd.f32 %v1289, %v1402
      %v1441 = vadd.f32 %v1290, %v1407
      %v1442 = vadd.f32 %v1291, %v1412
      %v1443 = vadd.f32 %v1292, %v1417
      %v1444 = vadd.f32 %v1293, %v1422
      %v1445 = vadd.f32 %v1294, %v1427
      %v1446 = vadd.f32 %v1295, %v1432
      %v1447 = vadd.f32 %v1296, %v1437
      %v1448 = vld [vmem:[%s1146 + $0x1] sm:$0xff]
      %v1449 = vld [vmem:[%s1146 + $0x11] sm:$0xff]
      %v1450 = vld [vmem:[%s1146 + $0x21] sm:$0xff]
      %v1451 = vld [vmem:[%s1146 + $0x31] sm:$0xff]
      %v1452 = vld [vmem:[%s1146 + $0x41] sm:$0xff]
      %v1453 = vld [vmem:[%s1146 + $0x51] sm:$0xff]
      %v1454 = vld [vmem:[%s1146 + $0x61] sm:$0xff]
      %v1455 = vld [vmem:[%s1146 + $0x71] sm:$0xff]
      %s1456 = scalar_lea.vmem %s1, 32
      %v1457 = vld [vmem:[%s1456] sm:$0xf]
      %v1459 = vsel %vm278, %v1448, 0
      %v1462 = vsel %vm278, %v1449, 0
      %v1465 = vsel %vm278, %v1450, 0
      %v1468 = vsel %vm278, %v1451, 0
      %v1471 = vsel %vm278, %v1452, 0
      %v1474 = vsel %vm278, %v1453, 0
      %v1477 = vsel %vm278, %v1454, 0
      %v1480 = vsel %vm278, %v1455, 0
      %v1483 = vsel %vm303, %v1457, 0
      %1485 = vmatprep.subr.mxu0 0.0
      %1486 = vmatpush1.msra.mxu0 %v1483
      %1487 = vmatprep.subr.mxu0 0.0
      %1488 = vmatpush1.msra.mxu0 0.0
      %1489 = vmatprep.subr.mxu0 0.0
      %1490 = vmatpush1.msra.mxu0 0.0
      %1491 = vmatprep.subr.mxu0 0.0
      %1492 = vmatpush1.msra.mxu0 0.0
      %1493 = vmatprep.subr.mxu0 0.0
      %1494 = vmatpush1.msra.mxu0 0.0
      %1495 = vmatprep.subr.mxu0 0.0
      %1496 = vmatpush1.msra.mxu0 0.0
      %1497 = vmatprep.subr.mxu0 0.0
      %1498 = vmatpush1.msra.mxu0 0.0
      %1499 = vmatprep.subr.mxu0 0.0
      %1500 = vmatpush1.msra.mxu0 0.0
      %1501 = vmatprep.subr.mxu0 0.0
      %1502 = vmatpush1.msra.mxu0 0.0
      %1503 = vmatprep.subr.mxu0 0.0
      %1504 = vmatpush1.msra.mxu0 0.0
      %1505 = vmatprep.subr.mxu0 0.0
      %1506 = vmatpush1.msra.mxu0 0.0
      %1507 = vmatprep.subr.mxu0 0.0
      %1508 = vmatpush1.msra.mxu0 0.0
      %1509 = vmatprep.subr.mxu0 0.0
      %1510 = vmatpush1.msra.mxu0 0.0
      %1511 = vmatprep.subr.mxu0 0.0
      %1512 = vmatpush1.msra.mxu0 0.0
      %1513 = vmatprep.subr.mxu0 0.0
      %1514 = vmatpush1.msra.mxu0 0.0
      %1515 = vmatprep.subr.mxu0 0.0
      %1516 = vmatpush1.msra.mxu0 0.0
      %1517 = vmatprep.subr.mxu0 0.0
      %1518 = vmatpush1.msra.mxu0 0.0
      %1519 = vmatprep.subr.mxu0 0.0
      %1520 = vmatpush1.msra.mxu0 0.0
      %1521 = vmatprep.subr.mxu0 0.0
      %1522 = vmatpush1.msra.mxu0 0.0
      %1523 = vmatprep.subr.mxu0 0.0
      %1524 = vmatpush1.msra.mxu0 0.0
      %1525 = vmatprep.subr.mxu0 0.0
      %1526 = vmatpush1.msra.mxu0 0.0
      %1527 = vmatprep.subr.mxu0 0.0
      %1528 = vmatpush1.msra.mxu0 0.0
      %1529 = vmatprep.subr.mxu0 0.0
      %1530 = vmatpush1.msra.mxu0 0.0
      %1531 = vmatprep.subr.mxu0 0.0
      %1532 = vmatpush1.msra.mxu0 0.0
      %1533 = vmatprep.subr.mxu0 0.0
      %1534 = vmatpush1.msra.mxu0 0.0
      %1535 = vmatprep.subr.mxu0 0.0
      %1536 = vmatpush1.msra.mxu0 0.0
      %1537 = vmatprep.subr.mxu0 0.0
      %1538 = vmatpush1.msra.mxu0 0.0
      %1539 = vmatprep.subr.mxu0 0.0
      %1540 = vmatpush1.msra.mxu0 0.0
      %1541 = vmatprep.subr.mxu0 0.0
      %1542 = vmatpush1.msra.mxu0 0.0
      %1543 = vmatprep.subr.mxu0 0.0
      %1544 = vmatpush1.msra.mxu0 0.0
      %1545 = vmatprep.subr.mxu0 0.0
      %1546 = vmatpush1.msra.mxu0 0.0
      %1547 = vmatprep.subr.mxu0 0.0
      %1548 = vmatpush1.msra.mxu0 0.0
      %1549 = vmatprep.mubr.f32.mxu0 0.0
      %1550 = vmatmul.mubr.f32.gmra.mrb[0].mxu0 %v1459
      %v1551 = vpop.f32.mrb[0].mxu0
      %v1552 = vadd.f32 0.0, %v1551
      %v1553 = vpop.f32.mrb[0].mxu0
      %1554 = vmatprep.mubr.f32.mxu0 0.0
      %1555 = vmatmul.mubr.f32.gmra.mrb[0].mxu0 %v1462
      %v1556 = vpop.f32.mrb[0].mxu0
      %v1557 = vadd.f32 0.0, %v1556
      %v1558 = vpop.f32.mrb[0].mxu0
      %1559 = vmatprep.mubr.f32.mxu0 0.0
      %1560 = vmatmul.mubr.f32.gmra.mrb[0].mxu0 %v1465
      %v1561 = vpop.f32.mrb[0].mxu0
      %v1562 = vadd.f32 0.0, %v1561
      %v1563 = vpop.f32.mrb[0].mxu0
      %1564 = vmatprep.mubr.f32.mxu0 0.0
      %1565 = vmatmul.mubr.f32.gmra.mrb[0].mxu0 %v1468
      %v1566 = vpop.f32.mrb[0].mxu0
      %v1567 = vadd.f32 0.0, %v1566
      %v1568 = vpop.f32.mrb[0].mxu0
      %1569 = vmatprep.mubr.f32.mxu0 0.0
      %1570 = vmatmul.mubr.f32.gmra.mrb[0].mxu0 %v1471
      %v1571 = vpop.f32.mrb[0].mxu0
      %v1572 = vadd.f32 0.0, %v1571
      %v1573 = vpop.f32.mrb[0].mxu0
      %1574 = vmatprep.mubr.f32.mxu0 0.0
      %1575 = vmatmul.mubr.f32.gmra.mrb[0].mxu0 %v1474
      %v1576 = vpop.f32.mrb[0].mxu0
      %v1577 = vadd.f32 0.0, %v1576
      %v1578 = vpop.f32.mrb[0].mxu0
      %1579 = vmatprep.mubr.f32.mxu0 0.0
      %1580 = vmatmul.mubr.f32.gmra.mrb[0].mxu0 %v1477
      %v1581 = vpop.f32.mrb[0].mxu0
      %v1582 = vadd.f32 0.0, %v1581
      %v1583 = vpop.f32.mrb[0].mxu0
      %1584 = vmatprep.mubr.f32.mxu0 0.0
      %1585 = vmatmul.mubr.f32.gmra.mrb[0].mxu0 %v1480
      %v1586 = vpop.f32.mrb[0].mxu0
      %v1587 = vadd.f32 0.0, %v1586
      %v1588 = vpop.f32.mrb[0].mxu0
      %1589 = vdwg.mxu0
      %v1590 = vadd.f32 %v1440, %v1552
      %v1591 = vadd.f32 %v1441, %v1557
      %v1592 = vadd.f32 %v1442, %v1562
      %v1593 = vadd.f32 %v1443, %v1567
      %v1594 = vadd.f32 %v1444, %v1572
      %v1595 = vadd.f32 %v1445, %v1577
      %v1596 = vadd.f32 %v1446, %v1582
      %v1597 = vadd.f32 %v1447, %v1587
      %v1598 = vld [vmem:[%s2] sm:$0x1]
      %v1600 = vlaneseq
      %v1601 = vshrl.u32 %v1600, 7
      %v1602 = vsub.s32 0, %v1601
      %v1603 = vrot.slane %v1598, %v1602
      %v1605 = vadd.f32 %v1590, %v1603
      %v1606 = vadd.f32 %v1591, %v1603
      %v1607 = vadd.f32 %v1592, %v1603
      %v1608 = vadd.f32 %v1593, %v1603
      %v1609 = vadd.f32 %v1594, %v1603
      %v1610 = vadd.f32 %v1595, %v1603
      %v1611 = vadd.f32 %v1596, %v1603
      %v1612 = vadd.f32 %v1597, %v1603
      %v1613 = vmax.f32 %v1605, 0.0
      %v1614 = vmax.f32 %v1606, 0.0
      %v1615 = vmax.f32 %v1607, 0.0
      %v1616 = vmax.f32 %v1608, 0.0
      %v1617 = vmax.f32 %v1609, 0.0
      %v1618 = vmax.f32 %v1610, 0.0
      %v1619 = vmax.f32 %v1611, 0.0
      %v1620 = vmax.f32 %v1612, 0.0
      %1621 = vst [vmem:[#allocation2] sm:$0xff] 0.0
      %1622 = vst [vmem:[#allocation2 + $0x8] sm:$0x3] 0.0
      %1623 = vst [vmem:[#allocation2 + $0x10] sm:$0xff] 0.0
      %1624 = vst [vmem:[#allocation2 + $0x18] sm:$0x3] 0.0
      %1625 = vst [vmem:[#allocation2 + $0x20] sm:$0xff] 0.0
      %1626 = vst [vmem:[#allocation2 + $0x28] sm:$0x3] 0.0
      %1627 = vst [vmem:[#allocation2 + $0x30] sm:$0xff] 0.0
      %1628 = vst [vmem:[#allocation2 + $0x38] sm:$0x3] 0.0
      %1629 = vst [vmem:[#allocation2 + $0x40] sm:$0xff] 0.0
      %1630 = vst [vmem:[#allocation2 + $0x48] sm:$0x3] 0.0
      %1631 = vst [vmem:[#allocation2 + $0x50] sm:$0xff] 0.0
      %1632 = vst [vmem:[#allocation2 + $0x58] sm:$0x3] 0.0
      %1633 = vst [vmem:[#allocation2 + $0x60] sm:$0xff] 0.0
      %1634 = vst [vmem:[#allocation2 + $0x68] sm:$0x3] 0.0
      %1635 = vst [vmem:[#allocation2 + $0x70] sm:$0xff] 0.0
      %1636 = vst [vmem:[#allocation2 + $0x78] sm:$0x3] 0.0
      %1637 = vst [vmem:[#allocation2 + $0x80] sm:$0xff] 0.0
      %1638 = vst [vmem:[#allocation2 + $0x88] sm:$0x3] 0.0
      %1639 = vst [vmem:[#allocation2 + $0x90] sm:$0xff] 0.0
      %1640 = vst [vmem:[#allocation2 + $0x98] sm:$0x3] 0.0
      %s1641 = scalar_lea.vmem [#allocation2], 16
      %1642 = vst [vmem:[%s1641 + $0x1] sm:$0xff] %v1613
      %1643 = vst [vmem:[%s1641 + $0x11] sm:$0xff] %v1614
      %1644 = vst [vmem:[%s1641 + $0x21] sm:$0xff] %v1615
      %1645 = vst [vmem:[%s1641 + $0x31] sm:$0xff] %v1616
      %1646 = vst [vmem:[%s1641 + $0x41] sm:$0xff] %v1617
      %1647 = vst [vmem:[%s1641 + $0x51] sm:$0xff] %v1618
      %1648 = vst [vmem:[%s1641 + $0x61] sm:$0xff] %v1619
      %1649 = vst [vmem:[%s1641 + $0x71] sm:$0xff] %v1620
      %v1650 = vld [vmem:[#allocation2] sm:$0xff]
      %v1651 = vld [vmem:[#allocation2 + $0x10] sm:$0xff]
      %v1652 = vld [vmem:[#allocation2 + $0x20] sm:$0xff]
      %v1653 = vld [vmem:[#allocation2 + $0x30] sm:$0xff]
      %v1654 = vld [vmem:[#allocation2 + $0x40] sm:$0xff]
      %v1655 = vld [vmem:[#allocation2 + $0x50] sm:$0xff]
      %v1656 = vld [vmem:[#allocation2 + $0x60] sm:$0xff]
      %v1657 = vld [vmem:[#allocation2 + $0x70] sm:$0xff]
      %v1658 = vpack.c.bf16 %v1651, %v1650
      %v1659 = vpack.c.bf16 %v1653, %v1652
      %v1660 = vpack.c.bf16 %v1655, %v1654
      %v1661 = vpack.c.bf16 %v1657, %v1656
      %v1662 = vld [vmem:[%s3] sm:$0xf]
      %v1663 = vld [vmem:[%s3 + $0x4] sm:$0xf]
      %v1664 = vld [vmem:[%s3 + $0x8] sm:$0xf]
      %v1665 = vld [vmem:[%s3 + $0xc] sm:$0xf]
      %v1666 = vld [vmem:[%s3 + $0x10] sm:$0xf]
      %v1667 = vld [vmem:[%s3 + $0x14] sm:$0xf]
      %v1668 = vld [vmem:[%s3 + $0x18] sm:$0xf]
      %v1669 = vld [vmem:[%s3 + $0x1c] sm:$0xf]
      %v1670 = vld [vmem:[%s3 + $0x20] sm:$0xf]
      %v1671 = vld [vmem:[%s3 + $0x24] sm:$0xf]
      %v1672 = vld [vmem:[%s3 + $0x28] sm:$0xf]
      %v1673 = vld [vmem:[%s3 + $0x2c] sm:$0xf]
      %v1674 = vld [vmem:[%s3 + $0x30] sm:$0xf]
      %v1675 = vld [vmem:[%s3 + $0x34] sm:$0xf]
      %v1676 = vld [vmem:[%s3 + $0x38] sm:$0xf]
      %v1677 = vld [vmem:[%s3 + $0x3c] sm:$0xf]
      %v1678 = vld [vmem:[#allocation2 + $0x1] sm:$0xff]
      %v1679 = vld [vmem:[#allocation2 + $0x11] sm:$0xff]
      %v1680 = vld [vmem:[#allocation2 + $0x21] sm:$0xff]
      %v1681 = vld [vmem:[#allocation2 + $0x31] sm:$0xff]
      %v1682 = vld [vmem:[#allocation2 + $0x41] sm:$0xff]
      %v1683 = vld [vmem:[#allocation2 + $0x51] sm:$0xff]
      %v1684 = vld [vmem:[#allocation2 + $0x61] sm:$0xff]
      %v1685 = vld [vmem:[#allocation2 + $0x71] sm:$0xff]
      %v1686 = vpack.c.bf16 %v1679, %v1678
      %v1687 = vpack.c.bf16 %v1681, %v1680
      %v1688 = vpack.c.bf16 %v1683, %v1682
      %v1689 = vpack.c.bf16 %v1685, %v1684
      %s1690 = scalar_lea.vmem %s3, 64
      %v1691 = vld [vmem:[%s1690] sm:$0xf]
      %v1692 = vld [vmem:[%s1690 + $0x4] sm:$0xf]
      %v1693 = vld [vmem:[%s1690 + $0x8] sm:$0xf]
      %v1694 = vld [vmem:[%s1690 + $0xc] sm:$0xf]
      %v1695 = vld [vmem:[%s1690 + $0x10] sm:$0xf]
      %v1696 = vld [vmem:[%s1690 + $0x14] sm:$0xf]
      %v1697 = vld [vmem:[%s1690 + $0x18] sm:$0xf]
      %v1698 = vld [vmem:[%s1690 + $0x1c] sm:$0xf]
      %v1699 = vld [vmem:[%s1690 + $0x20] sm:$0xf]
      %v1700 = vld [vmem:[%s1690 + $0x24] sm:$0xf]
      %v1701 = vld [vmem:[%s1690 + $0x28] sm:$0xf]
      %v1702 = vld [vmem:[%s1690 + $0x2c] sm:$0xf]
      %v1703 = vld [vmem:[%s1690 + $0x30] sm:$0xf]
      %v1704 = vld [vmem:[%s1690 + $0x34] sm:$0xf]
      %v1705 = vld [vmem:[%s1690 + $0x38] sm:$0xf]
      %v1706 = vld [vmem:[%s1690 + $0x3c] sm:$0xf]
      %v1723 = vunpack.c.l.b16 %v1691
      %v1724 = vunpack.c.l.b16 %v1692
      %v1725 = vunpack.c.l.b16 %v1693
      %v1726 = vunpack.c.l.b16 %v1694
      %v1727 = vunpack.c.l.b16 %v1695
      %v1728 = vunpack.c.l.b16 %v1696
      %v1729 = vunpack.c.l.b16 %v1697
      %v1730 = vunpack.c.l.b16 %v1698
      %v1731 = vunpack.c.l.b16 %v1699
      %v1732 = vunpack.c.l.b16 %v1700
      %v1733 = vunpack.c.l.b16 %v1701
      %v1734 = vunpack.c.l.b16 %v1702
      %v1735 = vunpack.c.l.b16 %v1703
      %v1736 = vunpack.c.l.b16 %v1704
      %v1737 = vunpack.c.l.b16 %v1705
      %v1738 = vunpack.c.l.b16 %v1706
      %v1739 = vpack.c.b16 %v1724, %v1723
      %v1740 = vpack.c.b16 %v1726, %v1725
      %v1741 = vpack.c.b16 %v1728, %v1727
      %v1742 = vpack.c.b16 %v1730, %v1729
      %v1743 = vpack.c.b16 %v1732, %v1731
      %v1744 = vpack.c.b16 %v1734, %v1733
      %v1745 = vpack.c.b16 %v1736, %v1735
      %v1746 = vpack.c.b16 %v1738, %v1737
      %1755 = vmatprep.subr.bf16.mxu0 0
      %1756 = vmatpush1.bf16.msra.mxu0 %v1739
      %1757 = vmatprep.subr.bf16.mxu0 0
      %1758 = vmatpush1.bf16.msra.mxu0 %v1740
      %1759 = vmatprep.subr.bf16.mxu0 0
      %1760 = vmatpush1.bf16.msra.mxu0 %v1741
      %1761 = vmatprep.subr.bf16.mxu0 0
      %1762 = vmatpush1.bf16.msra.mxu0 %v1742
      %1763 = vmatprep.subr.bf16.mxu0 0
      %1764 = vmatpush1.bf16.msra.mxu0 %v1743
      %1765 = vmatprep.subr.bf16.mxu0 0
      %1766 = vmatpush1.bf16.msra.mxu0 %v1744
      %1767 = vmatprep.subr.bf16.mxu0 0
      %1768 = vmatpush1.bf16.msra.mxu0 %v1745
      %1769 = vmatprep.subr.bf16.mxu0 0
      %1770 = vmatpush1.bf16.msra.mxu0 %v1746
      %1771 = vmatprep.subr.bf16.mxu0 0
      %1772 = vmatpush1.bf16.msra.mxu0 0
      %1773 = vmatprep.subr.bf16.mxu0 0
      %1774 = vmatpush1.bf16.msra.mxu0 0
      %1775 = vmatprep.subr.bf16.mxu0 0
      %1776 = vmatpush1.bf16.msra.mxu0 0
      %1777 = vmatprep.subr.bf16.mxu0 0
      %1778 = vmatpush1.bf16.msra.mxu0 0
      %1779 = vmatprep.subr.bf16.mxu0 0
      %1780 = vmatpush1.bf16.msra.mxu0 0
      %1781 = vmatprep.subr.bf16.mxu0 0
      %1782 = vmatpush1.bf16.msra.mxu0 0
      %1783 = vmatprep.subr.bf16.mxu0 0
      %1784 = vmatpush1.bf16.msra.mxu0 0
      %1785 = vmatprep.subr.bf16.mxu0 0
      %1786 = vmatpush1.bf16.msra.mxu0 0
      %1787 = vmatprep.mubr.bf16.mxu0 0
      %1788 = vmatmul.mubr.bf16.gmra.mrb[0].mxu0 %v1686
      %v1789 = vpop.f32.mrb[0].mxu0
      %v1790 = vadd.f32 0.0, %v1789
      %v1791 = vpop.f32.mrb[0].mxu0
      %v1792 = vpop.f32.mrb[0].mxu0
      %v1793 = vadd.f32 0.0, %v1792
      %v1794 = vpop.f32.mrb[0].mxu0
      %1795 = vmatprep.mubr.bf16.mxu0 0
      %1796 = vmatmul.mubr.bf16.gmra.mrb[0].mxu0 %v1687
      %v1797 = vpop.f32.mrb[0].mxu0
      %v1798 = vadd.f32 0.0, %v1797
      %v1799 = vpop.f32.mrb[0].mxu0
      %v1800 = vpop.f32.mrb[0].mxu0
      %v1801 = vadd.f32 0.0, %v1800
      %v1802 = vpop.f32.mrb[0].mxu0
      %1803 = vmatprep.mubr.bf16.mxu0 0
      %1804 = vmatmul.mubr.bf16.gmra.mrb[0].mxu0 %v1688
      %v1805 = vpop.f32.mrb[0].mxu0
      %v1806 = vadd.f32 0.0, %v1805
      %v1807 = vpop.f32.mrb[0].mxu0
      %v1808 = vpop.f32.mrb[0].mxu0
      %v1809 = vadd.f32 0.0, %v1808
      %v1810 = vpop.f32.mrb[0].mxu0
      %1811 = vmatprep.mubr.bf16.mxu0 0
      %1812 = vmatmul.mubr.bf16.gmra.mrb[0].mxu0 %v1689
      %v1813 = vpop.f32.mrb[0].mxu0
      %v1814 = vadd.f32 0.0, %v1813
      %v1815 = vpop.f32.mrb[0].mxu0
      %v1816 = vpop.f32.mrb[0].mxu0
      %v1817 = vadd.f32 0.0, %v1816
      %v1818 = vpop.f32.mrb[0].mxu0
      %1819 = vdwg.mxu0
      %v1836 = vunpack.c.l.b16 %v1662
      %v1837 = vunpack.c.l.b16 %v1663
      %v1838 = vunpack.c.l.b16 %v1664
      %v1839 = vunpack.c.l.b16 %v1665
      %v1840 = vunpack.c.l.b16 %v1666
      %v1841 = vunpack.c.l.b16 %v1667
      %v1842 = vunpack.c.l.b16 %v1668
      %v1843 = vunpack.c.l.b16 %v1669
      %v1844 = vunpack.c.l.b16 %v1670
      %v1845 = vunpack.c.l.b16 %v1671
      %v1846 = vunpack.c.l.b16 %v1672
      %v1847 = vunpack.c.l.b16 %v1673
      %v1848 = vunpack.c.l.b16 %v1674
      %v1849 = vunpack.c.l.b16 %v1675
      %v1850 = vunpack.c.l.b16 %v1676
      %v1851 = vunpack.c.l.b16 %v1677
      %v1852 = vpack.c.b16 %v1837, %v1836
      %v1853 = vpack.c.b16 %v1839, %v1838
      %v1854 = vpack.c.b16 %v1841, %v1840
      %v1855 = vpack.c.b16 %v1843, %v1842
      %v1856 = vpack.c.b16 %v1845, %v1844
      %v1857 = vpack.c.b16 %v1847, %v1846
      %v1858 = vpack.c.b16 %v1849, %v1848
      %v1859 = vpack.c.b16 %v1851, %v1850
      %1868 = vmatprep.subr.bf16.mxu0 0
      %1869 = vmatpush1.bf16.msra.mxu0 %v1852
      %1870 = vmatprep.subr.bf16.mxu0 0
      %1871 = vmatpush1.bf16.msra.mxu0 %v1853
      %1872 = vmatprep.subr.bf16.mxu0 0
      %1873 = vmatpush1.bf16.msra.mxu0 %v1854
      %1874 = vmatprep.subr.bf16.mxu0 0
      %1875 = vmatpush1.bf16.msra.mxu0 %v1855
      %1876 = vmatprep.subr.bf16.mxu0 0
      %1877 = vmatpush1.bf16.msra.mxu0 %v1856
      %1878 = vmatprep.subr.bf16.mxu0 0
      %1879 = vmatpush1.bf16.msra.mxu0 %v1857
      %1880 = vmatprep.subr.bf16.mxu0 0
      %1881 = vmatpush1.bf16.msra.mxu0 %v1858
      %1882 = vmatprep.subr.bf16.mxu0 0
      %1883 = vmatpush1.bf16.msra.mxu0 %v1859
      %1884 = vmatprep.subr.bf16.mxu0 0
      %1885 = vmatpush1.bf16.msra.mxu0 0
      %1886 = vmatprep.subr.bf16.mxu0 0
      %1887 = vmatpush1.bf16.msra.mxu0 0
      %1888 = vmatprep.subr.bf16.mxu0 0
      %1889 = vmatpush1.bf16.msra.mxu0 0
      %1890 = vmatprep.subr.bf16.mxu0 0
      %1891 = vmatpush1.bf16.msra.mxu0 0
      %1892 = vmatprep.subr.bf16.mxu0 0
      %1893 = vmatpush1.bf16.msra.mxu0 0
      %1894 = vmatprep.subr.bf16.mxu0 0
      %1895 = vmatpush1.bf16.msra.mxu0 0
      %1896 = vmatprep.subr.bf16.mxu0 0
      %1897 = vmatpush1.bf16.msra.mxu0 0
      %1898 = vmatprep.subr.bf16.mxu0 0
      %1899 = vmatpush1.bf16.msra.mxu0 0
      %1900 = vmatprep.mubr.bf16.mxu0 0
      %1901 = vmatmul.mubr.bf16.gmra.mrb[0].mxu0 %v1658
      %v1902 = vpop.f32.mrb[0].mxu0
      %v1903 = vadd.f32 %v1790, %v1902
      %v1904 = vpop.f32.mrb[0].mxu0
      %v1905 = vpop.f32.mrb[0].mxu0
      %v1906 = vadd.f32 %v1793, %v1905
      %v1907 = vpop.f32.mrb[0].mxu0
      %1908 = vmatprep.mubr.bf16.mxu0 0
      %1909 = vmatmul.mubr.bf16.gmra.mrb[0].mxu0 %v1659
      %v1910 = vpop.f32.mrb[0].mxu0
      %v1911 = vadd.f32 %v1798, %v1910
      %v1912 = vpop.f32.mrb[0].mxu0
      %v1913 = vpop.f32.mrb[0].mxu0
      %v1914 = vadd.f32 %v1801, %v1913
      %v1915 = vpop.f32.mrb[0].mxu0
      %1916 = vmatprep.mubr.bf16.mxu0 0
      %1917 = vmatmul.mubr.bf16.gmra.mrb[0].mxu0 %v1660
      %v1918 = vpop.f32.mrb[0].mxu0
      %v1919 = vadd.f32 %v1806, %v1918
      %v1920 = vpop.f32.mrb[0].mxu0
      %v1921 = vpop.f32.mrb[0].mxu0
      %v1922 = vadd.f32 %v1809, %v1921
      %v1923 = vpop.f32.mrb[0].mxu0
      %1924 = vmatprep.mubr.bf16.mxu0 0
      %1925 = vmatmul.mubr.bf16.gmra.mrb[0].mxu0 %v1661
      %v1926 = vpop.f32.mrb[0].mxu0
      %v1927 = vadd.f32 %v1814, %v1926
      %v1928 = vpop.f32.mrb[0].mxu0
      %v1929 = vpop.f32.mrb[0].mxu0
      %v1930 = vadd.f32 %v1817, %v1929
      %v1931 = vpop.f32.mrb[0].mxu0
      %1932 = vdwg.mxu0
      %v1933 = vld [vmem:[#allocation2 + $0x2] sm:$0xff]
      %v1934 = vld [vmem:[#allocation2 + $0x12] sm:$0xff]
      %v1935 = vld [vmem:[#allocation2 + $0x22] sm:$0xff]
      %v1936 = vld [vmem:[#allocation2 + $0x32] sm:$0xff]
      %v1937 = vld [vmem:[#allocation2 + $0x42] sm:$0xff]
      %v1938 = vld [vmem:[#allocation2 + $0x52] sm:$0xff]
      %v1939 = vld [vmem:[#allocation2 + $0x62] sm:$0xff]
      %v1940 = vld [vmem:[#allocation2 + $0x72] sm:$0xff]
      %v1941 = vpack.c.bf16 %v1934, %v1933
      %v1942 = vpack.c.bf16 %v1936, %v1935
      %v1943 = vpack.c.bf16 %v1938, %v1937
      %v1944 = vpack.c.bf16 %v1940, %v1939
      %s1945 = scalar_lea.vmem %s3, 128
      %v1946 = vld [vmem:[%s1945] sm:$0xf]
      %v1947 = vld [vmem:[%s1945 + $0x4] sm:$0xf]
      %v1948 = vld [vmem:[%s1945 + $0x8] sm:$0xf]
      %v1949 = vld [vmem:[%s1945 + $0xc] sm:$0xf]
      %v1950 = vld [vmem:[%s1945 + $0x10] sm:$0xf]
      %v1951 = vld [vmem:[%s1945 + $0x14] sm:$0xf]
      %v1952 = vld [vmem:[%s1945 + $0x18] sm:$0xf]
      %v1953 = vld [vmem:[%s1945 + $0x1c] sm:$0xf]
      %v1954 = vld [vmem:[%s1945 + $0x20] sm:$0xf]
      %v1955 = vld [vmem:[%s1945 + $0x24] sm:$0xf]
      %v1956 = vld [vmem:[%s1945 + $0x28] sm:$0xf]
      %v1957 = vld [vmem:[%s1945 + $0x2c] sm:$0xf]
      %v1958 = vld [vmem:[%s1945 + $0x30] sm:$0xf]
      %v1959 = vld [vmem:[%s1945 + $0x34] sm:$0xf]
      %v1960 = vld [vmem:[%s1945 + $0x38] sm:$0xf]
      %v1961 = vld [vmem:[%s1945 + $0x3c] sm:$0xf]
      %v1978 = vunpack.c.l.b16 %v1946
      %v1979 = vunpack.c.l.b16 %v1947
      %v1980 = vunpack.c.l.b16 %v1948
      %v1981 = vunpack.c.l.b16 %v1949
      %v1982 = vunpack.c.l.b16 %v1950
      %v1983 = vunpack.c.l.b16 %v1951
      %v1984 = vunpack.c.l.b16 %v1952
      %v1985 = vunpack.c.l.b16 %v1953
      %v1986 = vunpack.c.l.b16 %v1954
      %v1987 = vunpack.c.l.b16 %v1955
      %v1988 = vunpack.c.l.b16 %v1956
      %v1989 = vunpack.c.l.b16 %v1957
      %v1990 = vunpack.c.l.b16 %v1958
      %v1991 = vunpack.c.l.b16 %v1959
      %v1992 = vunpack.c.l.b16 %v1960
      %v1993 = vunpack.c.l.b16 %v1961
      %v1994 = vpack.c.b16 %v1979, %v1978
      %v1995 = vpack.c.b16 %v1981, %v1980
      %v1996 = vpack.c.b16 %v1983, %v1982
      %v1997 = vpack.c.b16 %v1985, %v1984
      %v1998 = vpack.c.b16 %v1987, %v1986
      %v1999 = vpack.c.b16 %v1989, %v1988
      %v2000 = vpack.c.b16 %v1991, %v1990
      %v2001 = vpack.c.b16 %v1993, %v1992
      %2010 = vmatprep.subr.bf16.mxu0 0
      %2011 = vmatpush1.bf16.msra.mxu0 %v1994
      %2012 = vmatprep.subr.bf16.mxu0 0
      %2013 = vmatpush1.bf16.msra.mxu0 %v1995
      %2014 = vmatprep.subr.bf16.mxu0 0
      %2015 = vmatpush1.bf16.msra.mxu0 %v1996
      %2016 = vmatprep.subr.bf16.mxu0 0
      %2017 = vmatpush1.bf16.msra.mxu0 %v1997
      %2018 = vmatprep.subr.bf16.mxu0 0
      %2019 = vmatpush1.bf16.msra.mxu0 %v1998
      %2020 = vmatprep.subr.bf16.mxu0 0
      %2021 = vmatpush1.bf16.msra.mxu0 %v1999
      %2022 = vmatprep.subr.bf16.mxu0 0
      %2023 = vmatpush1.bf16.msra.mxu0 %v2000
      %2024 = vmatprep.subr.bf16.mxu0 0
      %2025 = vmatpush1.bf16.msra.mxu0 %v2001
      %2026 = vmatprep.subr.bf16.mxu0 0
      %2027 = vmatpush1.bf16.msra.mxu0 0
      %2028 = vmatprep.subr.bf16.mxu0 0
      %2029 = vmatpush1.bf16.msra.mxu0 0
      %2030 = vmatprep.subr.bf16.mxu0 0
      %2031 = vmatpush1.bf16.msra.mxu0 0
      %2032 = vmatprep.subr.bf16.mxu0 0
      %2033 = vmatpush1.bf16.msra.mxu0 0
      %2034 = vmatprep.subr.bf16.mxu0 0
      %2035 = vmatpush1.bf16.msra.mxu0 0
      %2036 = vmatprep.subr.bf16.mxu0 0
      %2037 = vmatpush1.bf16.msra.mxu0 0
      %2038 = vmatprep.subr.bf16.mxu0 0
      %2039 = vmatpush1.bf16.msra.mxu0 0
      %2040 = vmatprep.subr.bf16.mxu0 0
      %2041 = vmatpush1.bf16.msra.mxu0 0
      %2042 = vmatprep.mubr.bf16.mxu0 0
      %2043 = vmatmul.mubr.bf16.gmra.mrb[0].mxu0 %v1941
      %v2044 = vpop.f32.mrb[0].mxu0
      %v2045 = vadd.f32 0.0, %v2044
      %v2046 = vpop.f32.mrb[0].mxu0
      %v2047 = vpop.f32.mrb[0].mxu0
      %v2048 = vadd.f32 0.0, %v2047
      %v2049 = vpop.f32.mrb[0].mxu0
      %2050 = vmatprep.mubr.bf16.mxu0 0
      %2051 = vmatmul.mubr.bf16.gmra.mrb[0].mxu0 %v1942
      %v2052 = vpop.f32.mrb[0].mxu0
      %v2053 = vadd.f32 0.0, %v2052
      %v2054 = vpop.f32.mrb[0].mxu0
      %v2055 = vpop.f32.mrb[0].mxu0
      %v2056 = vadd.f32 0.0, %v2055
      %v2057 = vpop.f32.mrb[0].mxu0
      %2058 = vmatprep.mubr.bf16.mxu0 0
      %2059 = vmatmul.mubr.bf16.gmra.mrb[0].mxu0 %v1943
      %v2060 = vpop.f32.mrb[0].mxu0
      %v2061 = vadd.f32 0.0, %v2060
      %v2062 = vpop.f32.mrb[0].mxu0
      %v2063 = vpop.f32.mrb[0].mxu0
      %v2064 = vadd.f32 0.0, %v2063
      %v2065 = vpop.f32.mrb[0].mxu0
      %2066 = vmatprep.mubr.bf16.mxu0 0
      %2067 = vmatmul.mubr.bf16.gmra.mrb[0].mxu0 %v1944
      %v2068 = vpop.f32.mrb[0].mxu0
      %v2069 = vadd.f32 0.0, %v2068
      %v2070 = vpop.f32.mrb[0].mxu0
      %v2071 = vpop.f32.mrb[0].mxu0
      %v2072 = vadd.f32 0.0, %v2071
      %v2073 = vpop.f32.mrb[0].mxu0
      %2074 = vdwg.mxu0
      %v2075 = vadd.f32 %v1903, %v2045
      %v2076 = vadd.f32 %v1906, %v2048
      %v2077 = vadd.f32 %v1911, %v2053
      %v2078 = vadd.f32 %v1914, %v2056
      %v2079 = vadd.f32 %v1919, %v2061
      %v2080 = vadd.f32 %v1922, %v2064
      %v2081 = vadd.f32 %v1927, %v2069
      %v2082 = vadd.f32 %v1930, %v2072
      %v2083 = vld [vmem:[%s1641] sm:$0xff]
      %v2084 = vld [vmem:[%s1641 + $0x10] sm:$0xff]
      %v2085 = vld [vmem:[%s1641 + $0x20] sm:$0xff]
      %v2086 = vld [vmem:[%s1641 + $0x30] sm:$0xff]
      %v2087 = vld [vmem:[%s1641 + $0x40] sm:$0xff]
      %v2088 = vld [vmem:[%s1641 + $0x50] sm:$0xff]
      %v2089 = vld [vmem:[%s1641 + $0x60] sm:$0xff]
      %v2090 = vld [vmem:[%s1641 + $0x70] sm:$0xff]
      %v2091 = vpack.c.bf16 %v2084, %v2083
      %v2092 = vpack.c.bf16 %v2086, %v2085
      %v2093 = vpack.c.bf16 %v2088, %v2087
      %v2094 = vpack.c.bf16 %v2090, %v2089
      %s2095 = scalar_lea.vmem %s3, 192
      %v2096 = vld [vmem:[%s2095] sm:$0xf]
      %v2097 = vld [vmem:[%s2095 + $0x4] sm:$0xf]
      %v2098 = vld [vmem:[%s2095 + $0x8] sm:$0xf]
      %v2099 = vld [vmem:[%s2095 + $0xc] sm:$0xf]
      %v2100 = vld [vmem:[%s2095 + $0x10] sm:$0xf]
      %v2101 = vld [vmem:[%s2095 + $0x14] sm:$0xf]
      %v2102 = vld [vmem:[%s2095 + $0x18] sm:$0xf]
      %v2103 = vld [vmem:[%s2095 + $0x1c] sm:$0xf]
      %v2104 = vld [vmem:[%s2095 + $0x20] sm:$0xf]
      %v2105 = vld [vmem:[%s2095 + $0x24] sm:$0xf]
      %v2106 = vld [vmem:[%s2095 + $0x28] sm:$0xf]
      %v2107 = vld [vmem:[%s2095 + $0x2c] sm:$0xf]
      %v2108 = vld [vmem:[%s2095 + $0x30] sm:$0xf]
      %v2109 = vld [vmem:[%s2095 + $0x34] sm:$0xf]
      %v2110 = vld [vmem:[%s2095 + $0x38] sm:$0xf]
      %v2111 = vld [vmem:[%s2095 + $0x3c] sm:$0xf]
      %v2128 = vunpack.c.l.b16 %v2096
      %v2129 = vunpack.c.l.b16 %v2097
      %v2130 = vunpack.c.l.b16 %v2098
      %v2131 = vunpack.c.l.b16 %v2099
      %v2132 = vunpack.c.l.b16 %v2100
      %v2133 = vunpack.c.l.b16 %v2101
      %v2134 = vunpack.c.l.b16 %v2102
      %v2135 = vunpack.c.l.b16 %v2103
      %v2136 = vunpack.c.l.b16 %v2104
      %v2137 = vunpack.c.l.b16 %v2105
      %v2138 = vunpack.c.l.b16 %v2106
      %v2139 = vunpack.c.l.b16 %v2107
      %v2140 = vunpack.c.l.b16 %v2108
      %v2141 = vunpack.c.l.b16 %v2109
      %v2142 = vunpack.c.l.b16 %v2110
      %v2143 = vunpack.c.l.b16 %v2111
      %v2144 = vpack.c.b16 %v2129, %v2128
      %v2145 = vpack.c.b16 %v2131, %v2130
      %v2146 = vpack.c.b16 %v2133, %v2132
      %v2147 = vpack.c.b16 %v2135, %v2134
      %v2148 = vpack.c.b16 %v2137, %v2136
      %v2149 = vpack.c.b16 %v2139, %v2138
      %v2150 = vpack.c.b16 %v2141, %v2140
      %v2151 = vpack.c.b16 %v2143, %v2142
      %2160 = vmatprep.subr.bf16.mxu0 0
      %2161 = vmatpush1.bf16.msra.mxu0 %v2144
      %2162 = vmatprep.subr.bf16.mxu0 0
      %2163 = vmatpush1.bf16.msra.mxu0 %v2145
      %2164 = vmatprep.subr.bf16.mxu0 0
      %2165 = vmatpush1.bf16.msra.mxu0 %v2146
      %2166 = vmatprep.subr.bf16.mxu0 0
      %2167 = vmatpush1.bf16.msra.mxu0 %v2147
      %2168 = vmatprep.subr.bf16.mxu0 0
      %2169 = vmatpush1.bf16.msra.mxu0 %v2148
      %2170 = vmatprep.subr.bf16.mxu0 0
      %2171 = vmatpush1.bf16.msra.mxu0 %v2149
      %2172 = vmatprep.subr.bf16.mxu0 0
      %2173 = vmatpush1.bf16.msra.mxu0 %v2150
      %2174 = vmatprep.subr.bf16.mxu0 0
      %2175 = vmatpush1.bf16.msra.mxu0 %v2151
      %2176 = vmatprep.subr.bf16.mxu0 0
      %2177 = vmatpush1.bf16.msra.mxu0 0
      %2178 = vmatprep.subr.bf16.mxu0 0
      %2179 = vmatpush1.bf16.msra.mxu0 0
      %2180 = vmatprep.subr.bf16.mxu0 0
      %2181 = vmatpush1.bf16.msra.mxu0 0
      %2182 = vmatprep.subr.bf16.mxu0 0
      %2183 = vmatpush1.bf16.msra.mxu0 0
      %2184 = vmatprep.subr.bf16.mxu0 0
      %2185 = vmatpush1.bf16.msra.mxu0 0
      %2186 = vmatprep.subr.bf16.mxu0 0
      %2187 = vmatpush1.bf16.msra.mxu0 0
      %2188 = vmatprep.subr.bf16.mxu0 0
      %2189 = vmatpush1.bf16.msra.mxu0 0
      %2190 = vmatprep.subr.bf16.mxu0 0
      %2191 = vmatpush1.bf16.msra.mxu0 0
      %2192 = vmatprep.mubr.bf16.mxu0 0
      %2193 = vmatmul.mubr.bf16.gmra.mrb[0].mxu0 %v2091
      %v2194 = vpop.f32.mrb[0].mxu0
      %v2195 = vadd.f32 0.0, %v2194
      %v2196 = vpop.f32.mrb[0].mxu0
      %v2197 = vpop.f32.mrb[0].mxu0
      %v2198 = vadd.f32 0.0, %v2197
      %v2199 = vpop.f32.mrb[0].mxu0
      %2200 = vmatprep.mubr.bf16.mxu0 0
      %2201 = vmatmul.mubr.bf16.gmra.mrb[0].mxu0 %v2092
      %v2202 = vpop.f32.mrb[0].mxu0
      %v2203 = vadd.f32 0.0, %v2202
      %v2204 = vpop.f32.mrb[0].mxu0
      %v2205 = vpop.f32.mrb[0].mxu0
      %v2206 = vadd.f32 0.0, %v2205
      %v2207 = vpop.f32.mrb[0].mxu0
      %2208 = vmatprep.mubr.bf16.mxu0 0
      %2209 = vmatmul.mubr.bf16.gmra.mrb[0].mxu0 %v2093
      %v2210 = vpop.f32.mrb[0].mxu0
      %v2211 = vadd.f32 0.0, %v2210
      %v2212 = vpop.f32.mrb[0].mxu0
      %v2213 = vpop.f32.mrb[0].mxu0
      %v2214 = vadd.f32 0.0, %v2213
      %v2215 = vpop.f32.mrb[0].mxu0
      %2216 = vmatprep.mubr.bf16.mxu0 0
      %2217 = vmatmul.mubr.bf16.gmra.mrb[0].mxu0 %v2094
      %v2218 = vpop.f32.mrb[0].mxu0
      %v2219 = vadd.f32 0.0, %v2218
      %v2220 = vpop.f32.mrb[0].mxu0
      %v2221 = vpop.f32.mrb[0].mxu0
      %v2222 = vadd.f32 0.0, %v2221
      %v2223 = vpop.f32.mrb[0].mxu0
      %2224 = vdwg.mxu0
      %v2225 = vadd.f32 %v2075, %v2195
      %v2226 = vadd.f32 %v2076, %v2198
      %v2227 = vadd.f32 %v2077, %v2203
      %v2228 = vadd.f32 %v2078, %v2206
      %v2229 = vadd.f32 %v2079, %v2211
      %v2230 = vadd.f32 %v2080, %v2214
      %v2231 = vadd.f32 %v2081, %v2219
      %v2232 = vadd.f32 %v2082, %v2222
      %v2233 = vld [vmem:[%s1641 + $0x1] sm:$0xff]
      %v2234 = vld [vmem:[%s1641 + $0x11] sm:$0xff]
      %v2235 = vld [vmem:[%s1641 + $0x21] sm:$0xff]
      %v2236 = vld [vmem:[%s1641 + $0x31] sm:$0xff]
      %v2237 = vld [vmem:[%s1641 + $0x41] sm:$0xff]
      %v2238 = vld [vmem:[%s1641 + $0x51] sm:$0xff]
      %v2239 = vld [vmem:[%s1641 + $0x61] sm:$0xff]
      %v2240 = vld [vmem:[%s1641 + $0x71] sm:$0xff]
      %v2241 = vpack.c.bf16 %v2234, %v2233
      %v2242 = vpack.c.bf16 %v2236, %v2235
      %v2243 = vpack.c.bf16 %v2238, %v2237
      %v2244 = vpack.c.bf16 %v2240, %v2239
      %s2245 = scalar_lea.vmem %s3, 256
      %v2246 = vld [vmem:[%s2245] sm:$0xf]
      %v2247 = vld [vmem:[%s2245 + $0x4] sm:$0xf]
      %v2248 = vld [vmem:[%s2245 + $0x8] sm:$0xf]
      %v2249 = vld [vmem:[%s2245 + $0xc] sm:$0xf]
      %v2250 = vld [vmem:[%s2245 + $0x10] sm:$0xf]
      %v2251 = vld [vmem:[%s2245 + $0x14] sm:$0xf]
      %v2252 = vld [vmem:[%s2245 + $0x18] sm:$0xf]
      %v2253 = vld [vmem:[%s2245 + $0x1c] sm:$0xf]
      %v2254 = vld [vmem:[%s2245 + $0x20] sm:$0xf]
      %v2255 = vld [vmem:[%s2245 + $0x24] sm:$0xf]
      %v2256 = vld [vmem:[%s2245 + $0x28] sm:$0xf]
      %v2257 = vld [vmem:[%s2245 + $0x2c] sm:$0xf]
      %v2258 = vld [vmem:[%s2245 + $0x30] sm:$0xf]
      %v2259 = vld [vmem:[%s2245 + $0x34] sm:$0xf]
      %v2260 = vld [vmem:[%s2245 + $0x38] sm:$0xf]
      %v2261 = vld [vmem:[%s2245 + $0x3c] sm:$0xf]
      %v2278 = vunpack.c.l.b16 %v2246
      %v2279 = vunpack.c.l.b16 %v2247
      %v2280 = vunpack.c.l.b16 %v2248
      %v2281 = vunpack.c.l.b16 %v2249
      %v2282 = vunpack.c.l.b16 %v2250
      %v2283 = vunpack.c.l.b16 %v2251
      %v2284 = vunpack.c.l.b16 %v2252
      %v2285 = vunpack.c.l.b16 %v2253
      %v2286 = vunpack.c.l.b16 %v2254
      %v2287 = vunpack.c.l.b16 %v2255
      %v2288 = vunpack.c.l.b16 %v2256
      %v2289 = vunpack.c.l.b16 %v2257
      %v2290 = vunpack.c.l.b16 %v2258
      %v2291 = vunpack.c.l.b16 %v2259
      %v2292 = vunpack.c.l.b16 %v2260
      %v2293 = vunpack.c.l.b16 %v2261
      %v2294 = vpack.c.b16 %v2279, %v2278
      %v2295 = vpack.c.b16 %v2281, %v2280
      %v2296 = vpack.c.b16 %v2283, %v2282
      %v2297 = vpack.c.b16 %v2285, %v2284
      %v2298 = vpack.c.b16 %v2287, %v2286
      %v2299 = vpack.c.b16 %v2289, %v2288
      %v2300 = vpack.c.b16 %v2291, %v2290
      %v2301 = vpack.c.b16 %v2293, %v2292
      %2310 = vmatprep.subr.bf16.mxu0 0
      %2311 = vmatpush1.bf16.msra.mxu0 %v2294
      %2312 = vmatprep.subr.bf16.mxu0 0
      %2313 = vmatpush1.bf16.msra.mxu0 %v2295
      %2314 = vmatprep.subr.bf16.mxu0 0
      %2315 = vmatpush1.bf16.msra.mxu0 %v2296
      %2316 = vmatprep.subr.bf16.mxu0 0
      %2317 = vmatpush1.bf16.msra.mxu0 %v2297
      %2318 = vmatprep.subr.bf16.mxu0 0
      %2319 = vmatpush1.bf16.msra.mxu0 %v2298
      %2320 = vmatprep.subr.bf16.mxu0 0
      %2321 = vmatpush1.bf16.msra.mxu0 %v2299
      %2322 = vmatprep.subr.bf16.mxu0 0
      %2323 = vmatpush1.bf16.msra.mxu0 %v2300
      %2324 = vmatprep.subr.bf16.mxu0 0
      %2325 = vmatpush1.bf16.msra.mxu0 %v2301
      %2326 = vmatprep.subr.bf16.mxu0 0
      %2327 = vmatpush1.bf16.msra.mxu0 0
      %2328 = vmatprep.subr.bf16.mxu0 0
      %2329 = vmatpush1.bf16.msra.mxu0 0
      %2330 = vmatprep.subr.bf16.mxu0 0
      %2331 = vmatpush1.bf16.msra.mxu0 0
      %2332 = vmatprep.subr.bf16.mxu0 0
      %2333 = vmatpush1.bf16.msra.mxu0 0
      %2334 = vmatprep.subr.bf16.mxu0 0
      %2335 = vmatpush1.bf16.msra.mxu0 0
      %2336 = vmatprep.subr.bf16.mxu0 0
      %2337 = vmatpush1.bf16.msra.mxu0 0
      %2338 = vmatprep.subr.bf16.mxu0 0
      %2339 = vmatpush1.bf16.msra.mxu0 0
      %2340 = vmatprep.subr.bf16.mxu0 0
      %2341 = vmatpush1.bf16.msra.mxu0 0
      %2342 = vmatprep.mubr.bf16.mxu0 0
      %2343 = vmatmul.mubr.bf16.gmra.mrb[0].mxu0 %v2241
      %v2344 = vpop.f32.mrb[0].mxu0
      %v2345 = vadd.f32 0.0, %v2344
      %v2346 = vpop.f32.mrb[0].mxu0
      %v2347 = vpop.f32.mrb[0].mxu0
      %v2348 = vadd.f32 0.0, %v2347
      %v2349 = vpop.f32.mrb[0].mxu0
      %2350 = vmatprep.mubr.bf16.mxu0 0
      %2351 = vmatmul.mubr.bf16.gmra.mrb[0].mxu0 %v2242
      %v2352 = vpop.f32.mrb[0].mxu0
      %v2353 = vadd.f32 0.0, %v2352
      %v2354 = vpop.f32.mrb[0].mxu0
      %v2355 = vpop.f32.mrb[0].mxu0
      %v2356 = vadd.f32 0.0, %v2355
      %v2357 = vpop.f32.mrb[0].mxu0
      %2358 = vmatprep.mubr.bf16.mxu0 0
      %2359 = vmatmul.mubr.bf16.gmra.mrb[0].mxu0 %v2243
      %v2360 = vpop.f32.mrb[0].mxu0
      %v2361 = vadd.f32 0.0, %v2360
      %v2362 = vpop.f32.mrb[0].mxu0
      %v2363 = vpop.f32.mrb[0].mxu0
      %v2364 = vadd.f32 0.0, %v2363
      %v2365 = vpop.f32.mrb[0].mxu0
      %2366 = vmatprep.mubr.bf16.mxu0 0
      %2367 = vmatmul.mubr.bf16.gmra.mrb[0].mxu0 %v2244
      %v2368 = vpop.f32.mrb[0].mxu0
      %v2369 = vadd.f32 0.0, %v2368
      %v2370 = vpop.f32.mrb[0].mxu0
      %v2371 = vpop.f32.mrb[0].mxu0
      %v2372 = vadd.f32 0.0, %v2371
      %v2373 = vpop.f32.mrb[0].mxu0
      %2374 = vdwg.mxu0
      %v2375 = vadd.f32 %v2225, %v2345
      %v2376 = vadd.f32 %v2226, %v2348
      %v2377 = vadd.f32 %v2227, %v2353
      %v2378 = vadd.f32 %v2228, %v2356
      %v2379 = vadd.f32 %v2229, %v2361
      %v2380 = vadd.f32 %v2230, %v2364
      %v2381 = vadd.f32 %v2231, %v2369
      %v2382 = vadd.f32 %v2232, %v2372
      %v2383 = vld [vmem:[%s1641 + $0x2] sm:$0xff]
      %v2384 = vld [vmem:[%s1641 + $0x12] sm:$0xff]
      %v2385 = vld [vmem:[%s1641 + $0x22] sm:$0xff]
      %v2386 = vld [vmem:[%s1641 + $0x32] sm:$0xff]
      %v2387 = vld [vmem:[%s1641 + $0x42] sm:$0xff]
      %v2388 = vld [vmem:[%s1641 + $0x52] sm:$0xff]
      %v2389 = vld [vmem:[%s1641 + $0x62] sm:$0xff]
      %v2390 = vld [vmem:[%s1641 + $0x72] sm:$0xff]
      %v2391 = vpack.c.bf16 %v2384, %v2383
      %v2392 = vpack.c.bf16 %v2386, %v2385
      %v2393 = vpack.c.bf16 %v2388, %v2387
      %v2394 = vpack.c.bf16 %v2390, %v2389
      %s2395 = scalar_lea.vmem %s3, 320
      %v2396 = vld [vmem:[%s2395] sm:$0xf]
      %v2397 = vld [vmem:[%s2395 + $0x4] sm:$0xf]
      %v2398 = vld [vmem:[%s2395 + $0x8] sm:$0xf]
      %v2399 = vld [vmem:[%s2395 + $0xc] sm:$0xf]
      %v2400 = vld [vmem:[%s2395 + $0x10] sm:$0xf]
      %v2401 = vld [vmem:[%s2395 + $0x14] sm:$0xf]
      %v2402 = vld [vmem:[%s2395 + $0x18] sm:$0xf]
      %v2403 = vld [vmem:[%s2395 + $0x1c] sm:$0xf]
      %v2404 = vld [vmem:[%s2395 + $0x20] sm:$0xf]
      %v2405 = vld [vmem:[%s2395 + $0x24] sm:$0xf]
      %v2406 = vld [vmem:[%s2395 + $0x28] sm:$0xf]
      %v2407 = vld [vmem:[%s2395 + $0x2c] sm:$0xf]
      %v2408 = vld [vmem:[%s2395 + $0x30] sm:$0xf]
      %v2409 = vld [vmem:[%s2395 + $0x34] sm:$0xf]
      %v2410 = vld [vmem:[%s2395 + $0x38] sm:$0xf]
      %v2411 = vld [vmem:[%s2395 + $0x3c] sm:$0xf]
      %v2428 = vunpack.c.l.b16 %v2396
      %v2429 = vunpack.c.l.b16 %v2397
      %v2430 = vunpack.c.l.b16 %v2398
      %v2431 = vunpack.c.l.b16 %v2399
      %v2432 = vunpack.c.l.b16 %v2400
      %v2433 = vunpack.c.l.b16 %v2401
      %v2434 = vunpack.c.l.b16 %v2402
      %v2435 = vunpack.c.l.b16 %v2403
      %v2436 = vunpack.c.l.b16 %v2404
      %v2437 = vunpack.c.l.b16 %v2405
      %v2438 = vunpack.c.l.b16 %v2406
      %v2439 = vunpack.c.l.b16 %v2407
      %v2440 = vunpack.c.l.b16 %v2408
      %v2441 = vunpack.c.l.b16 %v2409
      %v2442 = vunpack.c.l.b16 %v2410
      %v2443 = vunpack.c.l.b16 %v2411
      %v2444 = vpack.c.b16 %v2429, %v2428
      %v2445 = vpack.c.b16 %v2431, %v2430
      %v2446 = vpack.c.b16 %v2433, %v2432
      %v2447 = vpack.c.b16 %v2435, %v2434
      %v2448 = vpack.c.b16 %v2437, %v2436
      %v2449 = vpack.c.b16 %v2439, %v2438
      %v2450 = vpack.c.b16 %v2441, %v2440
      %v2451 = vpack.c.b16 %v2443, %v2442
      %2460 = vmatprep.subr.bf16.mxu0 0
      %2461 = vmatpush1.bf16.msra.mxu0 %v2444
      %2462 = vmatprep.subr.bf16.mxu0 0
      %2463 = vmatpush1.bf16.msra.mxu0 %v2445
      %2464 = vmatprep.subr.bf16.mxu0 0
      %2465 = vmatpush1.bf16.msra.mxu0 %v2446
      %2466 = vmatprep.subr.bf16.mxu0 0
      %2467 = vmatpush1.bf16.msra.mxu0 %v2447
      %2468 = vmatprep.subr.bf16.mxu0 0
      %2469 = vmatpush1.bf16.msra.mxu0 %v2448
      %2470 = vmatprep.subr.bf16.mxu0 0
      %2471 = vmatpush1.bf16.msra.mxu0 %v2449
      %2472 = vmatprep.subr.bf16.mxu0 0
      %2473 = vmatpush1.bf16.msra.mxu0 %v2450
      %2474 = vmatprep.subr.bf16.mxu0 0
      %2475 = vmatpush1.bf16.msra.mxu0 %v2451
      %2476 = vmatprep.subr.bf16.mxu0 0
      %2477 = vmatpush1.bf16.msra.mxu0 0
      %2478 = vmatprep.subr.bf16.mxu0 0
      %2479 = vmatpush1.bf16.msra.mxu0 0
      %2480 = vmatprep.subr.bf16.mxu0 0
      %2481 = vmatpush1.bf16.msra.mxu0 0
      %2482 = vmatprep.subr.bf16.mxu0 0
      %2483 = vmatpush1.bf16.msra.mxu0 0
      %2484 = vmatprep.subr.bf16.mxu0 0
      %2485 = vmatpush1.bf16.msra.mxu0 0
      %2486 = vmatprep.subr.bf16.mxu0 0
      %2487 = vmatpush1.bf16.msra.mxu0 0
      %2488 = vmatprep.subr.bf16.mxu0 0
      %2489 = vmatpush1.bf16.msra.mxu0 0
      %2490 = vmatprep.subr.bf16.mxu0 0
      %2491 = vmatpush1.bf16.msra.mxu0 0
      %2492 = vmatprep.mubr.bf16.mxu0 0
      %2493 = vmatmul.mubr.bf16.gmra.mrb[0].mxu0 %v2391
      %v2494 = vpop.f32.mrb[0].mxu0
      %v2495 = vadd.f32 0.0, %v2494
      %v2496 = vpop.f32.mrb[0].mxu0
      %v2497 = vpop.f32.mrb[0].mxu0
      %v2498 = vadd.f32 0.0, %v2497
      %v2499 = vpop.f32.mrb[0].mxu0
      %2500 = vmatprep.mubr.bf16.mxu0 0
      %2501 = vmatmul.mubr.bf16.gmra.mrb[0].mxu0 %v2392
      %v2502 = vpop.f32.mrb[0].mxu0
      %v2503 = vadd.f32 0.0, %v2502
      %v2504 = vpop.f32.mrb[0].mxu0
      %v2505 = vpop.f32.mrb[0].mxu0
      %v2506 = vadd.f32 0.0, %v2505
      %v2507 = vpop.f32.mrb[0].mxu0
      %2508 = vmatprep.mubr.bf16.mxu0 0
      %2509 = vmatmul.mubr.bf16.gmra.mrb[0].mxu0 %v2393
      %v2510 = vpop.f32.mrb[0].mxu0
      %v2511 = vadd.f32 0.0, %v2510
      %v2512 = vpop.f32.mrb[0].mxu0
      %v2513 = vpop.f32.mrb[0].mxu0
      %v2514 = vadd.f32 0.0, %v2513
      %v2515 = vpop.f32.mrb[0].mxu0
      %2516 = vmatprep.mubr.bf16.mxu0 0
      %2517 = vmatmul.mubr.bf16.gmra.mrb[0].mxu0 %v2394
      %v2518 = vpop.f32.mrb[0].mxu0
      %v2519 = vadd.f32 0.0, %v2518
      %v2520 = vpop.f32.mrb[0].mxu0
      %v2521 = vpop.f32.mrb[0].mxu0
      %v2522 = vadd.f32 0.0, %v2521
      %v2523 = vpop.f32.mrb[0].mxu0
      %2524 = vdwg.mxu0
      %v2525 = vadd.f32 %v2375, %v2495
      %v2526 = vadd.f32 %v2376, %v2498
      %v2527 = vadd.f32 %v2377, %v2503
      %v2528 = vadd.f32 %v2378, %v2506
      %v2529 = vadd.f32 %v2379, %v2511
      %v2530 = vadd.f32 %v2380, %v2514
      %v2531 = vadd.f32 %v2381, %v2519
      %v2532 = vadd.f32 %v2382, %v2522
      %s2533 = scalar_lea.vmem [#allocation2], 32
      %v2534 = vld [vmem:[%s2533] sm:$0xff]
      %v2535 = vld [vmem:[%s2533 + $0x10] sm:$0xff]
      %v2536 = vld [vmem:[%s2533 + $0x20] sm:$0xff]
      %v2537 = vld [vmem:[%s2533 + $0x30] sm:$0xff]
      %v2538 = vld [vmem:[%s2533 + $0x40] sm:$0xff]
      %v2539 = vld [vmem:[%s2533 + $0x50] sm:$0xff]
      %v2540 = vld [vmem:[%s2533 + $0x60] sm:$0xff]
      %v2541 = vld [vmem:[%s2533 + $0x70] sm:$0xff]
      %v2542 = vpack.c.bf16 %v2535, %v2534
      %v2543 = vpack.c.bf16 %v2537, %v2536
      %v2544 = vpack.c.bf16 %v2539, %v2538
      %v2545 = vpack.c.bf16 %v2541, %v2540
      %s2546 = scalar_lea.vmem %s3, 384
      %v2547 = vld [vmem:[%s2546] sm:$0xf]
      %v2548 = vld [vmem:[%s2546 + $0x4] sm:$0xf]
      %v2549 = vld [vmem:[%s2546 + $0x8] sm:$0xf]
      %v2550 = vld [vmem:[%s2546 + $0xc] sm:$0xf]
      %v2551 = vld [vmem:[%s2546 + $0x10] sm:$0xf]
      %v2552 = vld [vmem:[%s2546 + $0x14] sm:$0xf]
      %v2553 = vld [vmem:[%s2546 + $0x18] sm:$0xf]
      %v2554 = vld [vmem:[%s2546 + $0x1c] sm:$0xf]
      %v2555 = vld [vmem:[%s2546 + $0x20] sm:$0xf]
      %v2556 = vld [vmem:[%s2546 + $0x24] sm:$0xf]
      %v2557 = vld [vmem:[%s2546 + $0x28] sm:$0xf]
      %v2558 = vld [vmem:[%s2546 + $0x2c] sm:$0xf]
      %v2559 = vld [vmem:[%s2546 + $0x30] sm:$0xf]
      %v2560 = vld [vmem:[%s2546 + $0x34] sm:$0xf]
      %v2561 = vld [vmem:[%s2546 + $0x38] sm:$0xf]
      %v2562 = vld [vmem:[%s2546 + $0x3c] sm:$0xf]
      %v2579 = vunpack.c.l.b16 %v2547
      %v2580 = vunpack.c.l.b16 %v2548
      %v2581 = vunpack.c.l.b16 %v2549
      %v2582 = vunpack.c.l.b16 %v2550
      %v2583 = vunpack.c.l.b16 %v2551
      %v2584 = vunpack.c.l.b16 %v2552
      %v2585 = vunpack.c.l.b16 %v2553
      %v2586 = vunpack.c.l.b16 %v2554
      %v2587 = vunpack.c.l.b16 %v2555
      %v2588 = vunpack.c.l.b16 %v2556
      %v2589 = vunpack.c.l.b16 %v2557
      %v2590 = vunpack.c.l.b16 %v2558
      %v2591 = vunpack.c.l.b16 %v2559
      %v2592 = vunpack.c.l.b16 %v2560
      %v2593 = vunpack.c.l.b16 %v2561
      %v2594 = vunpack.c.l.b16 %v2562
      %v2595 = vpack.c.b16 %v2580, %v2579
      %v2596 = vpack.c.b16 %v2582, %v2581
      %v2597 = vpack.c.b16 %v2584, %v2583
      %v2598 = vpack.c.b16 %v2586, %v2585
      %v2599 = vpack.c.b16 %v2588, %v2587
      %v2600 = vpack.c.b16 %v2590, %v2589
      %v2601 = vpack.c.b16 %v2592, %v2591
      %v2602 = vpack.c.b16 %v2594, %v2593
      %2611 = vmatprep.subr.bf16.mxu0 0
      %2612 = vmatpush1.bf16.msra.mxu0 %v2595
      %2613 = vmatprep.subr.bf16.mxu0 0
      %2614 = vmatpush1.bf16.msra.mxu0 %v2596
      %2615 = vmatprep.subr.bf16.mxu0 0
      %2616 = vmatpush1.bf16.msra.mxu0 %v2597
      %2617 = vmatprep.subr.bf16.mxu0 0
      %2618 = vmatpush1.bf16.msra.mxu0 %v2598
      %2619 = vmatprep.subr.bf16.mxu0 0
      %2620 = vmatpush1.bf16.msra.mxu0 %v2599
      %2621 = vmatprep.subr.bf16.mxu0 0
      %2622 = vmatpush1.bf16.msra.mxu0 %v2600
      %2623 = vmatprep.subr.bf16.mxu0 0
      %2624 = vmatpush1.bf16.msra.mxu0 %v2601
      %2625 = vmatprep.subr.bf16.mxu0 0
      %2626 = vmatpush1.bf16.msra.mxu0 %v2602
      %2627 = vmatprep.subr.bf16.mxu0 0
      %2628 = vmatpush1.bf16.msra.mxu0 0
      %2629 = vmatprep.subr.bf16.mxu0 0
      %2630 = vmatpush1.bf16.msra.mxu0 0
      %2631 = vmatprep.subr.bf16.mxu0 0
      %2632 = vmatpush1.bf16.msra.mxu0 0
      %2633 = vmatprep.subr.bf16.mxu0 0
      %2634 = vmatpush1.bf16.msra.mxu0 0
      %2635 = vmatprep.subr.bf16.mxu0 0
      %2636 = vmatpush1.bf16.msra.mxu0 0
      %2637 = vmatprep.subr.bf16.mxu0 0
      %2638 = vmatpush1.bf16.msra.mxu0 0
      %2639 = vmatprep.subr.bf16.mxu0 0
      %2640 = vmatpush1.bf16.msra.mxu0 0
      %2641 = vmatprep.subr.bf16.mxu0 0
      %2642 = vmatpush1.bf16.msra.mxu0 0
      %2643 = vmatprep.mubr.bf16.mxu0 0
      %2644 = vmatmul.mubr.bf16.gmra.mrb[0].mxu0 %v2542
      %v2645 = vpop.f32.mrb[0].mxu0
      %v2646 = vadd.f32 0.0, %v2645
      %v2647 = vpop.f32.mrb[0].mxu0
      %v2648 = vpop.f32.mrb[0].mxu0
      %v2649 = vadd.f32 0.0, %v2648
      %v2650 = vpop.f32.mrb[0].mxu0
      %2651 = vmatprep.mubr.bf16.mxu0 0
      %2652 = vmatmul.mubr.bf16.gmra.mrb[0].mxu0 %v2543
      %v2653 = vpop.f32.mrb[0].mxu0
      %v2654 = vadd.f32 0.0, %v2653
      %v2655 = vpop.f32.mrb[0].mxu0
      %v2656 = vpop.f32.mrb[0].mxu0
      %v2657 = vadd.f32 0.0, %v2656
      %v2658 = vpop.f32.mrb[0].mxu0
      %2659 = vmatprep.mubr.bf16.mxu0 0
      %2660 = vmatmul.mubr.bf16.gmra.mrb[0].mxu0 %v2544
      %v2661 = vpop.f32.mrb[0].mxu0
      %v2662 = vadd.f32 0.0, %v2661
      %v2663 = vpop.f32.mrb[0].mxu0
      %v2664 = vpop.f32.mrb[0].mxu0
      %v2665 = vadd.f32 0.0, %v2664
      %v2666 = vpop.f32.mrb[0].mxu0
      %2667 = vmatprep.mubr.bf16.mxu0 0
      %2668 = vmatmul.mubr.bf16.gmra.mrb[0].mxu0 %v2545
      %v2669 = vpop.f32.mrb[0].mxu0
      %v2670 = vadd.f32 0.0, %v2669
      %v2671 = vpop.f32.mrb[0].mxu0
      %v2672 = vpop.f32.mrb[0].mxu0
      %v2673 = vadd.f32 0.0, %v2672
      %v2674 = vpop.f32.mrb[0].mxu0
      %2675 = vdwg.mxu0
      %v2676 = vadd.f32 %v2525, %v2646
      %v2677 = vadd.f32 %v2526, %v2649
      %v2678 = vadd.f32 %v2527, %v2654
      %v2679 = vadd.f32 %v2528, %v2657
      %v2680 = vadd.f32 %v2529, %v2662
      %v2681 = vadd.f32 %v2530, %v2665
      %v2682 = vadd.f32 %v2531, %v2670
      %v2683 = vadd.f32 %v2532, %v2673
      %v2684 = vld [vmem:[%s2533 + $0x1] sm:$0xff]
      %v2685 = vld [vmem:[%s2533 + $0x11] sm:$0xff]
      %v2686 = vld [vmem:[%s2533 + $0x21] sm:$0xff]
      %v2687 = vld [vmem:[%s2533 + $0x31] sm:$0xff]
      %v2688 = vld [vmem:[%s2533 + $0x41] sm:$0xff]
      %v2689 = vld [vmem:[%s2533 + $0x51] sm:$0xff]
      %v2690 = vld [vmem:[%s2533 + $0x61] sm:$0xff]
      %v2691 = vld [vmem:[%s2533 + $0x71] sm:$0xff]
      %v2692 = vpack.c.bf16 %v2685, %v2684
      %v2693 = vpack.c.bf16 %v2687, %v2686
      %v2694 = vpack.c.bf16 %v2689, %v2688
      %v2695 = vpack.c.bf16 %v2691, %v2690
      %s2696 = scalar_lea.vmem %s3, 448
      %v2697 = vld [vmem:[%s2696] sm:$0xf]
      %v2698 = vld [vmem:[%s2696 + $0x4] sm:$0xf]
      %v2699 = vld [vmem:[%s2696 + $0x8] sm:$0xf]
      %v2700 = vld [vmem:[%s2696 + $0xc] sm:$0xf]
      %v2701 = vld [vmem:[%s2696 + $0x10] sm:$0xf]
      %v2702 = vld [vmem:[%s2696 + $0x14] sm:$0xf]
      %v2703 = vld [vmem:[%s2696 + $0x18] sm:$0xf]
      %v2704 = vld [vmem:[%s2696 + $0x1c] sm:$0xf]
      %v2705 = vld [vmem:[%s2696 + $0x20] sm:$0xf]
      %v2706 = vld [vmem:[%s2696 + $0x24] sm:$0xf]
      %v2707 = vld [vmem:[%s2696 + $0x28] sm:$0xf]
      %v2708 = vld [vmem:[%s2696 + $0x2c] sm:$0xf]
      %v2709 = vld [vmem:[%s2696 + $0x30] sm:$0xf]
      %v2710 = vld [vmem:[%s2696 + $0x34] sm:$0xf]
      %v2711 = vld [vmem:[%s2696 + $0x38] sm:$0xf]
      %v2712 = vld [vmem:[%s2696 + $0x3c] sm:$0xf]
      %v2729 = vunpack.c.l.b16 %v2697
      %v2730 = vunpack.c.l.b16 %v2698
      %v2731 = vunpack.c.l.b16 %v2699
      %v2732 = vunpack.c.l.b16 %v2700
      %v2733 = vunpack.c.l.b16 %v2701
      %v2734 = vunpack.c.l.b16 %v2702
      %v2735 = vunpack.c.l.b16 %v2703
      %v2736 = vunpack.c.l.b16 %v2704
      %v2737 = vunpack.c.l.b16 %v2705
      %v2738 = vunpack.c.l.b16 %v2706
      %v2739 = vunpack.c.l.b16 %v2707
      %v2740 = vunpack.c.l.b16 %v2708
      %v2741 = vunpack.c.l.b16 %v2709
      %v2742 = vunpack.c.l.b16 %v2710
      %v2743 = vunpack.c.l.b16 %v2711
      %v2744 = vunpack.c.l.b16 %v2712
      %v2745 = vpack.c.b16 %v2730, %v2729
      %v2746 = vpack.c.b16 %v2732, %v2731
      %v2747 = vpack.c.b16 %v2734, %v2733
      %v2748 = vpack.c.b16 %v2736, %v2735
      %v2749 = vpack.c.b16 %v2738, %v2737
      %v2750 = vpack.c.b16 %v2740, %v2739
      %v2751 = vpack.c.b16 %v2742, %v2741
      %v2752 = vpack.c.b16 %v2744, %v2743
      %2761 = vmatprep.subr.bf16.mxu0 0
      %2762 = vmatpush1.bf16.msra.mxu0 %v2745
      %2763 = vmatprep.subr.bf16.mxu0 0
      %2764 = vmatpush1.bf16.msra.mxu0 %v2746
      %2765 = vmatprep.subr.bf16.mxu0 0
      %2766 = vmatpush1.bf16.msra.mxu0 %v2747
      %2767 = vmatprep.subr.bf16.mxu0 0
      %2768 = vmatpush1.bf16.msra.mxu0 %v2748
      %2769 = vmatprep.subr.bf16.mxu0 0
      %2770 = vmatpush1.bf16.msra.mxu0 %v2749
      %2771 = vmatprep.subr.bf16.mxu0 0
      %2772 = vmatpush1.bf16.msra.mxu0 %v2750
      %2773 = vmatprep.subr.bf16.mxu0 0
      %2774 = vmatpush1.bf16.msra.mxu0 %v2751
      %2775 = vmatprep.subr.bf16.mxu0 0
      %2776 = vmatpush1.bf16.msra.mxu0 %v2752
      %2777 = vmatprep.subr.bf16.mxu0 0
      %2778 = vmatpush1.bf16.msra.mxu0 0
      %2779 = vmatprep.subr.bf16.mxu0 0
      %2780 = vmatpush1.bf16.msra.mxu0 0
      %2781 = vmatprep.subr.bf16.mxu0 0
      %2782 = vmatpush1.bf16.msra.mxu0 0
      %2783 = vmatprep.subr.bf16.mxu0 0
      %2784 = vmatpush1.bf16.msra.mxu0 0
      %2785 = vmatprep.subr.bf16.mxu0 0
      %2786 = vmatpush1.bf16.msra.mxu0 0
      %2787 = vmatprep.subr.bf16.mxu0 0
      %2788 = vmatpush1.bf16.msra.mxu0 0
      %2789 = vmatprep.subr.bf16.mxu0 0
      %2790 = vmatpush1.bf16.msra.mxu0 0
      %2791 = vmatprep.subr.bf16.mxu0 0
      %2792 = vmatpush1.bf16.msra.mxu0 0
      %2793 = vmatprep.mubr.bf16.mxu0 0
      %2794 = vmatmul.mubr.bf16.gmra.mrb[0].mxu0 %v2692
      %v2795 = vpop.f32.mrb[0].mxu0
      %v2796 = vadd.f32 0.0, %v2795
      %v2797 = vpop.f32.mrb[0].mxu0
      %v2798 = vpop.f32.mrb[0].mxu0
      %v2799 = vadd.f32 0.0, %v2798
      %v2800 = vpop.f32.mrb[0].mxu0
      %2801 = vmatprep.mubr.bf16.mxu0 0
      %2802 = vmatmul.mubr.bf16.gmra.mrb[0].mxu0 %v2693
      %v2803 = vpop.f32.mrb[0].mxu0
      %v2804 = vadd.f32 0.0, %v2803
      %v2805 = vpop.f32.mrb[0].mxu0
      %v2806 = vpop.f32.mrb[0].mxu0
      %v2807 = vadd.f32 0.0, %v2806
      %v2808 = vpop.f32.mrb[0].mxu0
      %2809 = vmatprep.mubr.bf16.mxu0 0
      %2810 = vmatmul.mubr.bf16.gmra.mrb[0].mxu0 %v2694
      %v2811 = vpop.f32.mrb[0].mxu0
      %v2812 = vadd.f32 0.0, %v2811
      %v2813 = vpop.f32.mrb[0].mxu0
      %v2814 = vpop.f32.mrb[0].mxu0
      %v2815 = vadd.f32 0.0, %v2814
      %v2816 = vpop.f32.mrb[0].mxu0
      %2817 = vmatprep.mubr.bf16.mxu0 0
      %2818 = vmatmul.mubr.bf16.gmra.mrb[0].mxu0 %v2695
      %v2819 = vpop.f32.mrb[0].mxu0
      %v2820 = vadd.f32 0.0, %v2819
      %v2821 = vpop.f32.mrb[0].mxu0
      %v2822 = vpop.f32.mrb[0].mxu0
      %v2823 = vadd.f32 0.0, %v2822
      %v2824 = vpop.f32.mrb[0].mxu0
      %2825 = vdwg.mxu0
      %v2826 = vadd.f32 %v2676, %v2796
      %v2827 = vadd.f32 %v2677, %v2799
      %v2828 = vadd.f32 %v2678, %v2804
      %v2829 = vadd.f32 %v2679, %v2807
      %v2830 = vadd.f32 %v2680, %v2812
      %v2831 = vadd.f32 %v2681, %v2815
      %v2832 = vadd.f32 %v2682, %v2820
      %v2833 = vadd.f32 %v2683, %v2823
      %v2834 = vld [vmem:[%s2533 + $0x2] sm:$0xff]
      %v2835 = vld [vmem:[%s2533 + $0x12] sm:$0xff]
      %v2836 = vld [vmem:[%s2533 + $0x22] sm:$0xff]
      %v2837 = vld [vmem:[%s2533 + $0x32] sm:$0xff]
      %v2838 = vld [vmem:[%s2533 + $0x42] sm:$0xff]
      %v2839 = vld [vmem:[%s2533 + $0x52] sm:$0xff]
      %v2840 = vld [vmem:[%s2533 + $0x62] sm:$0xff]
      %v2841 = vld [vmem:[%s2533 + $0x72] sm:$0xff]
      %v2842 = vpack.c.bf16 %v2835, %v2834
      %v2843 = vpack.c.bf16 %v2837, %v2836
      %v2844 = vpack.c.bf16 %v2839, %v2838
      %v2845 = vpack.c.bf16 %v2841, %v2840
      %s2846 = scalar_lea.vmem %s3, 512
      %v2847 = vld [vmem:[%s2846] sm:$0xf]
      %v2848 = vld [vmem:[%s2846 + $0x4] sm:$0xf]
      %v2849 = vld [vmem:[%s2846 + $0x8] sm:$0xf]
      %v2850 = vld [vmem:[%s2846 + $0xc] sm:$0xf]
      %v2851 = vld [vmem:[%s2846 + $0x10] sm:$0xf]
      %v2852 = vld [vmem:[%s2846 + $0x14] sm:$0xf]
      %v2853 = vld [vmem:[%s2846 + $0x18] sm:$0xf]
      %v2854 = vld [vmem:[%s2846 + $0x1c] sm:$0xf]
      %v2855 = vld [vmem:[%s2846 + $0x20] sm:$0xf]
      %v2856 = vld [vmem:[%s2846 + $0x24] sm:$0xf]
      %v2857 = vld [vmem:[%s2846 + $0x28] sm:$0xf]
      %v2858 = vld [vmem:[%s2846 + $0x2c] sm:$0xf]
      %v2859 = vld [vmem:[%s2846 + $0x30] sm:$0xf]
      %v2860 = vld [vmem:[%s2846 + $0x34] sm:$0xf]
      %v2861 = vld [vmem:[%s2846 + $0x38] sm:$0xf]
      %v2862 = vld [vmem:[%s2846 + $0x3c] sm:$0xf]
      %v2879 = vunpack.c.l.b16 %v2847
      %v2880 = vunpack.c.l.b16 %v2848
      %v2881 = vunpack.c.l.b16 %v2849
      %v2882 = vunpack.c.l.b16 %v2850
      %v2883 = vunpack.c.l.b16 %v2851
      %v2884 = vunpack.c.l.b16 %v2852
      %v2885 = vunpack.c.l.b16 %v2853
      %v2886 = vunpack.c.l.b16 %v2854
      %v2887 = vunpack.c.l.b16 %v2855
      %v2888 = vunpack.c.l.b16 %v2856
      %v2889 = vunpack.c.l.b16 %v2857
      %v2890 = vunpack.c.l.b16 %v2858
      %v2891 = vunpack.c.l.b16 %v2859
      %v2892 = vunpack.c.l.b16 %v2860
      %v2893 = vunpack.c.l.b16 %v2861
      %v2894 = vunpack.c.l.b16 %v2862
      %v2895 = vpack.c.b16 %v2880, %v2879
      %v2896 = vpack.c.b16 %v2882, %v2881
      %v2897 = vpack.c.b16 %v2884, %v2883
      %v2898 = vpack.c.b16 %v2886, %v2885
      %v2899 = vpack.c.b16 %v2888, %v2887
      %v2900 = vpack.c.b16 %v2890, %v2889
      %v2901 = vpack.c.b16 %v2892, %v2891
      %v2902 = vpack.c.b16 %v2894, %v2893
      %2911 = vmatprep.subr.bf16.mxu0 0
      %2912 = vmatpush1.bf16.msra.mxu0 %v2895
      %2913 = vmatprep.subr.bf16.mxu0 0
      %2914 = vmatpush1.bf16.msra.mxu0 %v2896
      %2915 = vmatprep.subr.bf16.mxu0 0
      %2916 = vmatpush1.bf16.msra.mxu0 %v2897
      %2917 = vmatprep.subr.bf16.mxu0 0
      %2918 = vmatpush1.bf16.msra.mxu0 %v2898
      %2919 = vmatprep.subr.bf16.mxu0 0
      %2920 = vmatpush1.bf16.msra.mxu0 %v2899
      %2921 = vmatprep.subr.bf16.mxu0 0
      %2922 = vmatpush1.bf16.msra.mxu0 %v2900
      %2923 = vmatprep.subr.bf16.mxu0 0
      %2924 = vmatpush1.bf16.msra.mxu0 %v2901
      %2925 = vmatprep.subr.bf16.mxu0 0
      %2926 = vmatpush1.bf16.msra.mxu0 %v2902
      %2927 = vmatprep.subr.bf16.mxu0 0
      %2928 = vmatpush1.bf16.msra.mxu0 0
      %2929 = vmatprep.subr.bf16.mxu0 0
      %2930 = vmatpush1.bf16.msra.mxu0 0
      %2931 = vmatprep.subr.bf16.mxu0 0
      %2932 = vmatpush1.bf16.msra.mxu0 0
      %2933 = vmatprep.subr.bf16.mxu0 0
      %2934 = vmatpush1.bf16.msra.mxu0 0
      %2935 = vmatprep.subr.bf16.mxu0 0
      %2936 = vmatpush1.bf16.msra.mxu0 0
      %2937 = vmatprep.subr.bf16.mxu0 0
      %2938 = vmatpush1.bf16.msra.mxu0 0
      %2939 = vmatprep.subr.bf16.mxu0 0
      %2940 = vmatpush1.bf16.msra.mxu0 0
      %2941 = vmatprep.subr.bf16.mxu0 0
      %2942 = vmatpush1.bf16.msra.mxu0 0
      %2943 = vmatprep.mubr.bf16.mxu0 0
      %2944 = vmatmul.mubr.bf16.gmra.mrb[0].mxu0 %v2842
      %v2945 = vpop.f32.mrb[0].mxu0
      %v2946 = vadd.f32 0.0, %v2945
      %v2947 = vpop.f32.mrb[0].mxu0
      %v2948 = vpop.f32.mrb[0].mxu0
      %v2949 = vadd.f32 0.0, %v2948
      %v2950 = vpop.f32.mrb[0].mxu0
      %2951 = vmatprep.mubr.bf16.mxu0 0
      %2952 = vmatmul.mubr.bf16.gmra.mrb[0].mxu0 %v2843
      %v2953 = vpop.f32.mrb[0].mxu0
      %v2954 = vadd.f32 0.0, %v2953
      %v2955 = vpop.f32.mrb[0].mxu0
      %v2956 = vpop.f32.mrb[0].mxu0
      %v2957 = vadd.f32 0.0, %v2956
      %v2958 = vpop.f32.mrb[0].mxu0
      %2959 = vmatprep.mubr.bf16.mxu0 0
      %2960 = vmatmul.mubr.bf16.gmra.mrb[0].mxu0 %v2844
      %v2961 = vpop.f32.mrb[0].mxu0
      %v2962 = vadd.f32 0.0, %v2961
      %v2963 = vpop.f32.mrb[0].mxu0
      %v2964 = vpop.f32.mrb[0].mxu0
      %v2965 = vadd.f32 0.0, %v2964
      %v2966 = vpop.f32.mrb[0].mxu0
      %2967 = vmatprep.mubr.bf16.mxu0 0
      %2968 = vmatmul.mubr.bf16.gmra.mrb[0].mxu0 %v2845
      %v2969 = vpop.f32.mrb[0].mxu0
      %v2970 = vadd.f32 0.0, %v2969
      %v2971 = vpop.f32.mrb[0].mxu0
      %v2972 = vpop.f32.mrb[0].mxu0
      %v2973 = vadd.f32 0.0, %v2972
      %v2974 = vpop.f32.mrb[0].mxu0
      %2975 = vdwg.mxu0
      %v2976 = vadd.f32 %v2826, %v2946
      %v2977 = vadd.f32 %v2827, %v2949
      %v2978 = vadd.f32 %v2828, %v2954
      %v2979 = vadd.f32 %v2829, %v2957
      %v2980 = vadd.f32 %v2830, %v2962
      %v2981 = vadd.f32 %v2831, %v2965
      %v2982 = vadd.f32 %v2832, %v2970
      %v2983 = vadd.f32 %v2833, %v2973
      %v2984 = vld [vmem:[%s845] sm:$0xff]
      %v2985 = vld [vmem:[%s845 + $0x10] sm:$0xff]
      %v2986 = vld [vmem:[%s845 + $0x20] sm:$0xff]
      %v2987 = vld [vmem:[%s845 + $0x30] sm:$0xff]
      %v2988 = vld [vmem:[%s845 + $0x40] sm:$0xff]
      %v2989 = vld [vmem:[%s845 + $0x50] sm:$0xff]
      %v2990 = vld [vmem:[%s845 + $0x60] sm:$0xff]
      %v2991 = vld [vmem:[%s845 + $0x70] sm:$0xff]
      %v2992 = vld [vmem:[%s4] sm:$0xf]
      %v2994 = vsel %vm278, %v2984, 0
      %v2997 = vsel %vm278, %v2985, 0
      %v3000 = vsel %vm278, %v2986, 0
      %v3003 = vsel %vm278, %v2987, 0
      %v3006 = vsel %vm278, %v2988, 0
      %v3009 = vsel %vm278, %v2989, 0
      %v3012 = vsel %vm278, %v2990, 0
      %v3015 = vsel %vm278, %v2991, 0
      %v3018 = vsel %vm303, %v2992, 0
      %3020 = vmatprep.subr.mxu0 0.0
      %3021 = vmatpush1.msra.mxu0 %v3018
      %3022 = vmatprep.subr.mxu0 0.0
      %3023 = vmatpush1.msra.mxu0 0.0
      %3024 = vmatprep.subr.mxu0 0.0
      %3025 = vmatpush1.msra.mxu0 0.0
      %3026 = vmatprep.subr.mxu0 0.0
      %3027 = vmatpush1.msra.mxu0 0.0
      %3028 = vmatprep.subr.mxu0 0.0
      %3029 = vmatpush1.msra.mxu0 0.0
      %3030 = vmatprep.subr.mxu0 0.0
      %3031 = vmatpush1.msra.mxu0 0.0
      %3032 = vmatprep.subr.mxu0 0.0
      %3033 = vmatpush1.msra.mxu0 0.0
      %3034 = vmatprep.subr.mxu0 0.0
      %3035 = vmatpush1.msra.mxu0 0.0
      %3036 = vmatprep.subr.mxu0 0.0
      %3037 = vmatpush1.msra.mxu0 0.0
      %3038 = vmatprep.subr.mxu0 0.0
      %3039 = vmatpush1.msra.mxu0 0.0
      %3040 = vmatprep.subr.mxu0 0.0
      %3041 = vmatpush1.msra.mxu0 0.0
      %3042 = vmatprep.subr.mxu0 0.0
      %3043 = vmatpush1.msra.mxu0 0.0
      %3044 = vmatprep.subr.mxu0 0.0
      %3045 = vmatpush1.msra.mxu0 0.0
      %3046 = vmatprep.subr.mxu0 0.0
      %3047 = vmatpush1.msra.mxu0 0.0
      %3048 = vmatprep.subr.mxu0 0.0
      %3049 = vmatpush1.msra.mxu0 0.0
      %3050 = vmatprep.subr.mxu0 0.0
      %3051 = vmatpush1.msra.mxu0 0.0
      %3052 = vmatprep.subr.mxu0 0.0
      %3053 = vmatpush1.msra.mxu0 0.0
      %3054 = vmatprep.subr.mxu0 0.0
      %3055 = vmatpush1.msra.mxu0 0.0
      %3056 = vmatprep.subr.mxu0 0.0
      %3057 = vmatpush1.msra.mxu0 0.0
      %3058 = vmatprep.subr.mxu0 0.0
      %3059 = vmatpush1.msra.mxu0 0.0
      %3060 = vmatprep.subr.mxu0 0.0
      %3061 = vmatpush1.msra.mxu0 0.0
      %3062 = vmatprep.subr.mxu0 0.0
      %3063 = vmatpush1.msra.mxu0 0.0
      %3064 = vmatprep.subr.mxu0 0.0
      %3065 = vmatpush1.msra.mxu0 0.0
      %3066 = vmatprep.subr.mxu0 0.0
      %3067 = vmatpush1.msra.mxu0 0.0
      %3068 = vmatprep.subr.mxu0 0.0
      %3069 = vmatpush1.msra.mxu0 0.0
      %3070 = vmatprep.subr.mxu0 0.0
      %3071 = vmatpush1.msra.mxu0 0.0
      %3072 = vmatprep.subr.mxu0 0.0
      %3073 = vmatpush1.msra.mxu0 0.0
      %3074 = vmatprep.subr.mxu0 0.0
      %3075 = vmatpush1.msra.mxu0 0.0
      %3076 = vmatprep.subr.mxu0 0.0
      %3077 = vmatpush1.msra.mxu0 0.0
      %3078 = vmatprep.subr.mxu0 0.0
      %3079 = vmatpush1.msra.mxu0 0.0
      %3080 = vmatprep.subr.mxu0 0.0
      %3081 = vmatpush1.msra.mxu0 0.0
      %3082 = vmatprep.subr.mxu0 0.0
      %3083 = vmatpush1.msra.mxu0 0.0
      %3084 = vmatprep.mubr.f32.mxu0 0.0
      %3085 = vmatmul.mubr.f32.gmra.mrb[0].mxu0 %v2994
      %v3086 = vpop.f32.mrb[0].mxu0
      %v3087 = vadd.f32 0.0, %v3086
      %v3088 = vpop.f32.mrb[0].mxu0
      %3089 = vmatprep.mubr.f32.mxu0 0.0
      %3090 = vmatmul.mubr.f32.gmra.mrb[0].mxu0 %v2997
      %v3091 = vpop.f32.mrb[0].mxu0
      %v3092 = vadd.f32 0.0, %v3091
      %v3093 = vpop.f32.mrb[0].mxu0
      %3094 = vmatprep.mubr.f32.mxu0 0.0
      %3095 = vmatmul.mubr.f32.gmra.mrb[0].mxu0 %v3000
      %v3096 = vpop.f32.mrb[0].mxu0
      %v3097 = vadd.f32 0.0, %v3096
      %v3098 = vpop.f32.mrb[0].mxu0
      %3099 = vmatprep.mubr.f32.mxu0 0.0
      %3100 = vmatmul.mubr.f32.gmra.mrb[0].mxu0 %v3003
      %v3101 = vpop.f32.mrb[0].mxu0
      %v3102 = vadd.f32 0.0, %v3101
      %v3103 = vpop.f32.mrb[0].mxu0
      %3104 = vmatprep.mubr.f32.mxu0 0.0
      %3105 = vmatmul.mubr.f32.gmra.mrb[0].mxu0 %v3006
      %v3106 = vpop.f32.mrb[0].mxu0
      %v3107 = vadd.f32 0.0, %v3106
      %v3108 = vpop.f32.mrb[0].mxu0
      %3109 = vmatprep.mubr.f32.mxu0 0.0
      %3110 = vmatmul.mubr.f32.gmra.mrb[0].mxu0 %v3009
      %v3111 = vpop.f32.mrb[0].mxu0
      %v3112 = vadd.f32 0.0, %v3111
      %v3113 = vpop.f32.mrb[0].mxu0
      %3114 = vmatprep.mubr.f32.mxu0 0.0
      %3115 = vmatmul.mubr.f32.gmra.mrb[0].mxu0 %v3012
      %v3116 = vpop.f32.mrb[0].mxu0
      %v3117 = vadd.f32 0.0, %v3116
      %v3118 = vpop.f32.mrb[0].mxu0
      %3119 = vmatprep.mubr.f32.mxu0 0.0
      %3120 = vmatmul.mubr.f32.gmra.mrb[0].mxu0 %v3015
      %v3121 = vpop.f32.mrb[0].mxu0
      %v3122 = vadd.f32 0.0, %v3121
      %v3123 = vpop.f32.mrb[0].mxu0
      %3124 = vdwg.mxu0
      %v3125 = vadd.f32 %v2976, %v3087
      %v3126 = vadd.f32 %v2977, %v3092
      %v3127 = vadd.f32 %v2978, %v3097
      %v3128 = vadd.f32 %v2979, %v3102
      %v3129 = vadd.f32 %v2980, %v3107
      %v3130 = vadd.f32 %v2981, %v3112
      %v3131 = vadd.f32 %v2982, %v3117
      %v3132 = vadd.f32 %v2983, %v3122
      %v3133 = vld [vmem:[%s5] sm:$0x1]
      %v3135 = vlaneseq
      %v3136 = vshrl.u32 %v3135, 7
      %v3137 = vsub.s32 0, %v3136
      %v3138 = vrot.slane %v3133, %v3137
      %v3140 = vadd.f32 %v3125, %v3138
      %v3141 = vadd.f32 %v3126, %v3138
      %v3142 = vadd.f32 %v3127, %v3138
      %v3143 = vadd.f32 %v3128, %v3138
      %v3144 = vadd.f32 %v3129, %v3138
      %v3145 = vadd.f32 %v3130, %v3138
      %v3146 = vadd.f32 %v3131, %v3138
      %v3147 = vadd.f32 %v3132, %v3138
      %v3148 = vmax.f32 %v3140, 0.0
      %v3149 = vmax.f32 %v3141, 0.0
      %v3150 = vmax.f32 %v3142, 0.0
      %v3151 = vmax.f32 %v3143, 0.0
      %v3152 = vmax.f32 %v3144, 0.0
      %v3153 = vmax.f32 %v3145, 0.0
      %v3154 = vmax.f32 %v3146, 0.0
      %v3155 = vmax.f32 %v3147, 0.0
      %3156 = vst [vmem:[%s256] sm:$0xff] %v3148
      %3157 = vst [vmem:[%s256 + $0x8] sm:$0xff] %v3149
      %3158 = vst [vmem:[%s256 + $0x10] sm:$0xff] %v3150
      %3159 = vst [vmem:[%s256 + $0x18] sm:$0xff] %v3151
      %3160 = vst [vmem:[%s256 + $0x20] sm:$0xff] %v3152
      %3161 = vst [vmem:[%s256 + $0x28] sm:$0xff] %v3153
      %3162 = vst [vmem:[%s256 + $0x30] sm:$0xff] %v3154
      %3163 = vst [vmem:[%s256 + $0x38] sm:$0xff] %v3155
      %p3164 = scmp.lt.s32.totalorder %s17, 1
      %s3165 = scalar_select %p3164, %s17, 1
      %s3166 = smul.addr %s3165, 8
      %s3167 = smul.addr %s3166, 8
      %s3168 = scalar_lea.vmem %s6, %s3167
      // Predicated region
      $region45: #{resnet_basic_block.1} parent=43 // pred_check
        %p3169 = pneg %p166
      $region46: #{resnet_basic_block.1} parent=43 // pred_check_branch
        %3171 = sbr.rel (%p3169) target = $region48
      $region47: #{resnet_basic_block.1} parent=43 // pred_region
        _
      $region48: #{resnet_basic_block.1} parent=43 // pred_fallthru
        _
    $region44: #{resnet_basic_block.1} parent=5 // pred_fallthru
      _
    %p3172 = scmp.le.s32.totalorder 2, %s12
    // Predicated region
    $region49: #{resnet_basic_block.1} parent=5 // pred_check
      %p3173 = pneg %p3172
    $region50: #{resnet_basic_block.1} parent=5 // pred_check_branch
      %3175 = sbr.rel (%p3173) target = $region52
    $region51: #{resnet_basic_block.1} parent=5 // pred_region
      %s3176 = ssub.s32 %s12, 2
      // Predicated region
      $region53: #{resnet_basic_block.1} parent=51 // pred_check
        %p3177 = pneg %p172
      $region54: #{resnet_basic_block.1} parent=51 // pred_check_branch
        %3179 = sbr.rel (%p3177) target = $region56
      $region55: #{resnet_basic_block.1} parent=51 // pred_region
        %p3180 = scmp.lt.s32.totalorder %s18, 1
        %s3181 = scalar_select %p3180, %s18, 1
        %s3182 = smul.addr %s3181, 8
        %s3183 = smul.addr %s3182, 8
        %s3184 = scalar_lea.vmem %s6, %s3183
      $region56: #{resnet_basic_block.1} parent=51 // pred_fallthru
        _
    $region52: #{resnet_basic_block.1} parent=5 // pred_fallthru
      _
  $region6: #{resnet_basic_block.1} parent=0 // loop_footer
    %s16 = sadd.s32 1, %s12
  $region7: #{resnet_basic_block.1} parent=0 // loop_footer_branch
    %11 = sbr.rel target = $region3
  $region8: #{resnet_basic_block.1} parent=0 // loop_exit
    _

</llo_original>
